<compile_context>
chip_gen: v5e
topology: v5e:2x2
jax: 0.10.0
libtpu: 0.0.40
codegen_flags: <defaults>
</compile_context>

<pallas_src>
import functools

import jax
import jax.numpy as jnp
from jax.experimental import pallas as pl
from jax.experimental.pallas import tpu as pltpu


def _chip_vmem_settings():
    """(vmem_limit_bytes, vmem_budget_bytes); larger on v5e/v6e (128 MiB VMEM), safe on v7x (64 MiB/TC)."""
    limit = 32 * 1024 * 1024
    budget = 12 * 1024 * 1024
    try:
        info = pltpu.get_tpu_info()
        cap = getattr(info, "vmem_capacity_bytes", None)
        if cap is not None and cap >= 100 * 1024 * 1024:   # v5e / v6e class chips
            limit = 64 * 1024 * 1024
            budget = 32 * 1024 * 1024
    except Exception:
        pass
    return limit, budget


_VMEM_LIMIT_BYTES, _VMEM_BUDGET_BYTES = _chip_vmem_settings()
_MAX_LANE_TILE = 1024                   # 512-2048 amortizes the ~0.35us per-grid-step overhead


def _pick_lane_tile(n, cap=_MAX_LANE_TILE):
    """Lane tile: multiple of 128 (ragged last block handled by Pallas) or full dim if < 128."""
    if n <= 128:
        return n
    return min(cap, (n // 128) * 128)


def _pick_row_tile(rw, tn):
    """Largest multiple-of-8 divisor of `rw` whose block fits the VMEM budget."""
    # 7 f32 planes per grid step (2 x-planes, 3 w-planes, 2 out-planes), double-buffered.
    max_elems = _VMEM_BUDGET_BYTES // (4 * 7 * 2)
    best, t = 8, 8
    while t <= rw:
        if rw % t == 0 and t * tn <= max_elems:
            best = t
        t += 8
    return best


# ---------------------------------------------------------------------------
# Pallas kernel 1: Fourier-domain complex multiply + real bias
# ---------------------------------------------------------------------------
def _fourier_mul_kernel(x_ref, w_ref, o_ref):
    """x_ref: (2,TR,TN) stacked (re, im); w_ref: (3,TR,TN) stacked (wr, wi, bias)."""
    xr = x_ref[0]
    xi = x_ref[1]
    wr = w_ref[0]
    wi = w_ref[1]
    # NOTE: the real-valued bias is added to the REAL part only -- this matches
    # PyTorch's `complex_tensor + real_tensor` broadcasting semantics. Do not "fix".
    o_ref[0] = xr * wr - xi * wi + w_ref[2]
    o_ref[1] = xr * wi + xi * wr


def _pallas_complex_mul_bias(x_stack, w_stack):
    """x_stack: (2, R, N) f32; w_stack: (3, RW, N) f32 with R % RW == 0, RW % 8 == 0."""
    _, R, N = x_stack.shape
    RW = w_stack.shape[1]
    TN = _pick_lane_tile(N)
    TR = _pick_row_tile(RW, TN)
    n_w_row_blocks = RW // TR
    grid = (R // TR, pl.cdiv(N, TN))        # rows first: largest parallel extent leads

    x_spec = pl.BlockSpec((2, TR, TN), lambda i, j: (0, i, j))
    if n_w_row_blocks == 1:
        w_spec = pl.BlockSpec((3, TR, TN), lambda i, j: (0, 0, j))
    else:
        w_spec = pl.BlockSpec((3, TR, TN), lambda i, j: (0, i % n_w_row_blocks, j))
    o_spec = pl.BlockSpec((2, TR, TN), lambda i, j: (0, i, j))

    cost = pl.CostEstimate(
        flops=7 * R * N,
        transcendentals=0,
        bytes_accessed=4 * (2 * R * N + 3 * RW * N + 2 * R * N),   # inputs + weights + output
    )
    return pl.pallas_call(
        _fourier_mul_kernel,
        out_shape=jax.ShapeDtypeStruct((2, R, N), jnp.float32),
        grid=grid,
        in_specs=[x_spec, w_spec],
        out_specs=o_spec,
        compiler_params=pltpu.CompilerParams(
            dimension_semantics=("parallel", "parallel"),
            vmem_limit_bytes=_VMEM_LIMIT_BYTES),
        cost_estimate=cost,
    )(x_stack, w_stack)


def _fourier_block_forward(x, complex_weight, bias):
    """Fourierblock.forward: x (B,C,D,H,W) -> (B,C,D,H,W)."""
    B, C, D, H, W = x.shape
    Wf = W // 2 + 1
    xp = jnp.transpose(x, (0, 2, 3, 4, 1))
    # TODO(synk): no Pallas TPU FFT primitive; rfftn/irfftn stay in XLA.
    xf = jnp.fft.rfftn(xp, axes=(1, 2, 3), norm="ortho")   # (B, D, H, Wf, C) complex64

    DH = D * H
    NW = Wf * C
    DHp = ((DH + 7) // 8) * 8            # pad rows so the sublane dim stays (8,128)-dense

    # Stack (re, im) into a single operand; pack (wr, wi, bias) into a single operand.
    x_stack = jnp.stack([jnp.real(xf), jnp.imag(xf)]).astype(jnp.float32)   # (2,B,D,H,Wf,C)
    x_stack = x_stack.reshape(2, B, DH, NW)
    w_stack = jnp.stack([
        complex_weight[..., 0].reshape(DH, NW),
        complex_weight[..., 1].reshape(DH, NW),
        bias.reshape(DH, NW)]).astype(jnp.float32)                          # (3, DH, NW)
    if DHp != DH:
        x_stack = jnp.pad(x_stack, ((0, 0), (0, 0), (0, DHp - DH), (0, 0)))
        w_stack = jnp.pad(w_stack, ((0, 0), (0, DHp - DH), (0, 0)))
    x_stack = x_stack.reshape(2, B * DHp, NW)

    out = _pallas_complex_mul_bias(x_stack, w_stack)        # (2, B*DHp, NW)
    out = out.reshape(2, B, DHp, NW)[:, :, :DH, :]
    yf = jax.lax.complex(out[0], out[1]).reshape(B, D, H, Wf, C)
    y = jnp.fft.irfftn(yf, s=(D, H, W), axes=(1, 2, 3), norm="ortho")
    return jnp.transpose(y, (0, 4, 1, 2, 3)).astype(jnp.float32)


# ---------------------------------------------------------------------------
# Pallas kernel 2: fused MSCA tail (branch sum + 1x1x1 conv + attn*x + x)
# ---------------------------------------------------------------------------
def _make_msca_tail_kernel(has_fourier, use_mxu, n_channels):
    def kernel(*refs):
        if has_fourier:
            (x_ref, cin_ref, b1_ref, b2_ref, b3_ref, fr_ref,
             w_ref, bias_ref, o_ref) = refs
        else:
            (x_ref, cin_ref, b1_ref, b2_ref, b3_ref,
             w_ref, bias_ref, o_ref) = refs
        combined = cin_ref[0] + b1_ref[0] + b2_ref[0] + b3_ref[0]     # (Cp, TS)
        if has_fourier:
            combined = combined + fr_ref[0]
        if use_mxu:
            # 1x1x1 channel mix on the MXU (vector-extended slot) -> kernel stays HBM-bound.
            attn = jnp.dot(w_ref[...], combined,
                           preferred_element_type=jnp.float32,
                           precision=jax.lax.Precision.HIGHEST)
        else:
            # Tiny-C fallback: unrolled VPU multiply-adds.
            w = w_ref[...]
            attn = w[:, 0:1] * combined[0:1, :]
            for ci in range(1, n_channels):
                attn = attn + w[:, ci:ci + 1] * combined[ci:ci + 1, :]
        attn = attn + bias_ref[...]                                    # (Cp, 1) broadcast
        xv = x_ref[0]
        o_ref[0] = attn * xv + xv
    return kernel


def _pallas_msca_tail(x, conv_in, br1, br2, br3, fourier, pw_weight, pw_bias):
    # TODO(synk): the depthwise 3-D conv branches are still separate XLA ops; a fully
    # fused Pallas conv+sum kernel (keeping conv_in tiles VMEM-resident) would remove
    # the intermediate HBM round-trips but is not implemented here.
    B, C, D, H, W = x.shape
    S = D * H * W
    Cp = ((C + 7) // 8) * 8              # sublane-dense channel dim

    def prep(t):
        t = t.reshape(B, C, S).astype(jnp.float32)
        if Cp != C:
            t = jnp.pad(t, ((0, 0), (0, Cp - C), (0, 0)))
        return t

    ins = [prep(x), prep(conv_in), prep(br1), prep(br2), prep(br3)]
    has_fourier = fourier is not None
    if has_fourier:
        ins.append(prep(fourier))

    w = pw_weight.reshape(C, C).astype(jnp.float32)
    b = pw_bias.reshape(C).astype(jnp.float32)
    if Cp != C:
        w = jnp.pad(w, ((0, Cp - C), (0, Cp - C)))
        b = jnp.pad(b, ((0, Cp - C),))
    b = b.reshape(Cp, 1)

    n_big = len(ins) + 1                                     # + output buffer
    max_elems = _VMEM_BUDGET_BYTES // (4 * 2 * n_big)
    ts_cap = max(128, (max_elems // Cp // 128) * 128)
    TS = _pick_lane_tile(S, cap=min(2048, ts_cap))
    n_s = pl.cdiv(S, TS)
    grid = (n_s, B)   # spatial-block axis first: largest parallel extent feeds v7x's 2 TCs

    t_spec = pl.BlockSpec((1, Cp, TS), lambda s, bb: (bb, 0, s))
    w_spec = pl.BlockSpec((Cp, Cp), lambda s, bb: (0, 0))
    b_spec = pl.BlockSpec((Cp, 1), lambda s, bb: (0, 0))

    use_mxu = Cp >= 8

    cost = pl.CostEstimate(
        flops=(2 * Cp * Cp + 2 * (len(ins) + 1)) * B * S,
        transcendentals=0,
        bytes_accessed=4 * (n_big * B * Cp * S + Cp * Cp + Cp),
    )
    out = pl.pallas_call(
        _make_msca_tail_kernel(has_fourier, use_mxu, Cp),
        out_shape=jax.ShapeDtypeStruct((B, Cp, S), jnp.float32),
        grid=grid,
        in_specs=[t_spec] * len(ins) + [w_spec, b_spec],
        out_specs=t_spec,
        compiler_params=pltpu.CompilerParams(
            dimension_semantics=("parallel", "parallel"),
            vmem_limit_bytes=_VMEM_LIMIT_BYTES),
        cost_estimate=cost,
    )(*ins, w, b)
    return out[:, :C, :].reshape(B, C, D, H, W)


# ---------------------------------------------------------------------------
# MSCA forward
# ---------------------------------------------------------------------------
def _depthwise_conv3d(x, w, b):
    """PyTorch Conv3d(C, C, k, padding=k//2, groups=C): w (C,1,kd,kh,kw), b (C,)."""
    # TODO(synk): grouped/depthwise 3-D convolutions have no Pallas kernel here; left to XLA.
    c = x.shape[1]
    kd, kh, kw = w.shape[2], w.shape[3], w.shape[4]
    y = jax.lax.conv_general_dilated(
        x, w,
        window_strides=(1, 1, 1),
        padding=((kd // 2, kd // 2), (kh // 2, kh // 2), (kw // 2, kw // 2)),
        dimension_numbers=("NCDHW", "OIDHW", "NCDHW"),
        feature_group_count=c,
        precision=jax.lax.Precision.HIGHEST)
    return y + b.reshape(1, c, 1, 1, 1)


@functools.partial(jax.jit, static_argnames=("encoder_stage",))
def msca_forward(x, params, encoder_stage=1):
    conv_in = _depthwise_conv3d(x, params["w_3x3x3"], params["b_3x3x3"])
    conv_br1 = _depthwise_conv3d(
        _depthwise_conv3d(conv_in, params["w_1x5x5"], params["b_1x5x5"]),
        params["w_5x1x1"], params["b_5x1x1"])
    conv_br2 = _depthwise_conv3d(
        _depthwise_conv3d(conv_in, params["w_1x7x7"], params["b_1x7x7"]),
        params["w_7x1x1"], params["b_7x1x1"])
    conv_br3 = _depthwise_conv3d(
        _depthwise_conv3d(conv_in, params["w_1x11x11"], params["b_1x11x11"]),
        params["w_11x1x1"], params["b_11x1x1"])
    if encoder_stage in (0, 1, 2, 3):
        conv_fourier = None
    else:
        conv_fourier = _fourier_block_forward(
            x, params["fourier_weight"], params["fourier_bias"])
    return _pallas_msca_tail(
        x, conv_in, conv_br1, conv_br2, conv_br3, conv_fourier,
        params["w_1x1x1"], params["b_1x1x1"])


def _reference_msca(x, params, encoder_stage):
    """Pure JAX/XLA reference mirroring the PyTorch module (no Pallas)."""
    B, C, D, H, W = x.shape
    conv_in = _depthwise_conv3d(x, params["w_3x3x3"], params["b_3x3x3"])
    conv_br1 = _depthwise_conv3d(
        _depthwise_conv3d(conv_in, params["w_1x5x5"], params["b_1x5x5"]),
        params["w_5x1x1"], params["b_5x1x1"])
    conv_br2 = _depthwise_conv3d(
        _depthwise_conv3d(conv_in, params["w_1x7x7"], params["b_1x7x7"]),
        params["w_7x1x1"], params["b_7x1x1"])
    conv_br3 = _depthwise_conv3d(
        _depthwise_conv3d(conv_in, params["w_1x11x11"], params["b_1x11x11"]),
        params["w_11x1x1"], params["b_11x1x1"])
    combined = conv_in + conv_br1 + conv_br2 + conv_br3
    if encoder_stage not in (0, 1, 2, 3):
        xp = jnp.transpose(x, (0, 2, 3, 4, 1))
        xf = jnp.fft.rfftn(xp, axes=(1, 2, 3), norm="ortho")
        wc = params["fourier_weight"][..., 0] + 1j * params["fourier_weight"][..., 1]
        xf = xf * wc + params["fourier_bias"]
        y = jnp.fft.irfftn(xf, s=(D, H, W), axes=(1, 2, 3), norm="ortho")
        combined = combined + jnp.transpose(y, (0, 4, 1, 2, 3))
    attn = jnp.einsum("oc,bcdhw->bodhw", params["w_1x1x1"].reshape(C, C), combined,
                      precision=jax.lax.Precision.HIGHEST)
    attn = attn + params["b_1x1x1"].reshape(1, C, 1, 1, 1)
    out = attn * x
    return out + x


if __name__ == "__main__":
    B, C, D, H, W = 2, 4, 4, 8, 8
    Wf = W // 2 + 1

    key = jax.random.PRNGKey(0)
    ks = list(jax.random.split(key, 19))

    def nrm(k, shape, scale=1.0):
        return (scale * jax.random.normal(k, shape, dtype=jnp.float32)).astype(jnp.float32)

    params = {
        "w_3x3x3":   nrm(ks[0],  (C, 1, 3, 3, 3),   0.2),
        "b_3x3x3":   nrm(ks[1],  (C,),              0.2),
        "w_1x5x5":   nrm(ks[2],  (C, 1, 1, 5, 5),   0.1),
        "b_1x5x5":   nrm(ks[3],  (C,),              0.1),
        "w_5x1x1":   nrm(ks[4],  (C, 1, 5, 1, 1),   0.1),
        "b_5x1x1":   nrm(ks[5],  (C,),              0.1),
        "w_1x7x7":   nrm(ks[6],  (C, 1, 1, 7, 7),   0.1),
        "b_1x7x7":   nrm(ks[7],  (C,),              0.1),
        "w_7x1x1":   nrm(ks[8],  (C, 1, 7, 1, 1),   0.1),
        "b_7x1x1":   nrm(ks[9],  (C,),              0.1),
        "w_1x11x11": nrm(ks[10], (C, 1, 1, 11, 11), 0.05),
        "b_1x11x11": nrm(ks[11], (C,),              0.05),
        "w_11x1x1":  nrm(ks[12], (C, 1, 11, 1, 1),  0.05),
        "b_11x1x1":  nrm(ks[13], (C,),              0.05),
        "w_1x1x1":   nrm(ks[14], (C, C, 1, 1, 1),   0.2),
        "b_1x1x1":   nrm(ks[15], (C,),              0.2),
        "fourier_weight": nrm(ks[16], (D, H, Wf, C, 2), 1.0),
        "fourier_bias":   nrm(ks[17], (D, H, Wf, C),    1.0),
    }
    x = nrm(ks[18], (B, C, D, H, W), 1.0)

    def check(a, b, name, tol=2e-3):
        err = float(jnp.max(jnp.abs(a - b)))
        scale = float(jnp.max(jnp.abs(b))) + 1e-6
        assert err / scale < tol, (name, err, scale)

    # encoder_stage = 4: Fourier branch active (exercises the Pallas complex-mul kernel).
    out_f = jax.block_until_ready(msca_forward(x, params, encoder_stage=4))
    assert out_f.shape == (B, C, D, H, W), out_f.shape
    check(out_f, _reference_msca(x, params, 4), "encoder_stage=4")

    # encoder_stage = 1: conv-only path (fused tail kernel without the Fourier input).
    out_c = jax.block_until_ready(msca_forward(x, params, encoder_stage=1))
    check(out_c, _reference_msca(x, params, 1), "encoder_stage=1")

    print("KERNEL_OK")
</pallas_src>

<mosaic_0001>
module attributes {stable_mosaic.version = 11 : i64} {
  func.func @_fourier_mul_kernel(%arg0: i32, %arg1: i32, %arg2: memref<2x32x20xf32, #tpu.memory_space<vmem>>, %arg3: memref<3x32x20xf32, #tpu.memory_space<vmem>>, %arg4: memref<2x32x20xf32, #tpu.memory_space<vmem>>) attributes {dimension_semantics = [#tpu.dimension_semantics<parallel>, #tpu.dimension_semantics<parallel>], iteration_bounds = array<i64: 2, 1>, scalar_prefetch = 0 : i64, scratch_operands = 0 : i64, tpu.core_type = #tpu.core_type<tc>, window_params = [{transform_indices = @transform_0, window_bounds = array<i64: 2, 32, 20>}, {transform_indices = @transform_1, window_bounds = array<i64: 3, 32, 20>}, {transform_indices = @transform_2, window_bounds = array<i64: 2, 32, 20>}]} {
    %c0 = arith.constant 0 : index
    %c0_0 = arith.constant 0 : index
    %c0_1 = arith.constant 0 : index
    %0 = vector.load %arg2[%c0, %c0_0, %c0_1] : memref<2x32x20xf32, #tpu.memory_space<vmem>>, vector<1x32x20xf32>
    %1 = vector.shape_cast %0 : vector<1x32x20xf32> to vector<32x20xf32>
    %c1 = arith.constant 1 : index
    %c0_2 = arith.constant 0 : index
    %c0_3 = arith.constant 0 : index
    %2 = vector.load %arg2[%c1, %c0_2, %c0_3] : memref<2x32x20xf32, #tpu.memory_space<vmem>>, vector<1x32x20xf32>
    %3 = vector.shape_cast %2 : vector<1x32x20xf32> to vector<32x20xf32>
    %c0_4 = arith.constant 0 : index
    %c0_5 = arith.constant 0 : index
    %c0_6 = arith.constant 0 : index
    %4 = vector.load %arg3[%c0_4, %c0_5, %c0_6] : memref<3x32x20xf32, #tpu.memory_space<vmem>>, vector<1x32x20xf32>
    %5 = vector.shape_cast %4 : vector<1x32x20xf32> to vector<32x20xf32>
    %c1_7 = arith.constant 1 : index
    %c0_8 = arith.constant 0 : index
    %c0_9 = arith.constant 0 : index
    %6 = vector.load %arg3[%c1_7, %c0_8, %c0_9] : memref<3x32x20xf32, #tpu.memory_space<vmem>>, vector<1x32x20xf32>
    %7 = vector.shape_cast %6 : vector<1x32x20xf32> to vector<32x20xf32>
    %8 = arith.mulf %1, %5 : vector<32x20xf32>
    %9 = arith.mulf %3, %7 : vector<32x20xf32>
    %10 = arith.subf %8, %9 : vector<32x20xf32>
    %c2 = arith.constant 2 : index
    %c0_10 = arith.constant 0 : index
    %c0_11 = arith.constant 0 : index
    %11 = vector.load %arg3[%c2, %c0_10, %c0_11] : memref<3x32x20xf32, #tpu.memory_space<vmem>>, vector<1x32x20xf32>
    %12 = vector.shape_cast %11 : vector<1x32x20xf32> to vector<32x20xf32>
    %13 = arith.addf %10, %12 : vector<32x20xf32>
    %c0_12 = arith.constant 0 : index
    %c0_13 = arith.constant 0 : index
    %c0_14 = arith.constant 0 : index
    %14 = vector.load %arg4[%c0_12, %c0_13, %c0_14] : memref<2x32x20xf32, #tpu.memory_space<vmem>>, vector<1x32x20xf32>
    %15 = vector.shape_cast %14 : vector<1x32x20xf32> to vector<32x20xf32>
    %16 = vector.shape_cast %13 : vector<32x20xf32> to vector<1x32x20xf32>
    tpu.vector_store %arg4[%c0_12, %c0_13, %c0_14], %16 {strides = array<i32>} : memref<2x32x20xf32, #tpu.memory_space<vmem>>, vector<1x32x20xf32>,
    %17 = arith.mulf %1, %7 : vector<32x20xf32>
    %18 = arith.mulf %3, %5 : vector<32x20xf32>
    %19 = arith.addf %17, %18 : vector<32x20xf32>
    %c1_15 = arith.constant 1 : index
    %c0_16 = arith.constant 0 : index
    %c0_17 = arith.constant 0 : index
    %20 = vector.load %arg4[%c1_15, %c0_16, %c0_17] : memref<2x32x20xf32, #tpu.memory_space<vmem>>, vector<1x32x20xf32>
    %21 = vector.shape_cast %20 : vector<1x32x20xf32> to vector<32x20xf32>
    %22 = vector.shape_cast %19 : vector<32x20xf32> to vector<1x32x20xf32>
    tpu.vector_store %arg4[%c1_15, %c0_16, %c0_17], %22 {strides = array<i32>} : memref<2x32x20xf32, #tpu.memory_space<vmem>>, vector<1x32x20xf32>,
    return
  }
  func.func @transform_0(%arg0: i32, %arg1: i32) -> (i32, i32, i32) {
    %c0_i32 = arith.constant 0 : i32
    %c0_i32_0 = arith.constant 0 : i32
    return %c0_i32, %arg0, %arg1 : i32, i32, i32
  }
  func.func @transform_1(%arg0: i32, %arg1: i32) -> (i32, i32, i32) {
    %c0_i32 = arith.constant 0 : i32
    %c0_i32_0 = arith.constant 0 : i32
    %c0_i32_1 = arith.constant 0 : i32
    return %c0_i32, %c0_i32_0, %arg1 : i32, i32, i32
  }
  func.func @transform_2(%arg0: i32, %arg1: i32) -> (i32, i32, i32) {
    %c0_i32 = arith.constant 0 : i32
    %c0_i32_0 = arith.constant 0 : i32
    return %c0_i32, %arg0, %arg1 : i32, i32, i32
  }
}

module attributes {stable_mosaic.version = 11 : i64} {
  func.func @kernel(%arg0: i32, %arg1: i32, %arg2: memref<1x8x256xf32, #tpu.memory_space<vmem>>, %arg3: memref<1x8x256xf32, #tpu.memory_space<vmem>>, %arg4: memref<1x8x256xf32, #tpu.memory_space<vmem>>, %arg5: memref<1x8x256xf32, #tpu.memory_space<vmem>>, %arg6: memref<1x8x256xf32, #tpu.memory_space<vmem>>, %arg7: memref<1x8x256xf32, #tpu.memory_space<vmem>>, %arg8: memref<8x8xf32, #tpu.memory_space<vmem>>, %arg9: memref<8x1xf32, #tpu.memory_space<vmem>>, %arg10: memref<1x8x256xf32, #tpu.memory_space<vmem>>) attributes {dimension_semantics = [#tpu.dimension_semantics<parallel>, #tpu.dimension_semantics<parallel>], iteration_bounds = array<i64: 1, 2>, scalar_prefetch = 0 : i64, scratch_operands = 0 : i64, tpu.core_type = #tpu.core_type<tc>, window_params = [{transform_indices = @transform_0, window_bounds = array<i64: 1, 8, 256>}, {transform_indices = @transform_1, window_bounds = array<i64: 1, 8, 256>}, {transform_indices = @transform_2, window_bounds = array<i64: 1, 8, 256>}, {transform_indices = @transform_3, window_bounds = array<i64: 1, 8, 256>}, {transform_indices = @transform_4, window_bounds = array<i64: 1, 8, 256>}, {transform_indices = @transform_5, window_bounds = array<i64: 1, 8, 256>}, {pipeline_mode = #tpu.pipeline_mode<synchronous>, transform_indices = @transform_6, window_bounds = array<i64: 8, 8>}, {pipeline_mode = #tpu.pipeline_mode<synchronous>, transform_indices = @transform_7, window_bounds = array<i64: 8, 1>}, {transform_indices = @transform_8, window_bounds = array<i64: 1, 8, 256>}]} {
    %c0 = arith.constant 0 : index
    %c0_0 = arith.constant 0 : index
    %c0_1 = arith.constant 0 : index
    %0 = vector.load %arg3[%c0, %c0_0, %c0_1] : memref<1x8x256xf32, #tpu.memory_space<vmem>>, vector<1x8x256xf32>
    %1 = vector.shape_cast %0 : vector<1x8x256xf32> to vector<8x256xf32>
    %c0_2 = arith.constant 0 : index
    %c0_3 = arith.constant 0 : index
    %c0_4 = arith.constant 0 : index
    %2 = vector.load %arg4[%c0_2, %c0_3, %c0_4] : memref<1x8x256xf32, #tpu.memory_space<vmem>>, vector<1x8x256xf32>
    %3 = vector.shape_cast %2 : vector<1x8x256xf32> to vector<8x256xf32>
    %4 = arith.addf %1, %3 : vector<8x256xf32>
    %c0_5 = arith.constant 0 : index
    %c0_6 = arith.constant 0 : index
    %c0_7 = arith.constant 0 : index
    %5 = vector.load %arg5[%c0_5, %c0_6, %c0_7] : memref<1x8x256xf32, #tpu.memory_space<vmem>>, vector<1x8x256xf32>
    %6 = vector.shape_cast %5 : vector<1x8x256xf32> to vector<8x256xf32>
    %7 = arith.addf %4, %6 : vector<8x256xf32>
    %c0_8 = arith.constant 0 : index
    %c0_9 = arith.constant 0 : index
    %c0_10 = arith.constant 0 : index
    %8 = vector.load %arg6[%c0_8, %c0_9, %c0_10] : memref<1x8x256xf32, #tpu.memory_space<vmem>>, vector<1x8x256xf32>
    %9 = vector.shape_cast %8 : vector<1x8x256xf32> to vector<8x256xf32>
    %10 = arith.addf %7, %9 : vector<8x256xf32>
    %c0_11 = arith.constant 0 : index
    %c0_12 = arith.constant 0 : index
    %c0_13 = arith.constant 0 : index
    %11 = vector.load %arg7[%c0_11, %c0_12, %c0_13] : memref<1x8x256xf32, #tpu.memory_space<vmem>>, vector<1x8x256xf32>
    %12 = vector.shape_cast %11 : vector<1x8x256xf32> to vector<8x256xf32>
    %13 = arith.addf %10, %12 : vector<8x256xf32>
    %c0_14 = arith.constant 0 : index
    %c0_15 = arith.constant 0 : index
    %14 = vector.load %arg8[%c0_14, %c0_15] : memref<8x8xf32, #tpu.memory_space<vmem>>, vector<8x8xf32>
    %cst = arith.constant dense<0.000000e+00> : vector<8x256xf32>
    %15 = tpu.matmul %14, %13, %cst {dimension_numbers = #tpu.dot_dimension_numbers<[1], [0], [0], [1], [0, 0, 1, 1], [], []>, precision = #tpu.contract_precision<fp32>} : vector<8x8xf32>, vector<8x256xf32>, vector<8x256xf32> -> vector<8x256xf32>
    %c0_16 = arith.constant 0 : index
    %c0_17 = arith.constant 0 : index
    %16 = vector.load %arg9[%c0_16, %c0_17] : memref<8x1xf32, #tpu.memory_space<vmem>>, vector<8x1xf32>
    %17 = vector.broadcast %16 : vector<8x1xf32> to vector<8x256xf32>
    %18 = arith.addf %15, %17 : vector<8x256xf32>
    %c0_18 = arith.constant 0 : index
    %c0_19 = arith.constant 0 : index
    %c0_20 = arith.constant 0 : index
    %19 = vector.load %arg2[%c0_18, %c0_19, %c0_20] : memref<1x8x256xf32, #tpu.memory_space<vmem>>, vector<1x8x256xf32>
    %20 = vector.shape_cast %19 : vector<1x8x256xf32> to vector<8x256xf32>
    %21 = arith.mulf %18, %20 : vector<8x256xf32>
    %22 = arith.addf %21, %20 : vector<8x256xf32>
    %c0_21 = arith.constant 0 : index
    %c0_22 = arith.constant 0 : index
    %c0_23 = arith.constant 0 : index
    %23 = vector.load %arg10[%c0_21, %c0_22, %c0_23] : memref<1x8x256xf32, #tpu.memory_space<vmem>>, vector<1x8x256xf32>
    %24 = vector.shape_cast %23 : vector<1x8x256xf32> to vector<8x256xf32>
    %25 = vector.shape_cast %22 : vector<8x256xf32> to vector<1x8x256xf32>
    tpu.vector_store %arg10[%c0_21, %c0_22, %c0_23], %25 {strides = array<i32>} : memref<1x8x256xf32, #tpu.memory_space<vmem>>, vector<1x8x256xf32>,
    return
  }
  func.func @transform_0(%arg0: i32, %arg1: i32) -> (i32, i32, i32) {
    %c0_i32 = arith.constant 0 : i32
    %c0_i32_0 = arith.constant 0 : i32
    return %arg1, %c0_i32, %arg0 : i32, i32, i32
  }
  func.func @transform_1(%arg0: i32, %arg1: i32) -> (i32, i32, i32) {
    %c0_i32 = arith.constant 0 : i32
    %c0_i32_0 = arith.constant 0 : i32
    return %arg1, %c0_i32, %arg0 : i32, i32, i32
  }
  func.func @transform_2(%arg0: i32, %arg1: i32) -> (i32, i32, i32) {
    %c0_i32 = arith.constant 0 : i32
    %c0_i32_0 = arith.constant 0 : i32
    return %arg1, %c0_i32, %arg0 : i32, i32, i32
  }
  func.func @transform_3(%arg0: i32, %arg1: i32) -> (i32, i32, i32) {
    %c0_i32 = arith.constant 0 : i32
    %c0_i32_0 = arith.constant 0 : i32
    return %arg1, %c0_i32, %arg0 : i32, i32, i32
  }
  func.func @transform_4(%arg0: i32, %arg1: i32) -> (i32, i32, i32) {
    %c0_i32 = arith.constant 0 : i32
    %c0_i32_0 = arith.constant 0 : i32
    return %arg1, %c0_i32, %arg0 : i32, i32, i32
  }
  func.func @transform_5(%arg0: i32, %arg1: i32) -> (i32, i32, i32) {
    %c0_i32 = arith.constant 0 : i32
    %c0_i32_0 = arith.constant 0 : i32
    return %arg1, %c0_i32, %arg0 : i32, i32, i32
  }
  func.func @transform_6(%arg0: i32, %arg1: i32) -> (i32, i32) {
    %c0_i32 = arith.constant 0 : i32
    %c0_i32_0 = arith.constant 0 : i32
    %c0_i32_1 = arith.constant 0 : i32
    return %c0_i32, %c0_i32_0 : i32, i32
  }
  func.func @transform_7(%arg0: i32, %arg1: i32) -> (i32, i32) {
    %c0_i32 = arith.constant 0 : i32
    %c0_i32_0 = arith.constant 0 : i32
    %c0_i32_1 = arith.constant 0 : i32
    return %c0_i32, %c0_i32_0 : i32, i32
  }
  func.func @transform_8(%arg0: i32, %arg1: i32) -> (i32, i32, i32) {
    %c0_i32 = arith.constant 0 : i32
    %c0_i32_0 = arith.constant 0 : i32
    return %arg1, %c0_i32, %arg0 : i32, i32, i32
  }
}

</mosaic_0001>

<llo_original>
// kernel: squeeze.4
$region0: #{squeeze.4}
  %s0 = inlined_call_operand.vmem [shape: f32[4,8,5,4,1], index: 0, kind: input, shape index: {}]
  %s1 = inlined_call_operand.vmem [shape: f32[1,32,20], index: 1, kind: output, shape index: {}]
  $region1: #{squeeze.4} parent=0
    #allocation0 [shape = 'u8[81920]{0}', space=vmem, size = 0x14000, scoped, tag = 'scoped mem for output reshape']
    #allocation1 [shape = 'u8[81920]{0}', space=vmem, size = 0x14000, scoped, tag = 'scoped mem for input reshape']
    %s3 = ssub.s32 16, 1
    %s4 = scalar_lea.vmem %s0, 76
    %v5 = vld [vmem:[%s4] sm:%s3]
    %s6 = scalar_lea.vmem [#allocation1], 152
    %7 = vst [vmem:[%s6] sm:%s3] %v5
    %s8 = scalar_lea.vmem %s0, 72
    %v9 = vld [vmem:[%s8] sm:%s3]
    %s10 = scalar_lea.vmem [#allocation1], 144
    %11 = vst [vmem:[%s10] sm:%s3] %v9
    %s12 = scalar_lea.vmem %s0, 68
    %v13 = vld [vmem:[%s12] sm:%s3]
    %s14 = scalar_lea.vmem [#allocation1], 136
    %15 = vst [vmem:[%s14] sm:%s3] %v13
    %s16 = scalar_lea.vmem %s0, 64
    %v17 = vld [vmem:[%s16] sm:%s3]
    %s18 = scalar_lea.vmem [#allocation1], 128
    %19 = vst [vmem:[%s18] sm:%s3] %v17
    %s20 = scalar_lea.vmem %s0, 60
    %v21 = vld [vmem:[%s20] sm:%s3]
    %s22 = scalar_lea.vmem [#allocation1], 120
    %23 = vst [vmem:[%s22] sm:%s3] %v21
    %s24 = scalar_lea.vmem %s0, 56
    %v25 = vld [vmem:[%s24] sm:%s3]
    %s26 = scalar_lea.vmem [#allocation1], 112
    %27 = vst [vmem:[%s26] sm:%s3] %v25
    %s28 = scalar_lea.vmem %s0, 52
    %v29 = vld [vmem:[%s28] sm:%s3]
    %s30 = scalar_lea.vmem [#allocation1], 104
    %31 = vst [vmem:[%s30] sm:%s3] %v29
    %s32 = scalar_lea.vmem %s0, 48
    %v33 = vld [vmem:[%s32] sm:%s3]
    %s34 = scalar_lea.vmem [#allocation1], 96
    %35 = vst [vmem:[%s34] sm:%s3] %v33
    %s36 = scalar_lea.vmem %s0, 44
    %v37 = vld [vmem:[%s36] sm:%s3]
    %s38 = scalar_lea.vmem [#allocation1], 88
    %39 = vst [vmem:[%s38] sm:%s3] %v37
    %s40 = scalar_lea.vmem %s0, 40
    %v41 = vld [vmem:[%s40] sm:%s3]
    %s42 = scalar_lea.vmem [#allocation1], 80
    %43 = vst [vmem:[%s42] sm:%s3] %v41
    %s44 = scalar_lea.vmem %s0, 36
    %v45 = vld [vmem:[%s44] sm:%s3]
    %s46 = scalar_lea.vmem [#allocation1], 72
    %47 = vst [vmem:[%s46] sm:%s3] %v45
    %s48 = scalar_lea.vmem %s0, 32
    %v49 = vld [vmem:[%s48] sm:%s3]
    %s50 = scalar_lea.vmem [#allocation1], 64
    %51 = vst [vmem:[%s50] sm:%s3] %v49
    %s52 = scalar_lea.vmem %s0, 28
    %v53 = vld [vmem:[%s52] sm:%s3]
    %s54 = scalar_lea.vmem [#allocation1], 56
    %55 = vst [vmem:[%s54] sm:%s3] %v53
    %s56 = scalar_lea.vmem %s0, 24
    %v57 = vld [vmem:[%s56] sm:%s3]
    %s58 = scalar_lea.vmem [#allocation1], 48
    %59 = vst [vmem:[%s58] sm:%s3] %v57
    %s60 = scalar_lea.vmem %s0, 20
    %v61 = vld [vmem:[%s60] sm:%s3]
    %s62 = scalar_lea.vmem [#allocation1], 40
    %63 = vst [vmem:[%s62] sm:%s3] %v61
    %s64 = scalar_lea.vmem %s0, 16
    %v65 = vld [vmem:[%s64] sm:%s3]
    %s66 = scalar_lea.vmem [#allocation1], 32
    %67 = vst [vmem:[%s66] sm:%s3] %v65
    %s68 = scalar_lea.vmem %s0, 12
    %v69 = vld [vmem:[%s68] sm:%s3]
    %s70 = scalar_lea.vmem [#allocation1], 24
    %71 = vst [vmem:[%s70] sm:%s3] %v69
    %s72 = scalar_lea.vmem %s0, 8
    %v73 = vld [vmem:[%s72] sm:%s3]
    %s74 = scalar_lea.vmem [#allocation1], 16
    %75 = vst [vmem:[%s74] sm:%s3] %v73
    %s76 = scalar_lea.vmem %s0, 4
    %v77 = vld [vmem:[%s76] sm:%s3]
    %s78 = scalar_lea.vmem [#allocation1], 8
    %79 = vst [vmem:[%s78] sm:%s3] %v77
    %v80 = vld [vmem:[%s0] sm:%s3]
    %81 = vst [vmem:[#allocation1] sm:%s3] %v80
    %v82 = vld [vmem:[#allocation1] ss:$8 sm:$0xf]
    %v83 = vld [vmem:[#allocation1] ss:$8 sm:$0xf0]
    %vm84 = vcmask 1047556
    %v85 = vsel %vm84, %v83, %v82
    %vm86 = vcmask 64512
    %87 = vst.msk [vmem:[#allocation0] ss:$8 sm:$0xf] %vm86, %v85
    %88 = vst.msk [vmem:[#allocation0] ss:$8 sm:$0xf0] %vm86, %v85
    %s89 = scalar_lea.vmem [#allocation1], 64
    %v90 = vld [vmem:[%s89] ss:$8 sm:$0xf]
    %s91 = scalar_lea.vmem [#allocation1], 64
    %v92 = vld [vmem:[%s91] ss:$8 sm:$0xf0]
    %vm93 = vcmask 1047556
    %v94 = vsel %vm93, %v92, %v90
    %vm95 = vcmask 64512
    %s96 = scalar_lea.vmem [#allocation0], 64
    %97 = vst.msk [vmem:[%s96] ss:$8 sm:$0xf] %vm95, %v94
    %s98 = scalar_lea.vmem [#allocation0], 64
    %99 = vst.msk [vmem:[%s98] ss:$8 sm:$0xf0] %vm95, %v94
    %s100 = scalar_lea.vmem [#allocation1], 128
    %v101 = vld [vmem:[%s100] ss:$8 sm:$0xf]
    %vm102 = vcmask 64512
    %s103 = scalar_lea.vmem [#allocation0], 128
    %104 = vst.msk [vmem:[%s103] ss:$8 sm:$0xf] %vm102, %v101
    %s105 = scalar_lea.vmem [#allocation1], 3
    %v106 = vld [vmem:[%s105] ss:$8 sm:$0xf]
    %s107 = scalar_lea.vmem [#allocation1], 3
    %v108 = vld [vmem:[%s107] ss:$8 sm:$0xf0]
    %vm109 = vcmask 1047556
    %v110 = vsel %vm109, %v108, %v106
    %111 = vrot.lane.b32.xlu0 %v110, 24
    %v112 = vpop.permute.xlu0 %111
    %vm113 = vcmask 261312
    %114 = vst.msk [vmem:[#allocation0] ss:$8 sm:$0xf] %vm113, %v112
    %115 = vst.msk [vmem:[#allocation0] ss:$8 sm:$0xf0] %vm113, %v112
    %s116 = scalar_lea.vmem [#allocation1], 67
    %v117 = vld [vmem:[%s116] ss:$8 sm:$0xf]
    %s118 = scalar_lea.vmem [#allocation1], 67
    %v119 = vld [vmem:[%s118] ss:$8 sm:$0xf0]
    %vm120 = vcmask 1047556
    %v121 = vsel %vm120, %v119, %v117
    %122 = vrot.lane.b32.xlu0 %v121, 24
    %v123 = vpop.permute.xlu0 %122
    %vm124 = vcmask 261312
    %s125 = scalar_lea.vmem [#allocation0], 64
    %126 = vst.msk [vmem:[%s125] ss:$8 sm:$0xf] %vm124, %v123
    %s127 = scalar_lea.vmem [#allocation0], 64
    %128 = vst.msk [vmem:[%s127] ss:$8 sm:$0xf0] %vm124, %v123
    %s129 = scalar_lea.vmem [#allocation1], 131
    %v130 = vld [vmem:[%s129] ss:$8 sm:$0xf]
    %131 = vrot.lane.b32.xlu0 %v130, 24
    %v132 = vpop.permute.xlu0 %131
    %vm133 = vcmask 261312
    %s134 = scalar_lea.vmem [#allocation0], 128
    %135 = vst.msk [vmem:[%s134] ss:$8 sm:$0xf] %vm133, %v132
    %s136 = scalar_lea.vmem [#allocation1], 2
    %v137 = vld [vmem:[%s136] ss:$8 sm:$0xf]
    %s138 = scalar_lea.vmem [#allocation1], 2
    %v139 = vld [vmem:[%s138] ss:$8 sm:$0xf0]
    %vm140 = vcmask 1047556
    %v141 = vsel %vm140, %v139, %v137
    %142 = vrot.lane.b32.xlu0 %v141, 16
    %v143 = vpop.permute.xlu0 %142
    %vm144 = vcmask 195712
    %145 = vst.msk [vmem:[#allocation0] ss:$8 sm:$0xf] %vm144, %v143
    %146 = vst.msk [vmem:[#allocation0] ss:$8 sm:$0xf0] %vm144, %v143
    %s147 = scalar_lea.vmem [#allocation1], 66
    %v148 = vld [vmem:[%s147] ss:$8 sm:$0xf]
    %s149 = scalar_lea.vmem [#allocation1], 66
    %v150 = vld [vmem:[%s149] ss:$8 sm:$0xf0]
    %vm151 = vcmask 1047556
    %v152 = vsel %vm151, %v150, %v148
    %153 = vrot.lane.b32.xlu0 %v152, 16
    %v154 = vpop.permute.xlu0 %153
    %vm155 = vcmask 195712
    %s156 = scalar_lea.vmem [#allocation0], 64
    %157 = vst.msk [vmem:[%s156] ss:$8 sm:$0xf] %vm155, %v154
    %s158 = scalar_lea.vmem [#allocation0], 64
    %159 = vst.msk [vmem:[%s158] ss:$8 sm:$0xf0] %vm155, %v154
    %s160 = scalar_lea.vmem [#allocation1], 130
    %v161 = vld [vmem:[%s160] ss:$8 sm:$0xf]
    %162 = vrot.lane.b32.xlu0 %v161, 16
    %v163 = vpop.permute.xlu0 %162
    %vm164 = vcmask 195712
    %s165 = scalar_lea.vmem [#allocation0], 128
    %166 = vst.msk [vmem:[%s165] ss:$8 sm:$0xf] %vm164, %v163
    %s167 = scalar_lea.vmem [#allocation1], 1
    %v168 = vld [vmem:[%s167] ss:$8 sm:$0xf]
    %s169 = scalar_lea.vmem [#allocation1], 1
    %v170 = vld [vmem:[%s169] ss:$8 sm:$0xf0]
    %vm171 = vcmask 1047556
    %v172 = vsel %vm171, %v170, %v168
    %173 = vrot.lane.b32.xlu0 %v172, 8
    %v174 = vpop.permute.xlu0 %173
    %vm175 = vcmask 130112
    %176 = vst.msk [vmem:[#allocation0] ss:$8 sm:$0xf] %vm175, %v174
    %177 = vst.msk [vmem:[#allocation0] ss:$8 sm:$0xf0] %vm175, %v174
    %s178 = scalar_lea.vmem [#allocation1], 65
    %v179 = vld [vmem:[%s178] ss:$8 sm:$0xf]
    %s180 = scalar_lea.vmem [#allocation1], 65
    %v181 = vld [vmem:[%s180] ss:$8 sm:$0xf0]
    %vm182 = vcmask 1047556
    %v183 = vsel %vm182, %v181, %v179
    %184 = vrot.lane.b32.xlu0 %v183, 8
    %v185 = vpop.permute.xlu0 %184
    %vm186 = vcmask 130112
    %s187 = scalar_lea.vmem [#allocation0], 64
    %188 = vst.msk [vmem:[%s187] ss:$8 sm:$0xf] %vm186, %v185
    %s189 = scalar_lea.vmem [#allocation0], 64
    %190 = vst.msk [vmem:[%s189] ss:$8 sm:$0xf0] %vm186, %v185
    %s191 = scalar_lea.vmem [#allocation1], 129
    %v192 = vld [vmem:[%s191] ss:$8 sm:$0xf]
    %193 = vrot.lane.b32.xlu0 %v192, 8
    %v194 = vpop.permute.xlu0 %193
    %vm195 = vcmask 130112
    %s196 = scalar_lea.vmem [#allocation0], 128
    %197 = vst.msk [vmem:[%s196] ss:$8 sm:$0xf] %vm195, %v194
    %s199 = ssub.s32 2, 1
    %v200 = vld [vmem:[#allocation0] sm:%s199]
    %s202 = ssub.s32 2, 1
    %203 = vst [vmem:[%s1] sm:%s202] %v200
    %s204 = scalar_lea.vmem [#allocation0], 8
    %v205 = vld [vmem:[%s204] sm:%s199]
    %s207 = ssub.s32 2, 1
    %s208 = scalar_lea.vmem %s1, 1
    %209 = vst [vmem:[%s208] sm:%s207] %v205
    %s210 = scalar_lea.vmem [#allocation0], 16
    %v211 = vld [vmem:[%s210] sm:%s199]
    %s213 = ssub.s32 2, 1
    %s214 = scalar_lea.vmem %s1, 2
    %215 = vst [vmem:[%s214] sm:%s213] %v211
    %s216 = scalar_lea.vmem [#allocation0], 24
    %v217 = vld [vmem:[%s216] sm:%s199]
    %s219 = ssub.s32 2, 1
    %s220 = scalar_lea.vmem %s1, 3
    %221 = vst [vmem:[%s220] sm:%s219] %v217
    %s222 = scalar_lea.vmem [#allocation0], 32
    %v223 = vld [vmem:[%s222] sm:%s199]
    %s225 = ssub.s32 2, 1
    %s226 = scalar_lea.vmem %s1, 4
    %227 = vst [vmem:[%s226] sm:%s225] %v223
    %s228 = scalar_lea.vmem [#allocation0], 40
    %v229 = vld [vmem:[%s228] sm:%s199]
    %s231 = ssub.s32 2, 1
    %s232 = scalar_lea.vmem %s1, 5
    %233 = vst [vmem:[%s232] sm:%s231] %v229
    %s234 = scalar_lea.vmem [#allocation0], 48
    %v235 = vld [vmem:[%s234] sm:%s199]
    %s237 = ssub.s32 2, 1
    %s238 = scalar_lea.vmem %s1, 6
    %239 = vst [vmem:[%s238] sm:%s237] %v235
    %s240 = scalar_lea.vmem [#allocation0], 56
    %v241 = vld [vmem:[%s240] sm:%s199]
    %s243 = ssub.s32 2, 1
    %s244 = scalar_lea.vmem %s1, 7
    %245 = vst [vmem:[%s244] sm:%s243] %v241
    %s246 = scalar_lea.vmem [#allocation0], 64
    %v247 = vld [vmem:[%s246] sm:%s199]
    %s249 = ssub.s32 2, 1
    %s250 = scalar_lea.vmem %s1, 8
    %251 = vst [vmem:[%s250] sm:%s249] %v247
    %s252 = scalar_lea.vmem [#allocation0], 72
    %v253 = vld [vmem:[%s252] sm:%s199]
    %s255 = ssub.s32 2, 1
    %s256 = scalar_lea.vmem %s1, 9
    %257 = vst [vmem:[%s256] sm:%s255] %v253
    %s258 = scalar_lea.vmem [#allocation0], 80
    %v259 = vld [vmem:[%s258] sm:%s199]
    %s261 = ssub.s32 2, 1
    %s262 = scalar_lea.vmem %s1, 10
    %263 = vst [vmem:[%s262] sm:%s261] %v259
    %s264 = scalar_lea.vmem [#allocation0], 88
    %v265 = vld [vmem:[%s264] sm:%s199]
    %s267 = ssub.s32 2, 1
    %s268 = scalar_lea.vmem %s1, 11
    %269 = vst [vmem:[%s268] sm:%s267] %v265
    %s270 = scalar_lea.vmem [#allocation0], 96
    %v271 = vld [vmem:[%s270] sm:%s199]
    %s273 = ssub.s32 2, 1
    %s274 = scalar_lea.vmem %s1, 12
    %275 = vst [vmem:[%s274] sm:%s273] %v271
    %s276 = scalar_lea.vmem [#allocation0], 104
    %v277 = vld [vmem:[%s276] sm:%s199]
    %s279 = ssub.s32 2, 1
    %s280 = scalar_lea.vmem %s1, 13
    %281 = vst [vmem:[%s280] sm:%s279] %v277
    %s282 = scalar_lea.vmem [#allocation0], 112
    %v283 = vld [vmem:[%s282] sm:%s199]
    %s285 = ssub.s32 2, 1
    %s286 = scalar_lea.vmem %s1, 14
    %287 = vst [vmem:[%s286] sm:%s285] %v283
    %s288 = scalar_lea.vmem [#allocation0], 120
    %v289 = vld [vmem:[%s288] sm:%s199]
    %s291 = ssub.s32 2, 1
    %s292 = scalar_lea.vmem %s1, 15
    %293 = vst [vmem:[%s292] sm:%s291] %v289
    %s294 = scalar_lea.vmem [#allocation0], 128
    %v295 = vld [vmem:[%s294] sm:%s199]
    %s297 = ssub.s32 2, 1
    %s298 = scalar_lea.vmem %s1, 16
    %299 = vst [vmem:[%s298] sm:%s297] %v295
    %s300 = scalar_lea.vmem [#allocation0], 136
    %v301 = vld [vmem:[%s300] sm:%s199]
    %s303 = ssub.s32 2, 1
    %s304 = scalar_lea.vmem %s1, 17
    %305 = vst [vmem:[%s304] sm:%s303] %v301
    %s306 = scalar_lea.vmem [#allocation0], 144
    %v307 = vld [vmem:[%s306] sm:%s199]
    %s309 = ssub.s32 2, 1
    %s310 = scalar_lea.vmem %s1, 18
    %311 = vst [vmem:[%s310] sm:%s309] %v307
    %s312 = scalar_lea.vmem [#allocation0], 152
    %v313 = vld [vmem:[%s312] sm:%s199]
    %s315 = ssub.s32 2, 1
    %s316 = scalar_lea.vmem %s1, 19
    %317 = vst [vmem:[%s316] sm:%s315] %v313

// kernel: msca_forward.2
$region0: #{msca_forward.2}
  #allocation0 [shape = 'u32[]', space=smem, size = 0x4, offset = 0x4, fixed_abs, tag = 'smem constant byte address 0x4 - core index']
  #allocation1 [shape = 'u32[72,128]{1,0:T(1,128)}', space=vmem, size = 0x9000, scoped, tag = 'internal scratch']
  %s0 = inlined_call_operand.vmem [shape: f32[2,64,20], index: 0, kind: input, shape index: {}]
  %s1 = inlined_call_operand.vmem [shape: f32[3,32,20], index: 1, kind: input, shape index: {}]
  %s2 = inlined_call_operand.vmem [shape: f32[2,64,20], index: 2, kind: output, shape index: {}]
  %s3 = sld [smem:[#allocation0]]
  $region113: #{msca_forward.2} parent=0
    _
  %s5 = ssub.s32 1, %s3
  %s6 = scalar_select 0, %s5, %s3
  $region1: #{msca_forward.2} parent=0
    #allocation2 [shape = 'u8[65536]{0}', space=vmem, size = 0x10000, scoped, tag = 'input window, operand 0']
    #allocation3 [shape = 'u8[65536]{0}', space=vmem, size = 0x10000, scoped, tag = 'output window, operand 0']
    loop: start=0, step=1, limit=4
    $region2: #{msca_forward.2} parent=1 // loop_pre_header
      _
    $region3: #{msca_forward.2} parent=1 // loop_header
      %s8 = sphi 0, %s12
      %p9 = scmp.ge.s32.totalorder %s8, 4
      %s15 = sphi 0, %s27
      %s16 = sphi 0, %s23
      %s17 = sphi 0, %s15
      %s18 = sphi 0, %s16
      %s19 = sphi 0, %s17
      %s20 = sphi 0, %s18
      %s32 = sphi 0, %s34
      %s35 = sphi 0, %s32
      %s36 = sphi 0, %s35
      %s52 = sphi 0, %s36
      %s58 = sphi 0, %s60
      %s61 = sphi 0, %s58
      %s62 = sphi 0, %s61
      %s78 = sphi 0, %s62
      %s86 = sphi 0, %s88
      %s89 = sphi 0, %s86
      %s90 = sphi 0, %s89
      %s106 = sphi 0, %s90
    $region4: #{msca_forward.2} parent=1 // loop_header_branch
      %11 = sbr.rel (%p9) target = $region8
    $region5: #{msca_forward.2} parent=1 // loop_body
      %s13 = ssub.s32 %s8, 1
      %s14 = ssub.s32 %s8, 2
      %s21 = sadd.s32 1, %s16
      %p22 = scmp.ge.s32.totalorder %s21, 1
      %s23 = scalar_select %p22, 0, %s21
      %s24 = sadd.s32 1, %s15
      %s25 = scalar_select %p22, %s24, %s15
      %p26 = scmp.ge.s32.totalorder %s25, 2
      %s27 = scalar_select %p26, 0, %s25
      %s28 = ssub.s32 %s15, %s27
      %s29 = ssub.s32 %s16, %s23
      %s30 = sor.u32 %s28, %s29
      %p31 = scmp.eq.s32.totalorder %s30, 0
      %s33 = sadd.s32 %s32, 1
      %s34 = scalar_select %p31, %s32, %s33
      %p37 = pneg %p31
      %p38 = scmp.eq.s32.totalorder %s8, 1
      %p39 = por %p37, %p38
      %p40 = scmp.ne.s32.totalorder %s32, %s35
      %p41 = scmp.eq.s32.totalorder %s8, 0
      %p42 = por %p40, %p41
      %p43 = scmp.ne.s32.totalorder %s32, %s35
      %p44 = scmp.eq.s32.totalorder %s13, 1
      %p45 = por %p43, %p44
      %p46 = scmp.ne.s32.totalorder %s35, %s36
      %p47 = scmp.eq.s32.totalorder %s13, 0
      %p48 = por %p46, %p47
      %p49 = scmp.ne.s32.totalorder %s35, %s36
      %p50 = scmp.eq.s32.totalorder %s14, 1
      %p51 = por %p49, %p50
      %p53 = scmp.ne.s32.totalorder %s36, %s52
      %p54 = scmp.eq.s32.totalorder %s14, 0
      %p55 = por %p53, %p54
      %s56 = ssub.s32 %s16, %s23
      %p57 = scmp.eq.s32.totalorder %s56, 0
      %s59 = sadd.s32 %s58, 1
      %s60 = scalar_select %p57, %s58, %s59
      %p63 = pneg %p57
      %p64 = scmp.eq.s32.totalorder %s8, 1
      %p65 = por %p63, %p64
      %p66 = scmp.ne.s32.totalorder %s58, %s61
      %p67 = scmp.eq.s32.totalorder %s8, 0
      %p68 = por %p66, %p67
      %p69 = scmp.ne.s32.totalorder %s58, %s61
      %p70 = scmp.eq.s32.totalorder %s13, 1
      %p71 = por %p69, %p70
      %p72 = scmp.ne.s32.totalorder %s61, %s62
      %p73 = scmp.eq.s32.totalorder %s13, 0
      %p74 = por %p72, %p73
      %p75 = scmp.ne.s32.totalorder %s61, %s62
      %p76 = scmp.eq.s32.totalorder %s14, 1
      %p77 = por %p75, %p76
      %p79 = scmp.ne.s32.totalorder %s62, %s78
      %p80 = scmp.eq.s32.totalorder %s14, 0
      %p81 = por %p79, %p80
      %s82 = ssub.s32 %s15, %s27
      %s83 = ssub.s32 %s16, %s23
      %s84 = sor.u32 %s82, %s83
      %p85 = scmp.eq.s32.totalorder %s84, 0
      %s87 = sadd.s32 %s86, 1
      %s88 = scalar_select %p85, %s86, %s87
      %p91 = pneg %p85
      %p92 = scmp.eq.s32.totalorder %s8, 1
      %p93 = por %p91, %p92
      %p94 = scmp.ne.s32.totalorder %s86, %s89
      %p95 = scmp.eq.s32.totalorder %s8, 0
      %p96 = por %p94, %p95
      %p97 = scmp.ne.s32.totalorder %s86, %s89
      %p98 = scmp.eq.s32.totalorder %s13, 1
      %p99 = por %p97, %p98
      %p100 = scmp.ne.s32.totalorder %s89, %s90
      %p101 = scmp.eq.s32.totalorder %s13, 0
      %p102 = por %p100, %p101
      %p103 = scmp.ne.s32.totalorder %s89, %s90
      %p104 = scmp.eq.s32.totalorder %s14, 1
      %p105 = por %p103, %p104
      %p107 = scmp.ne.s32.totalorder %s90, %s106
      %p108 = scmp.eq.s32.totalorder %s14, 0
      %p109 = por %p107, %p108
      %p110 = scmp.le.s32.totalorder 1, %s8
      %p111 = scmp.lt.s32.totalorder %s8, 3
      %p112 = pnand %p110, %p111
      %p113 = pneg %p112
      // Predicated region
      $region9: #{msca_forward.2} parent=5 // pred_check
        _
      $region10: #{msca_forward.2} parent=5 // pred_check_branch
        %115 = sbr.rel (%p112) target = $region12
      $region11: #{msca_forward.2} parent=5 // pred_region
        %s116 = ssub.s32 %s8, 1
        // Predicated region
        $region13: #{msca_forward.2} parent=11 // pred_check
          %p117 = pneg %p74
        $region14: #{msca_forward.2} parent=11 // pred_check_branch
          %119 = sbr.rel (%p117) target = $region16
        $region15: #{msca_forward.2} parent=11 // pred_region
          %p120 = scmp.lt.s32.totalorder %s18, 0
          %s121 = scalar_select %p120, %s18, 0
          %s122 = smul.addr %s121, 8
          %s123 = scalar_lea.vmem %s1, %s122
        $region16: #{msca_forward.2} parent=11 // pred_fallthru
          _
      $region12: #{msca_forward.2} parent=5 // pred_fallthru
        _
      %p124 = scmp.lt.s32.totalorder %s8, 2
      // Predicated region
      $region17: #{msca_forward.2} parent=5 // pred_check
        %p125 = pneg %p124
      $region18: #{msca_forward.2} parent=5 // pred_check_branch
        %127 = sbr.rel (%p125) target = $region20
      $region19: #{msca_forward.2} parent=5 // pred_region
        // Predicated region
        $region21: #{msca_forward.2} parent=19 // pred_check
          %p128 = pneg %p42
        $region22: #{msca_forward.2} parent=19 // pred_check_branch
          %130 = sbr.rel (%p128) target = $region24
        $region23: #{msca_forward.2} parent=19 // pred_region
          %s131 = sand.u32 %s32, 1
          %s132 = sand.u32 %s32, 1
          %s133 = smul.addr %s132, 64
          %s134 = scalar_lea.vmem [#allocation2], %s133
          %s135 = smul.u32 4, %s15
          %s136 = sadd.s32 %s16, %s135
          %s137 = smul.addr %s136, 8
          %s138 = scalar_lea.vmem %s0, %s137
          // Predicated region
          $region25: #{msca_forward.2} parent=23 // pred_check
            _
          $region26: #{msca_forward.2} parent=23 // pred_check_branch
            %140 = sbr.rel (0) target = $region28
          $region27: #{msca_forward.2} parent=23 // pred_region
            // Predicated region
            $region29: #{msca_forward.2} parent=27 // pred_check
              _
            $region30: #{msca_forward.2} parent=27 // pred_check_branch
              %142 = sbr.rel (0) target = $region32
            $region31: #{msca_forward.2} parent=27 // pred_region
              // Predicated region
              $region44: #{msca_forward.2} parent=31 // pred_check
                _
              $region45: #{msca_forward.2} parent=31 // pred_check_branch
                %172 = sbr.rel (0) target = $region47
              $region46: #{msca_forward.2} parent=31 // pred_region
                loop: start=0, step=1, limit=1
                $region48: #{msca_forward.2} parent=46 // loop_pre_header
                  _
                $region49: #{msca_forward.2} parent=46 // loop_header
                  %s174 = sphi 0, %s178
                  %p175 = scmp.ge.s32.totalorder %s174, 1
                  %s179 = sphi %s138, %s138
                  %s180 = sphi %s134, %s134
                $region50: #{msca_forward.2} parent=46 // loop_header_branch
                  %177 = sbr.rel (%p175) target = $region54
                $region51: #{msca_forward.2} parent=46 // loop_body
                  %v181 = vld [vmem:[%s179] sm:$0xff]
                  %182 = vst [vmem:[%s180] sm:$0xff] %v181
                  %v183 = vld [vmem:[%s179 + $0x8] sm:$0xff]
                  %184 = vst [vmem:[%s180 + $0x8] sm:$0xff] %v183
                  %v185 = vld [vmem:[%s179 + $0x10] sm:$0xff]
                  %186 = vst [vmem:[%s180 + $0x10] sm:$0xff] %v185
                  %v187 = vld [vmem:[%s179 + $0x18] sm:$0xff]
                  %188 = vst [vmem:[%s180 + $0x18] sm:$0xff] %v187
                  %v189 = vld [vmem:[%s179 + $0x40] sm:$0xff]
                  %190 = vst [vmem:[%s180 + $0x20] sm:$0xff] %v189
                  %v191 = vld [vmem:[%s179 + $0x48] sm:$0xff]
                  %192 = vst [vmem:[%s180 + $0x28] sm:$0xff] %v191
                  %v193 = vld [vmem:[%s179 + $0x50] sm:$0xff]
                  %194 = vst [vmem:[%s180 + $0x30] sm:$0xff] %v193
                  %v195 = vld [vmem:[%s179 + $0x58] sm:$0xff]
                  %196 = vst [vmem:[%s180 + $0x38] sm:$0xff] %v195
                $region52: #{msca_forward.2} parent=46 // loop_footer
                  %s178 = sadd.s32 1, %s174
                $region53: #{msca_forward.2} parent=46 // loop_footer_branch
                  %173 = sbr.rel target = $region49
                $region54: #{msca_forward.2} parent=46 // loop_exit
                  _
              $region47: #{msca_forward.2} parent=31 // pred_fallthru
                _
              // Predicated region
              $region55: #{msca_forward.2} parent=31 // pred_check
                _
              $region56: #{msca_forward.2} parent=31 // pred_check_branch
                %198 = sbr.rel target = $region58
              $region57: #{msca_forward.2} parent=31 // pred_region
                _
              $region58: #{msca_forward.2} parent=31 // pred_fallthru
                _
            $region32: #{msca_forward.2} parent=27 // pred_fallthru
              _
            // Predicated region
            $region33: #{msca_forward.2} parent=27 // pred_check
              _
            $region34: #{msca_forward.2} parent=27 // pred_check_branch
              %144 = sbr.rel target = $region36
            $region35: #{msca_forward.2} parent=27 // pred_region
              %s146 = ssub.s32 256, 1
              loop: start=0, step=1, limit=1
              $region37: #{msca_forward.2} parent=35 // loop_pre_header
                _
              $region38: #{msca_forward.2} parent=35 // loop_header
                %s148 = sphi 0, %s152
                %p149 = scmp.ge.s32.totalorder %s148, 1
                %s153 = sphi %s138, %s138
                %s154 = sphi %s134, %s134
              $region39: #{msca_forward.2} parent=35 // loop_header_branch
                %151 = sbr.rel (%p149) target = $region43
              $region40: #{msca_forward.2} parent=35 // loop_body
                %v155 = vld [vmem:[%s153] sm:%s146]
                %156 = vst [vmem:[%s154] sm:%s146] %v155
                %v157 = vld [vmem:[%s153 + $0x8] sm:%s146]
                %158 = vst [vmem:[%s154 + $0x8] sm:%s146] %v157
                %v159 = vld [vmem:[%s153 + $0x10] sm:%s146]
                %160 = vst [vmem:[%s154 + $0x10] sm:%s146] %v159
                %v161 = vld [vmem:[%s153 + $0x18] sm:%s146]
                %162 = vst [vmem:[%s154 + $0x18] sm:%s146] %v161
                %v163 = vld [vmem:[%s153 + $0x40] sm:%s146]
                %164 = vst [vmem:[%s154 + $0x20] sm:%s146] %v163
                %v165 = vld [vmem:[%s153 + $0x48] sm:%s146]
                %166 = vst [vmem:[%s154 + $0x28] sm:%s146] %v165
                %v167 = vld [vmem:[%s153 + $0x50] sm:%s146]
                %168 = vst [vmem:[%s154 + $0x30] sm:%s146] %v167
                %v169 = vld [vmem:[%s153 + $0x58] sm:%s146]
                %170 = vst [vmem:[%s154 + $0x38] sm:%s146] %v169
              $region41: #{msca_forward.2} parent=35 // loop_footer
                %s152 = sadd.s32 1, %s148
              $region42: #{msca_forward.2} parent=35 // loop_footer_branch
                %147 = sbr.rel target = $region38
              $region43: #{msca_forward.2} parent=35 // loop_exit
                _
            $region36: #{msca_forward.2} parent=27 // pred_fallthru
              _
          $region28: #{msca_forward.2} parent=23 // pred_fallthru
            _
          %199 = vnop
        $region24: #{msca_forward.2} parent=19 // pred_fallthru
          _
      $region20: #{msca_forward.2} parent=5 // pred_fallthru
        _
      %p200 = scmp.le.s32.totalorder 1, %s8
      %p201 = scmp.lt.s32.totalorder %s8, 3
      %p202 = pnand %p200, %p201
      %p203 = pneg %p202
      // Predicated region
      $region59: #{msca_forward.2} parent=5 // pred_check
        _
      $region60: #{msca_forward.2} parent=5 // pred_check_branch
        %205 = sbr.rel (%p202) target = $region62
      $region61: #{msca_forward.2} parent=5 // pred_region
        %s206 = ssub.s32 %s8, 1
        %s207 = sand.u32 %s35, 1
        %s208 = sand.u32 %s35, 1
        %s209 = smul.addr %s208, 64
        %s210 = scalar_lea.vmem [#allocation2], %s209
        // Predicated region
        $region63: #{msca_forward.2} parent=61 // pred_check
          %p211 = pneg %p48
        $region64: #{msca_forward.2} parent=61 // pred_check_branch
          %213 = sbr.rel (%p211) target = $region66
        $region65: #{msca_forward.2} parent=61 // pred_region
          _
        $region66: #{msca_forward.2} parent=61 // pred_fallthru
          _
        %s214 = sand.u32 %s35, 1
        %s215 = sand.u32 %s35, 1
        %s216 = smul.addr %s215, 64
        %s217 = scalar_lea.vmem [#allocation2], %s216
        %p218 = pneg %p48
        %p219 = pneg %p45
        %p220 = scmp.lt.s32.totalorder %s18, 0
        %s221 = scalar_select %p220, %s18, 0
        %s222 = smul.addr %s221, 8
        %s223 = scalar_lea.vmem %s1, %s222
        %p224 = pneg %p74
        %p225 = pneg %p71
        %p226 = pneg %p102
        %p227 = pneg %p99
        %s228 = sand.u32 %s89, 1
        %s229 = sand.u32 %s89, 1
        %s230 = smul.addr %s229, 64
        %s231 = scalar_lea.vmem [#allocation3], %s230
        %s232 = smul.u32 4, %s17
        %p233 = scmp.lt.s32.totalorder %s18, 0
        %s234 = scalar_select %p233, %s18, 0
        %s235 = smul.addr %s234, 8
        %s236 = scalar_lea.vmem %s1, %s235
        %s237 = smul.u32 4, %s17
        %v238 = vld [vmem:[%s210] sm:$0xff]
        %v239 = vld [vmem:[%s210 + $0x8] sm:$0xff]
        %v240 = vld [vmem:[%s210 + $0x10] sm:$0xff]
        %v241 = vld [vmem:[%s210 + $0x18] sm:$0xff]
        %s242 = scalar_lea.vmem %s210, 32 [#allocation2]
        %v243 = vld [vmem:[%s242] sm:$0xff]
        %v244 = vld [vmem:[%s242 + $0x8] sm:$0xff]
        %v245 = vld [vmem:[%s242 + $0x10] sm:$0xff]
        %v246 = vld [vmem:[%s242 + $0x18] sm:$0xff]
        %v247 = vld [vmem:[%s236] sm:$0xff]
        %v248 = vld [vmem:[%s236 + $0x8] sm:$0xff]
        %v249 = vld [vmem:[%s236 + $0x10] sm:$0xff]
        %v250 = vld [vmem:[%s236 + $0x18] sm:$0xff]
        %s251 = scalar_lea.vmem %s236, 32
        %v252 = vld [vmem:[%s251] sm:$0xff]
        %v253 = vld [vmem:[%s251 + $0x8] sm:$0xff]
        %v254 = vld [vmem:[%s251 + $0x10] sm:$0xff]
        %v255 = vld [vmem:[%s251 + $0x18] sm:$0xff]
        %v256 = vmul.f32 %v238, %v247
        %v257 = vmul.f32 %v239, %v248
        %v258 = vmul.f32 %v240, %v249
        %v259 = vmul.f32 %v241, %v250
        %v260 = vmul.f32 %v243, %v252
        %v261 = vmul.f32 %v244, %v253
        %v262 = vmul.f32 %v245, %v254
        %v263 = vmul.f32 %v246, %v255
        %v264 = vsub.f32 %v256, %v260
        %v265 = vsub.f32 %v257, %v261
        %v266 = vsub.f32 %v258, %v262
        %v267 = vsub.f32 %v259, %v263
        %s268 = scalar_lea.vmem %s236, 64
        %v269 = vld [vmem:[%s268] sm:$0xff]
        %v270 = vld [vmem:[%s268 + $0x8] sm:$0xff]
        %v271 = vld [vmem:[%s268 + $0x10] sm:$0xff]
        %v272 = vld [vmem:[%s268 + $0x18] sm:$0xff]
        %v273 = vadd.f32 %v264, %v269
        %v274 = vadd.f32 %v265, %v270
        %v275 = vadd.f32 %v266, %v271
        %v276 = vadd.f32 %v267, %v272
        %vm277 = vcmask 162816
        %278 = vst.msk [vmem:[%s231] sm:$0xff] %vm277, %v273
        %279 = vst.msk [vmem:[%s231 + $0x8] sm:$0xff] %vm277, %v274
        %280 = vst.msk [vmem:[%s231 + $0x10] sm:$0xff] %vm277, %v275
        %281 = vst.msk [vmem:[%s231 + $0x18] sm:$0xff] %vm277, %v276
        %v282 = vmul.f32 %v238, %v252
        %v283 = vmul.f32 %v239, %v253
        %v284 = vmul.f32 %v240, %v254
        %v285 = vmul.f32 %v241, %v255
        %v286 = vmul.f32 %v243, %v247
        %v287 = vmul.f32 %v244, %v248
        %v288 = vmul.f32 %v245, %v249
        %v289 = vmul.f32 %v246, %v250
        %v290 = vadd.f32 %v282, %v286
        %v291 = vadd.f32 %v283, %v287
        %v292 = vadd.f32 %v284, %v288
        %v293 = vadd.f32 %v285, %v289
        %s294 = scalar_lea.vmem %s231, 32 [#allocation3]
        %295 = vst.msk [vmem:[%s294] sm:$0xff] %vm277, %v290
        %296 = vst.msk [vmem:[%s294 + $0x8] sm:$0xff] %vm277, %v291
        %297 = vst.msk [vmem:[%s294 + $0x10] sm:$0xff] %vm277, %v292
        %298 = vst.msk [vmem:[%s294 + $0x18] sm:$0xff] %vm277, %v293
        %s299 = sand.u32 %s89, 1
        %s300 = sand.u32 %s89, 1
        %s301 = smul.addr %s300, 64
        %s302 = scalar_lea.vmem [#allocation3], %s301
        // Predicated region
        $region67: #{msca_forward.2} parent=61 // pred_check
          %p303 = pneg %p99
        $region68: #{msca_forward.2} parent=61 // pred_check_branch
          %305 = sbr.rel (%p303) target = $region70
        $region69: #{msca_forward.2} parent=61 // pred_region
          %s306 = smul.u32 4, %s17
          %s307 = sadd.s32 %s18, %s306
          %s308 = smul.addr %s307, 8
          %s309 = scalar_lea.vmem %s2, %s308
          // Predicated region
          $region71: #{msca_forward.2} parent=69 // pred_check
            _
          $region72: #{msca_forward.2} parent=69 // pred_check_branch
            %311 = sbr.rel (0) target = $region74
          $region73: #{msca_forward.2} parent=69 // pred_region
            // Predicated region
            $region75: #{msca_forward.2} parent=73 // pred_check
              _
            $region76: #{msca_forward.2} parent=73 // pred_check_branch
              %313 = sbr.rel (0) target = $region78
            $region77: #{msca_forward.2} parent=73 // pred_region
              // Predicated region
              $region90: #{msca_forward.2} parent=77 // pred_check
                _
              $region91: #{msca_forward.2} parent=77 // pred_check_branch
                %343 = sbr.rel (0) target = $region93
              $region92: #{msca_forward.2} parent=77 // pred_region
                loop: start=0, step=1, limit=1
                $region94: #{msca_forward.2} parent=92 // loop_pre_header
                  _
                $region95: #{msca_forward.2} parent=92 // loop_header
                  %s345 = sphi 0, %s349
                  %p346 = scmp.ge.s32.totalorder %s345, 1
                  %s350 = sphi %s302, %s302
                  %s351 = sphi %s309, %s309
                $region96: #{msca_forward.2} parent=92 // loop_header_branch
                  %348 = sbr.rel (%p346) target = $region100
                $region97: #{msca_forward.2} parent=92 // loop_body
                  %v352 = vld [vmem:[%s350] sm:$0xff]
                  %353 = vst [vmem:[%s351] sm:$0xff] %v352
                  %v354 = vld [vmem:[%s350 + $0x8] sm:$0xff]
                  %355 = vst [vmem:[%s351 + $0x8] sm:$0xff] %v354
                  %v356 = vld [vmem:[%s350 + $0x10] sm:$0xff]
                  %357 = vst [vmem:[%s351 + $0x10] sm:$0xff] %v356
                  %v358 = vld [vmem:[%s350 + $0x18] sm:$0xff]
                  %359 = vst [vmem:[%s351 + $0x18] sm:$0xff] %v358
                  %v360 = vld [vmem:[%s350 + $0x20] sm:$0xff]
                  %361 = vst [vmem:[%s351 + $0x40] sm:$0xff] %v360
                  %v362 = vld [vmem:[%s350 + $0x28] sm:$0xff]
                  %363 = vst [vmem:[%s351 + $0x48] sm:$0xff] %v362
                  %v364 = vld [vmem:[%s350 + $0x30] sm:$0xff]
                  %365 = vst [vmem:[%s351 + $0x50] sm:$0xff] %v364
                  %v366 = vld [vmem:[%s350 + $0x38] sm:$0xff]
                  %367 = vst [vmem:[%s351 + $0x58] sm:$0xff] %v366
                $region98: #{msca_forward.2} parent=92 // loop_footer
                  %s349 = sadd.s32 1, %s345
                $region99: #{msca_forward.2} parent=92 // loop_footer_branch
                  %344 = sbr.rel target = $region95
                $region100: #{msca_forward.2} parent=92 // loop_exit
                  _
              $region93: #{msca_forward.2} parent=77 // pred_fallthru
                _
              // Predicated region
              $region101: #{msca_forward.2} parent=77 // pred_check
                _
              $region102: #{msca_forward.2} parent=77 // pred_check_branch
                %369 = sbr.rel target = $region104
              $region103: #{msca_forward.2} parent=77 // pred_region
                _
              $region104: #{msca_forward.2} parent=77 // pred_fallthru
                _
            $region78: #{msca_forward.2} parent=73 // pred_fallthru
              _
            // Predicated region
            $region79: #{msca_forward.2} parent=73 // pred_check
              _
            $region80: #{msca_forward.2} parent=73 // pred_check_branch
              %315 = sbr.rel target = $region82
            $region81: #{msca_forward.2} parent=73 // pred_region
              %s317 = ssub.s32 256, 1
              loop: start=0, step=1, limit=1
              $region83: #{msca_forward.2} parent=81 // loop_pre_header
                _
              $region84: #{msca_forward.2} parent=81 // loop_header
                %s319 = sphi 0, %s323
                %p320 = scmp.ge.s32.totalorder %s319, 1
                %s324 = sphi %s302, %s302
                %s325 = sphi %s309, %s309
              $region85: #{msca_forward.2} parent=81 // loop_header_branch
                %322 = sbr.rel (%p320) target = $region89
              $region86: #{msca_forward.2} parent=81 // loop_body
                %v326 = vld [vmem:[%s324] sm:%s317]
                %327 = vst [vmem:[%s325] sm:%s317] %v326
                %v328 = vld [vmem:[%s324 + $0x8] sm:%s317]
                %329 = vst [vmem:[%s325 + $0x8] sm:%s317] %v328
                %v330 = vld [vmem:[%s324 + $0x10] sm:%s317]
                %331 = vst [vmem:[%s325 + $0x10] sm:%s317] %v330
                %v332 = vld [vmem:[%s324 + $0x18] sm:%s317]
                %333 = vst [vmem:[%s325 + $0x18] sm:%s317] %v332
                %v334 = vld [vmem:[%s324 + $0x20] sm:%s317]
                %335 = vst [vmem:[%s325 + $0x40] sm:%s317] %v334
                %v336 = vld [vmem:[%s324 + $0x28] sm:%s317]
                %337 = vst [vmem:[%s325 + $0x48] sm:%s317] %v336
                %v338 = vld [vmem:[%s324 + $0x30] sm:%s317]
                %339 = vst [vmem:[%s325 + $0x50] sm:%s317] %v338
                %v340 = vld [vmem:[%s324 + $0x38] sm:%s317]
                %341 = vst [vmem:[%s325 + $0x58] sm:%s317] %v340
              $region87: #{msca_forward.2} parent=81 // loop_footer
                %s323 = sadd.s32 1, %s319
              $region88: #{msca_forward.2} parent=81 // loop_footer_branch
                %318 = sbr.rel target = $region84
              $region89: #{msca_forward.2} parent=81 // loop_exit
                _
            $region82: #{msca_forward.2} parent=73 // pred_fallthru
              _
          $region74: #{msca_forward.2} parent=69 // pred_fallthru
            _
          %370 = vnop
        $region70: #{msca_forward.2} parent=61 // pred_fallthru
          _
      $region62: #{msca_forward.2} parent=5 // pred_fallthru
        _
      %p371 = scmp.le.s32.totalorder 2, %s8
      // Predicated region
      $region105: #{msca_forward.2} parent=5 // pred_check
        %p372 = pneg %p371
      $region106: #{msca_forward.2} parent=5 // pred_check_branch
        %374 = sbr.rel (%p372) target = $region108
      $region107: #{msca_forward.2} parent=5 // pred_region
        %s375 = ssub.s32 %s8, 2
        // Predicated region
        $region109: #{msca_forward.2} parent=107 // pred_check
          %p376 = pneg %p105
        $region110: #{msca_forward.2} parent=107 // pred_check_branch
          %378 = sbr.rel (%p376) target = $region112
        $region111: #{msca_forward.2} parent=107 // pred_region
          %s379 = sand.u32 %s90, 1
          %s380 = sand.u32 %s90, 1
          %s381 = smul.addr %s380, 64
          %s382 = scalar_lea.vmem [#allocation3], %s381
        $region112: #{msca_forward.2} parent=107 // pred_fallthru
          _
      $region108: #{msca_forward.2} parent=5 // pred_fallthru
        _
    $region6: #{msca_forward.2} parent=1 // loop_footer
      %s12 = sadd.s32 1, %s8
    $region7: #{msca_forward.2} parent=1 // loop_footer_branch
      %7 = sbr.rel target = $region3
    $region8: #{msca_forward.2} parent=1 // loop_exit
      _

// kernel: reverse.0
$region0: #{reverse.0}
  %s0 = inlined_call_operand.vmem [shape: f32[2,4,4,8,3], index: 0, kind: input, shape index: {}]
  %s1 = inlined_call_operand.vmem [shape: f32[2,4,4,8,3], index: 1, kind: output, shape index: {}]
  $region1: #{reverse.0} parent=0
    #allocation0 [shape = 'u8[262144]{0}', space=vmem, size = 0x40000, scoped, tag = 'operand span for operand 0']
    #allocation1 [shape = 'u8[131072]{0}', space=vmem, size = 0x20000, scoped, tag = 'packed  for operand 0']
    #allocation2 [shape = 'u8[131072]{0}', space=vmem, size = 0x20000, scoped, tag = 'operand span for operand 1']
    #allocation3 [shape = 'u8[65536]{0}', space=vmem, size = 0x10000, scoped, tag = 'packed  for operand 1']
    %s2 = scalar_lea.vmem [#allocation1], 4
    // Predicated region
    $region2: #{reverse.0} parent=1 // pred_check
      _
    $region3: #{reverse.0} parent=1 // pred_check_branch
      %4 = sbr.rel (0) target = $region5
    $region4: #{reverse.0} parent=1 // pred_region
      // Predicated region
      $region6: #{reverse.0} parent=4 // pred_check
        _
      $region7: #{reverse.0} parent=4 // pred_check_branch
        %6 = sbr.rel target = $region9
      $region8: #{reverse.0} parent=4 // pred_region
        // Predicated region
        $region21: #{reverse.0} parent=8 // pred_check
          _
        $region22: #{reverse.0} parent=8 // pred_check_branch
          %84 = sbr.rel (0) target = $region24
        $region23: #{reverse.0} parent=8 // pred_region
          loop: start=0, step=1, limit=1
          $region25: #{reverse.0} parent=23 // loop_pre_header
            _
          $region26: #{reverse.0} parent=23 // loop_header
            %s86 = sphi 0, %s90
            %p87 = scmp.ge.s32.totalorder %s86, 1
            %s91 = sphi %s0, %s0
            %s92 = sphi %s2, %s2
          $region27: #{reverse.0} parent=23 // loop_header_branch
            %89 = sbr.rel (%p87) target = $region31
          $region28: #{reverse.0} parent=23 // loop_body
            _
          $region29: #{reverse.0} parent=23 // loop_footer
            %s90 = sadd.s32 1, %s86
          $region30: #{reverse.0} parent=23 // loop_footer_branch
            %85 = sbr.rel target = $region26
          $region31: #{reverse.0} parent=23 // loop_exit
            _
          %s94 = ssub.s32 16, 1
          loop: start=0, step=1, limit=1
          $region32: #{reverse.0} parent=23 // loop_pre_header
            _
          $region33: #{reverse.0} parent=23 // loop_header
            %s96 = sphi 0, %s100
            %p97 = scmp.ge.s32.totalorder %s96, 1
            %s101 = sphi %s0, %s0
            %s102 = sphi %s2, %s2
          $region34: #{reverse.0} parent=23 // loop_header_branch
            %99 = sbr.rel (%p97) target = $region38
          $region35: #{reverse.0} parent=23 // loop_body
            %v103 = vld [vmem:[%s101] sm:%s94]
            %104 = vst [vmem:[%s102] sm:%s94] %v103
            %v105 = vld [vmem:[%s101 + $0x4] sm:%s94]
            %106 = vst [vmem:[%s102 + $0x8] sm:%s94] %v105
            %v107 = vld [vmem:[%s101 + $0x8] sm:%s94]
            %108 = vst [vmem:[%s102 + $0x10] sm:%s94] %v107
            %v109 = vld [vmem:[%s101 + $0xc] sm:%s94]
            %110 = vst [vmem:[%s102 + $0x18] sm:%s94] %v109
            %v111 = vld [vmem:[%s101 + $0x10] sm:%s94]
            %112 = vst [vmem:[%s102 + $0x20] sm:%s94] %v111
            %v113 = vld [vmem:[%s101 + $0x14] sm:%s94]
            %114 = vst [vmem:[%s102 + $0x28] sm:%s94] %v113
            %v115 = vld [vmem:[%s101 + $0x18] sm:%s94]
            %116 = vst [vmem:[%s102 + $0x30] sm:%s94] %v115
            %v117 = vld [vmem:[%s101 + $0x1c] sm:%s94]
            %118 = vst [vmem:[%s102 + $0x38] sm:%s94] %v117
            %v119 = vld [vmem:[%s101 + $0x20] sm:%s94]
            %120 = vst [vmem:[%s102 + $0x40] sm:%s94] %v119
            %v121 = vld [vmem:[%s101 + $0x24] sm:%s94]
            %122 = vst [vmem:[%s102 + $0x48] sm:%s94] %v121
            %v123 = vld [vmem:[%s101 + $0x28] sm:%s94]
            %124 = vst [vmem:[%s102 + $0x50] sm:%s94] %v123
            %v125 = vld [vmem:[%s101 + $0x2c] sm:%s94]
            %126 = vst [vmem:[%s102 + $0x58] sm:%s94] %v125
            %v127 = vld [vmem:[%s101 + $0x30] sm:%s94]
            %128 = vst [vmem:[%s102 + $0x60] sm:%s94] %v127
            %v129 = vld [vmem:[%s101 + $0x34] sm:%s94]
            %130 = vst [vmem:[%s102 + $0x68] sm:%s94] %v129
            %v131 = vld [vmem:[%s101 + $0x38] sm:%s94]
            %132 = vst [vmem:[%s102 + $0x70] sm:%s94] %v131
            %v133 = vld [vmem:[%s101 + $0x3c] sm:%s94]
            %134 = vst [vmem:[%s102 + $0x78] sm:%s94] %v133
            %v135 = vld [vmem:[%s101 + $0x40] sm:%s94]
            %136 = vst [vmem:[%s102 + $0x80] sm:%s94] %v135
            %v137 = vld [vmem:[%s101 + $0x44] sm:%s94]
            %138 = vst [vmem:[%s102 + $0x88] sm:%s94] %v137
            %v139 = vld [vmem:[%s101 + $0x48] sm:%s94]
            %140 = vst [vmem:[%s102 + $0x90] sm:%s94] %v139
            %v141 = vld [vmem:[%s101 + $0x4c] sm:%s94]
            %142 = vst [vmem:[%s102 + $0x98] sm:%s94] %v141
            %v143 = vld [vmem:[%s101 + $0x50] sm:%s94]
            %144 = vst [vmem:[%s102 + $0xa0] sm:%s94] %v143
            %v145 = vld [vmem:[%s101 + $0x54] sm:%s94]
            %146 = vst [vmem:[%s102 + $0xa8] sm:%s94] %v145
            %v147 = vld [vmem:[%s101 + $0x58] sm:%s94]
            %148 = vst [vmem:[%s102 + $0xb0] sm:%s94] %v147
            %v149 = vld [vmem:[%s101 + $0x5c] sm:%s94]
            %150 = vst [vmem:[%s102 + $0xb8] sm:%s94] %v149
            %v151 = vld [vmem:[%s101 + $0x60] sm:%s94]
            %152 = vst [vmem:[%s102 + $0xc0] sm:%s94] %v151
            %v153 = vld [vmem:[%s101 + $0x64] sm:%s94]
            %154 = vst [vmem:[%s102 + $0xc8] sm:%s94] %v153
            %v155 = vld [vmem:[%s101 + $0x68] sm:%s94]
            %156 = vst [vmem:[%s102 + $0xd0] sm:%s94] %v155
            %v157 = vld [vmem:[%s101 + $0x6c] sm:%s94]
            %158 = vst [vmem:[%s102 + $0xd8] sm:%s94] %v157
            %v159 = vld [vmem:[%s101 + $0x70] sm:%s94]
            %160 = vst [vmem:[%s102 + $0xe0] sm:%s94] %v159
            %v161 = vld [vmem:[%s101 + $0x74] sm:%s94]
            %162 = vst [vmem:[%s102 + $0xe8] sm:%s94] %v161
            %v163 = vld [vmem:[%s101 + $0x78] sm:%s94]
            %164 = vst [vmem:[%s102 + $0xf0] sm:%s94] %v163
            %v165 = vld [vmem:[%s101 + $0x7c] sm:%s94]
            %166 = vst [vmem:[%s102 + $0xf8] sm:%s94] %v165
          $region36: #{reverse.0} parent=23 // loop_footer
            %s100 = sadd.s32 1, %s96
          $region37: #{reverse.0} parent=23 // loop_footer_branch
            %95 = sbr.rel target = $region33
          $region38: #{reverse.0} parent=23 // loop_exit
            _
        $region24: #{reverse.0} parent=8 // pred_fallthru
          _
      $region9: #{reverse.0} parent=4 // pred_fallthru
        _
      // Predicated region
      $region10: #{reverse.0} parent=4 // pred_check
        _
      $region11: #{reverse.0} parent=4 // pred_check_branch
        %8 = sbr.rel (0) target = $region13
      $region12: #{reverse.0} parent=4 // pred_region
        %s10 = ssub.s32 16, 1
        loop: start=0, step=1, limit=1
        $region14: #{reverse.0} parent=12 // loop_pre_header
          _
        $region15: #{reverse.0} parent=12 // loop_header
          %s12 = sphi 0, %s16
          %p13 = scmp.ge.s32.totalorder %s12, 1
          %s17 = sphi %s0, %s0
          %s18 = sphi %s2, %s2
        $region16: #{reverse.0} parent=12 // loop_header_branch
          %15 = sbr.rel (%p13) target = $region20
        $region17: #{reverse.0} parent=12 // loop_body
          %v19 = vld [vmem:[%s17] sm:%s10]
          %20 = vst [vmem:[%s18] sm:%s10] %v19
          %v21 = vld [vmem:[%s17 + $0x4] sm:%s10]
          %22 = vst [vmem:[%s18 + $0x8] sm:%s10] %v21
          %v23 = vld [vmem:[%s17 + $0x8] sm:%s10]
          %24 = vst [vmem:[%s18 + $0x10] sm:%s10] %v23
          %v25 = vld [vmem:[%s17 + $0xc] sm:%s10]
          %26 = vst [vmem:[%s18 + $0x18] sm:%s10] %v25
          %v27 = vld [vmem:[%s17 + $0x10] sm:%s10]
          %28 = vst [vmem:[%s18 + $0x20] sm:%s10] %v27
          %v29 = vld [vmem:[%s17 + $0x14] sm:%s10]
          %30 = vst [vmem:[%s18 + $0x28] sm:%s10] %v29
          %v31 = vld [vmem:[%s17 + $0x18] sm:%s10]
          %32 = vst [vmem:[%s18 + $0x30] sm:%s10] %v31
          %v33 = vld [vmem:[%s17 + $0x1c] sm:%s10]
          %34 = vst [vmem:[%s18 + $0x38] sm:%s10] %v33
          %v35 = vld [vmem:[%s17 + $0x20] sm:%s10]
          %36 = vst [vmem:[%s18 + $0x40] sm:%s10] %v35
          %v37 = vld [vmem:[%s17 + $0x24] sm:%s10]
          %38 = vst [vmem:[%s18 + $0x48] sm:%s10] %v37
          %v39 = vld [vmem:[%s17 + $0x28] sm:%s10]
          %40 = vst [vmem:[%s18 + $0x50] sm:%s10] %v39
          %v41 = vld [vmem:[%s17 + $0x2c] sm:%s10]
          %42 = vst [vmem:[%s18 + $0x58] sm:%s10] %v41
          %v43 = vld [vmem:[%s17 + $0x30] sm:%s10]
          %44 = vst [vmem:[%s18 + $0x60] sm:%s10] %v43
          %v45 = vld [vmem:[%s17 + $0x34] sm:%s10]
          %46 = vst [vmem:[%s18 + $0x68] sm:%s10] %v45
          %v47 = vld [vmem:[%s17 + $0x38] sm:%s10]
          %48 = vst [vmem:[%s18 + $0x70] sm:%s10] %v47
          %v49 = vld [vmem:[%s17 + $0x3c] sm:%s10]
          %50 = vst [vmem:[%s18 + $0x78] sm:%s10] %v49
          %v51 = vld [vmem:[%s17 + $0x40] sm:%s10]
          %52 = vst [vmem:[%s18 + $0x80] sm:%s10] %v51
          %v53 = vld [vmem:[%s17 + $0x44] sm:%s10]
          %54 = vst [vmem:[%s18 + $0x88] sm:%s10] %v53
          %v55 = vld [vmem:[%s17 + $0x48] sm:%s10]
          %56 = vst [vmem:[%s18 + $0x90] sm:%s10] %v55
          %v57 = vld [vmem:[%s17 + $0x4c] sm:%s10]
          %58 = vst [vmem:[%s18 + $0x98] sm:%s10] %v57
          %v59 = vld [vmem:[%s17 + $0x50] sm:%s10]
          %60 = vst [vmem:[%s18 + $0xa0] sm:%s10] %v59
          %v61 = vld [vmem:[%s17 + $0x54] sm:%s10]
          %62 = vst [vmem:[%s18 + $0xa8] sm:%s10] %v61
          %v63 = vld [vmem:[%s17 + $0x58] sm:%s10]
          %64 = vst [vmem:[%s18 + $0xb0] sm:%s10] %v63
          %v65 = vld [vmem:[%s17 + $0x5c] sm:%s10]
          %66 = vst [vmem:[%s18 + $0xb8] sm:%s10] %v65
          %v67 = vld [vmem:[%s17 + $0x60] sm:%s10]
          %68 = vst [vmem:[%s18 + $0xc0] sm:%s10] %v67
          %v69 = vld [vmem:[%s17 + $0x64] sm:%s10]
          %70 = vst [vmem:[%s18 + $0xc8] sm:%s10] %v69
          %v71 = vld [vmem:[%s17 + $0x68] sm:%s10]
          %72 = vst [vmem:[%s18 + $0xd0] sm:%s10] %v71
          %v73 = vld [vmem:[%s17 + $0x6c] sm:%s10]
          %74 = vst [vmem:[%s18 + $0xd8] sm:%s10] %v73
          %v75 = vld [vmem:[%s17 + $0x70] sm:%s10]
          %76 = vst [vmem:[%s18 + $0xe0] sm:%s10] %v75
          %v77 = vld [vmem:[%s17 + $0x74] sm:%s10]
          %78 = vst [vmem:[%s18 + $0xe8] sm:%s10] %v77
          %v79 = vld [vmem:[%s17 + $0x78] sm:%s10]
          %80 = vst [vmem:[%s18 + $0xf0] sm:%s10] %v79
          %v81 = vld [vmem:[%s17 + $0x7c] sm:%s10]
          %82 = vst [vmem:[%s18 + $0xf8] sm:%s10] %v81
        $region18: #{reverse.0} parent=12 // loop_footer
          %s16 = sadd.s32 1, %s12
        $region19: #{reverse.0} parent=12 // loop_footer_branch
          %11 = sbr.rel target = $region15
        $region20: #{reverse.0} parent=12 // loop_exit
          _
      $region13: #{reverse.0} parent=4 // pred_fallthru
        _
    $region5: #{reverse.0} parent=1 // pred_fallthru
      _
    %167 = vnop
    %s169 = ssub.s32 16, 1
    %s170 = scalar_lea.vmem [#allocation1], 252
    %v171 = vld [vmem:[%s170] sm:%s169]
    %s172 = scalar_lea.vmem [#allocation0], 504
    %173 = vst [vmem:[%s172] sm:%s169] %v171
    %s174 = scalar_lea.vmem [#allocation1], 248
    %v175 = vld [vmem:[%s174] sm:%s169]
    %s176 = scalar_lea.vmem [#allocation0], 496
    %177 = vst [vmem:[%s176] sm:%s169] %v175
    %s178 = scalar_lea.vmem [#allocation1], 244
    %v179 = vld [vmem:[%s178] sm:%s169]
    %s180 = scalar_lea.vmem [#allocation0], 488
    %181 = vst [vmem:[%s180] sm:%s169] %v179
    %s182 = scalar_lea.vmem [#allocation1], 240
    %v183 = vld [vmem:[%s182] sm:%s169]
    %s184 = scalar_lea.vmem [#allocation0], 480
    %185 = vst [vmem:[%s184] sm:%s169] %v183
    %s186 = scalar_lea.vmem [#allocation1], 236
    %v187 = vld [vmem:[%s186] sm:%s169]
    %s188 = scalar_lea.vmem [#allocation0], 472
    %189 = vst [vmem:[%s188] sm:%s169] %v187
    %s190 = scalar_lea.vmem [#allocation1], 232
    %v191 = vld [vmem:[%s190] sm:%s169]
    %s192 = scalar_lea.vmem [#allocation0], 464
    %193 = vst [vmem:[%s192] sm:%s169] %v191
    %s194 = scalar_lea.vmem [#allocation1], 228
    %v195 = vld [vmem:[%s194] sm:%s169]
    %s196 = scalar_lea.vmem [#allocation0], 456
    %197 = vst [vmem:[%s196] sm:%s169] %v195
    %s198 = scalar_lea.vmem [#allocation1], 224
    %v199 = vld [vmem:[%s198] sm:%s169]
    %s200 = scalar_lea.vmem [#allocation0], 448
    %201 = vst [vmem:[%s200] sm:%s169] %v199
    %s202 = scalar_lea.vmem [#allocation1], 220
    %v203 = vld [vmem:[%s202] sm:%s169]
    %s204 = scalar_lea.vmem [#allocation0], 440
    %205 = vst [vmem:[%s204] sm:%s169] %v203
    %s206 = scalar_lea.vmem [#allocation1], 216
    %v207 = vld [vmem:[%s206] sm:%s169]
    %s208 = scalar_lea.vmem [#allocation0], 432
    %209 = vst [vmem:[%s208] sm:%s169] %v207
    %s210 = scalar_lea.vmem [#allocation1], 212
    %v211 = vld [vmem:[%s210] sm:%s169]
    %s212 = scalar_lea.vmem [#allocation0], 424
    %213 = vst [vmem:[%s212] sm:%s169] %v211
    %s214 = scalar_lea.vmem [#allocation1], 208
    %v215 = vld [vmem:[%s214] sm:%s169]
    %s216 = scalar_lea.vmem [#allocation0], 416
    %217 = vst [vmem:[%s216] sm:%s169] %v215
    %s218 = scalar_lea.vmem [#allocation1], 204
    %v219 = vld [vmem:[%s218] sm:%s169]
    %s220 = scalar_lea.vmem [#allocation0], 408
    %221 = vst [vmem:[%s220] sm:%s169] %v219
    %s222 = scalar_lea.vmem [#allocation1], 200
    %v223 = vld [vmem:[%s222] sm:%s169]
    %s224 = scalar_lea.vmem [#allocation0], 400
    %225 = vst [vmem:[%s224] sm:%s169] %v223
    %s226 = scalar_lea.vmem [#allocation1], 196
    %v227 = vld [vmem:[%s226] sm:%s169]
    %s228 = scalar_lea.vmem [#allocation0], 392
    %229 = vst [vmem:[%s228] sm:%s169] %v227
    %s230 = scalar_lea.vmem [#allocation1], 192
    %v231 = vld [vmem:[%s230] sm:%s169]
    %s232 = scalar_lea.vmem [#allocation0], 384
    %233 = vst [vmem:[%s232] sm:%s169] %v231
    %s234 = scalar_lea.vmem [#allocation1], 188
    %v235 = vld [vmem:[%s234] sm:%s169]
    %s236 = scalar_lea.vmem [#allocation0], 376
    %237 = vst [vmem:[%s236] sm:%s169] %v235
    %s238 = scalar_lea.vmem [#allocation1], 184
    %v239 = vld [vmem:[%s238] sm:%s169]
    %s240 = scalar_lea.vmem [#allocation0], 368
    %241 = vst [vmem:[%s240] sm:%s169] %v239
    %s242 = scalar_lea.vmem [#allocation1], 180
    %v243 = vld [vmem:[%s242] sm:%s169]
    %s244 = scalar_lea.vmem [#allocation0], 360
    %245 = vst [vmem:[%s244] sm:%s169] %v243
    %s246 = scalar_lea.vmem [#allocation1], 176
    %v247 = vld [vmem:[%s246] sm:%s169]
    %s248 = scalar_lea.vmem [#allocation0], 352
    %249 = vst [vmem:[%s248] sm:%s169] %v247
    %s250 = scalar_lea.vmem [#allocation1], 172
    %v251 = vld [vmem:[%s250] sm:%s169]
    %s252 = scalar_lea.vmem [#allocation0], 344
    %253 = vst [vmem:[%s252] sm:%s169] %v251
    %s254 = scalar_lea.vmem [#allocation1], 168
    %v255 = vld [vmem:[%s254] sm:%s169]
    %s256 = scalar_lea.vmem [#allocation0], 336
    %257 = vst [vmem:[%s256] sm:%s169] %v255
    %s258 = scalar_lea.vmem [#allocation1], 164
    %v259 = vld [vmem:[%s258] sm:%s169]
    %s260 = scalar_lea.vmem [#allocation0], 328
    %261 = vst [vmem:[%s260] sm:%s169] %v259
    %s262 = scalar_lea.vmem [#allocation1], 160
    %v263 = vld [vmem:[%s262] sm:%s169]
    %s264 = scalar_lea.vmem [#allocation0], 320
    %265 = vst [vmem:[%s264] sm:%s169] %v263
    %s266 = scalar_lea.vmem [#allocation1], 156
    %v267 = vld [vmem:[%s266] sm:%s169]
    %s268 = scalar_lea.vmem [#allocation0], 312
    %269 = vst [vmem:[%s268] sm:%s169] %v267
    %s270 = scalar_lea.vmem [#allocation1], 152
    %v271 = vld [vmem:[%s270] sm:%s169]
    %s272 = scalar_lea.vmem [#allocation0], 304
    %273 = vst [vmem:[%s272] sm:%s169] %v271
    %s274 = scalar_lea.vmem [#allocation1], 148
    %v275 = vld [vmem:[%s274] sm:%s169]
    %s276 = scalar_lea.vmem [#allocation0], 296
    %277 = vst [vmem:[%s276] sm:%s169] %v275
    %s278 = scalar_lea.vmem [#allocation1], 144
    %v279 = vld [vmem:[%s278] sm:%s169]
    %s280 = scalar_lea.vmem [#allocation0], 288
    %281 = vst [vmem:[%s280] sm:%s169] %v279
    %s282 = scalar_lea.vmem [#allocation1], 140
    %v283 = vld [vmem:[%s282] sm:%s169]
    %s284 = scalar_lea.vmem [#allocation0], 280
    %285 = vst [vmem:[%s284] sm:%s169] %v283
    %s286 = scalar_lea.vmem [#allocation1], 136
    %v287 = vld [vmem:[%s286] sm:%s169]
    %s288 = scalar_lea.vmem [#allocation0], 272
    %289 = vst [vmem:[%s288] sm:%s169] %v287
    %s290 = scalar_lea.vmem [#allocation1], 132
    %v291 = vld [vmem:[%s290] sm:%s169]
    %s292 = scalar_lea.vmem [#allocation0], 264
    %293 = vst [vmem:[%s292] sm:%s169] %v291
    %s294 = scalar_lea.vmem [#allocation1], 128
    %v295 = vld [vmem:[%s294] sm:%s169]
    %s296 = scalar_lea.vmem [#allocation0], 256
    %297 = vst [vmem:[%s296] sm:%s169] %v295
    %s298 = scalar_lea.vmem [#allocation1], 124
    %v299 = vld [vmem:[%s298] sm:%s169]
    %s300 = scalar_lea.vmem [#allocation0], 248
    %301 = vst [vmem:[%s300] sm:%s169] %v299
    %s302 = scalar_lea.vmem [#allocation1], 120
    %v303 = vld [vmem:[%s302] sm:%s169]
    %s304 = scalar_lea.vmem [#allocation0], 240
    %305 = vst [vmem:[%s304] sm:%s169] %v303
    %s306 = scalar_lea.vmem [#allocation1], 116
    %v307 = vld [vmem:[%s306] sm:%s169]
    %s308 = scalar_lea.vmem [#allocation0], 232
    %309 = vst [vmem:[%s308] sm:%s169] %v307
    %s310 = scalar_lea.vmem [#allocation1], 112
    %v311 = vld [vmem:[%s310] sm:%s169]
    %s312 = scalar_lea.vmem [#allocation0], 224
    %313 = vst [vmem:[%s312] sm:%s169] %v311
    %s314 = scalar_lea.vmem [#allocation1], 108
    %v315 = vld [vmem:[%s314] sm:%s169]
    %s316 = scalar_lea.vmem [#allocation0], 216
    %317 = vst [vmem:[%s316] sm:%s169] %v315
    %s318 = scalar_lea.vmem [#allocation1], 104
    %v319 = vld [vmem:[%s318] sm:%s169]
    %s320 = scalar_lea.vmem [#allocation0], 208
    %321 = vst [vmem:[%s320] sm:%s169] %v319
    %s322 = scalar_lea.vmem [#allocation1], 100
    %v323 = vld [vmem:[%s322] sm:%s169]
    %s324 = scalar_lea.vmem [#allocation0], 200
    %325 = vst [vmem:[%s324] sm:%s169] %v323
    %s326 = scalar_lea.vmem [#allocation1], 96
    %v327 = vld [vmem:[%s326] sm:%s169]
    %s328 = scalar_lea.vmem [#allocation0], 192
    %329 = vst [vmem:[%s328] sm:%s169] %v327
    %s330 = scalar_lea.vmem [#allocation1], 92
    %v331 = vld [vmem:[%s330] sm:%s169]
    %s332 = scalar_lea.vmem [#allocation0], 184
    %333 = vst [vmem:[%s332] sm:%s169] %v331
    %s334 = scalar_lea.vmem [#allocation1], 88
    %v335 = vld [vmem:[%s334] sm:%s169]
    %s336 = scalar_lea.vmem [#allocation0], 176
    %337 = vst [vmem:[%s336] sm:%s169] %v335
    %s338 = scalar_lea.vmem [#allocation1], 84
    %v339 = vld [vmem:[%s338] sm:%s169]
    %s340 = scalar_lea.vmem [#allocation0], 168
    %341 = vst [vmem:[%s340] sm:%s169] %v339
    %s342 = scalar_lea.vmem [#allocation1], 80
    %v343 = vld [vmem:[%s342] sm:%s169]
    %s344 = scalar_lea.vmem [#allocation0], 160
    %345 = vst [vmem:[%s344] sm:%s169] %v343
    %s346 = scalar_lea.vmem [#allocation1], 76
    %v347 = vld [vmem:[%s346] sm:%s169]
    %s348 = scalar_lea.vmem [#allocation0], 152
    %349 = vst [vmem:[%s348] sm:%s169] %v347
    %s350 = scalar_lea.vmem [#allocation1], 72
    %v351 = vld [vmem:[%s350] sm:%s169]
    %s352 = scalar_lea.vmem [#allocation0], 144
    %353 = vst [vmem:[%s352] sm:%s169] %v351
    %s354 = scalar_lea.vmem [#allocation1], 68
    %v355 = vld [vmem:[%s354] sm:%s169]
    %s356 = scalar_lea.vmem [#allocation0], 136
    %357 = vst [vmem:[%s356] sm:%s169] %v355
    %s358 = scalar_lea.vmem [#allocation1], 64
    %v359 = vld [vmem:[%s358] sm:%s169]
    %s360 = scalar_lea.vmem [#allocation0], 128
    %361 = vst [vmem:[%s360] sm:%s169] %v359
    %s362 = scalar_lea.vmem [#allocation1], 60
    %v363 = vld [vmem:[%s362] sm:%s169]
    %s364 = scalar_lea.vmem [#allocation0], 120
    %365 = vst [vmem:[%s364] sm:%s169] %v363
    %s366 = scalar_lea.vmem [#allocation1], 56
    %v367 = vld [vmem:[%s366] sm:%s169]
    %s368 = scalar_lea.vmem [#allocation0], 112
    %369 = vst [vmem:[%s368] sm:%s169] %v367
    %s370 = scalar_lea.vmem [#allocation1], 52
    %v371 = vld [vmem:[%s370] sm:%s169]
    %s372 = scalar_lea.vmem [#allocation0], 104
    %373 = vst [vmem:[%s372] sm:%s169] %v371
    %s374 = scalar_lea.vmem [#allocation1], 48
    %v375 = vld [vmem:[%s374] sm:%s169]
    %s376 = scalar_lea.vmem [#allocation0], 96
    %377 = vst [vmem:[%s376] sm:%s169] %v375
    %s378 = scalar_lea.vmem [#allocation1], 44
    %v379 = vld [vmem:[%s378] sm:%s169]
    %s380 = scalar_lea.vmem [#allocation0], 88
    %381 = vst [vmem:[%s380] sm:%s169] %v379
    %s382 = scalar_lea.vmem [#allocation1], 40
    %v383 = vld [vmem:[%s382] sm:%s169]
    %s384 = scalar_lea.vmem [#allocation0], 80
    %385 = vst [vmem:[%s384] sm:%s169] %v383
    %s386 = scalar_lea.vmem [#allocation1], 36
    %v387 = vld [vmem:[%s386] sm:%s169]
    %s388 = scalar_lea.vmem [#allocation0], 72
    %389 = vst [vmem:[%s388] sm:%s169] %v387
    %s390 = scalar_lea.vmem [#allocation1], 32
    %v391 = vld [vmem:[%s390] sm:%s169]
    %s392 = scalar_lea.vmem [#allocation0], 64
    %393 = vst [vmem:[%s392] sm:%s169] %v391
    %s394 = scalar_lea.vmem [#allocation1], 28
    %v395 = vld [vmem:[%s394] sm:%s169]
    %s396 = scalar_lea.vmem [#allocation0], 56
    %397 = vst [vmem:[%s396] sm:%s169] %v395
    %s398 = scalar_lea.vmem [#allocation1], 24
    %v399 = vld [vmem:[%s398] sm:%s169]
    %s400 = scalar_lea.vmem [#allocation0], 48
    %401 = vst [vmem:[%s400] sm:%s169] %v399
    %s402 = scalar_lea.vmem [#allocation1], 20
    %v403 = vld [vmem:[%s402] sm:%s169]
    %s404 = scalar_lea.vmem [#allocation0], 40
    %405 = vst [vmem:[%s404] sm:%s169] %v403
    %s406 = scalar_lea.vmem [#allocation1], 16
    %v407 = vld [vmem:[%s406] sm:%s169]
    %s408 = scalar_lea.vmem [#allocation0], 32
    %409 = vst [vmem:[%s408] sm:%s169] %v407
    %s410 = scalar_lea.vmem [#allocation1], 12
    %v411 = vld [vmem:[%s410] sm:%s169]
    %s412 = scalar_lea.vmem [#allocation0], 24
    %413 = vst [vmem:[%s412] sm:%s169] %v411
    %s414 = scalar_lea.vmem [#allocation1], 8
    %v415 = vld [vmem:[%s414] sm:%s169]
    %s416 = scalar_lea.vmem [#allocation0], 16
    %417 = vst [vmem:[%s416] sm:%s169] %v415
    %s418 = scalar_lea.vmem [#allocation1], 4
    %v419 = vld [vmem:[%s418] sm:%s169]
    %s420 = scalar_lea.vmem [#allocation0], 8
    %421 = vst [vmem:[%s420] sm:%s169] %v419
    %v422 = vld [vmem:[#allocation1] sm:%s169]
    %423 = vst [vmem:[#allocation0] sm:%s169] %v422
    %s424 = scalar_lea.vmem [#allocation0], 7
    %v425 = vld [vmem:[%s424] ss:$-1 sm:$0xff]
    %v426 = vrot.slane %v425, 5
    %427 = vst [vmem:[#allocation2] sm:$0xff] %v426
    %s428 = scalar_lea.vmem [#allocation0], 8
    %s429 = scalar_lea.vmem %s428, 7 [#allocation0]
    %v430 = vld [vmem:[%s429] ss:$-1 sm:$0xff]
    %v431 = vrot.slane %v430, 5
    %v432 = vlaneseq
    %v433 = vshrl.u32 %v432, 7
    %vm434 = vcmp.lt.s32.totalorder %v433, 3
    %435 = vst.msk [vmem:[#allocation2] sm:$0xff] %vm434, %v431
    %s436 = scalar_lea.vmem [#allocation2], 8
    %s437 = scalar_lea.vmem [#allocation0], 16
    %s438 = scalar_lea.vmem %s437, 7 [#allocation0]
    %v439 = vld [vmem:[%s438] ss:$-1 sm:$0xff]
    %v440 = vrot.slane %v439, 5
    %441 = vst [vmem:[%s436] sm:$0xff] %v440
    %s442 = scalar_lea.vmem %s437, 8 [#allocation0]
    %s443 = scalar_lea.vmem %s442, 7 [#allocation0]
    %v444 = vld [vmem:[%s443] ss:$-1 sm:$0xff]
    %v445 = vrot.slane %v444, 5
    %v446 = vlaneseq
    %v447 = vshrl.u32 %v446, 7
    %vm448 = vcmp.lt.s32.totalorder %v447, 3
    %449 = vst.msk [vmem:[%s436] sm:$0xff] %vm448, %v445
    %s450 = scalar_lea.vmem [#allocation2], 16
    %s451 = scalar_lea.vmem [#allocation0], 32
    %s452 = scalar_lea.vmem %s451, 7 [#allocation0]
    %v453 = vld [vmem:[%s452] ss:$-1 sm:$0xff]
    %v454 = vrot.slane %v453, 5
    %455 = vst [vmem:[%s450] sm:$0xff] %v454
    %s456 = scalar_lea.vmem %s451, 8 [#allocation0]
    %s457 = scalar_lea.vmem %s456, 7 [#allocation0]
    %v458 = vld [vmem:[%s457] ss:$-1 sm:$0xff]
    %v459 = vrot.slane %v458, 5
    %v460 = vlaneseq
    %v461 = vshrl.u32 %v460, 7
    %vm462 = vcmp.lt.s32.totalorder %v461, 3
    %463 = vst.msk [vmem:[%s450] sm:$0xff] %vm462, %v459
    %s464 = scalar_lea.vmem [#allocation2], 24
    %s465 = scalar_lea.vmem [#allocation0], 48
    %s466 = scalar_lea.vmem %s465, 7 [#allocation0]
    %v467 = vld [vmem:[%s466] ss:$-1 sm:$0xff]
    %v468 = vrot.slane %v467, 5
    %469 = vst [vmem:[%s464] sm:$0xff] %v468
    %s470 = scalar_lea.vmem %s465, 8 [#allocation0]
    %s471 = scalar_lea.vmem %s470, 7 [#allocation0]
    %v472 = vld [vmem:[%s471] ss:$-1 sm:$0xff]
    %v473 = vrot.slane %v472, 5
    %v474 = vlaneseq
    %v475 = vshrl.u32 %v474, 7
    %vm476 = vcmp.lt.s32.totalorder %v475, 3
    %477 = vst.msk [vmem:[%s464] sm:$0xff] %vm476, %v473
    %s478 = scalar_lea.vmem [#allocation2], 32
    %s479 = scalar_lea.vmem [#allocation0], 64
    %s480 = scalar_lea.vmem %s479, 7 [#allocation0]
    %v481 = vld [vmem:[%s480] ss:$-1 sm:$0xff]
    %v482 = vrot.slane %v481, 5
    %483 = vst [vmem:[%s478] sm:$0xff] %v482
    %s484 = scalar_lea.vmem %s479, 8 [#allocation0]
    %s485 = scalar_lea.vmem %s484, 7 [#allocation0]
    %v486 = vld [vmem:[%s485] ss:$-1 sm:$0xff]
    %v487 = vrot.slane %v486, 5
    %v488 = vlaneseq
    %v489 = vshrl.u32 %v488, 7
    %vm490 = vcmp.lt.s32.totalorder %v489, 3
    %491 = vst.msk [vmem:[%s478] sm:$0xff] %vm490, %v487
    %s492 = scalar_lea.vmem [#allocation2], 40
    %s493 = scalar_lea.vmem [#allocation0], 80
    %s494 = scalar_lea.vmem %s493, 7 [#allocation0]
    %v495 = vld [vmem:[%s494] ss:$-1 sm:$0xff]
    %v496 = vrot.slane %v495, 5
    %497 = vst [vmem:[%s492] sm:$0xff] %v496
    %s498 = scalar_lea.vmem %s493, 8 [#allocation0]
    %s499 = scalar_lea.vmem %s498, 7 [#allocation0]
    %v500 = vld [vmem:[%s499] ss:$-1 sm:$0xff]
    %v501 = vrot.slane %v500, 5
    %v502 = vlaneseq
    %v503 = vshrl.u32 %v502, 7
    %vm504 = vcmp.lt.s32.totalorder %v503, 3
    %505 = vst.msk [vmem:[%s492] sm:$0xff] %vm504, %v501
    %s506 = scalar_lea.vmem [#allocation2], 48
    %s507 = scalar_lea.vmem [#allocation0], 96
    %s508 = scalar_lea.vmem %s507, 7 [#allocation0]
    %v509 = vld [vmem:[%s508] ss:$-1 sm:$0xff]
    %v510 = vrot.slane %v509, 5
    %511 = vst [vmem:[%s506] sm:$0xff] %v510
    %s512 = scalar_lea.vmem %s507, 8 [#allocation0]
    %s513 = scalar_lea.vmem %s512, 7 [#allocation0]
    %v514 = vld [vmem:[%s513] ss:$-1 sm:$0xff]
    %v515 = vrot.slane %v514, 5
    %v516 = vlaneseq
    %v517 = vshrl.u32 %v516, 7
    %vm518 = vcmp.lt.s32.totalorder %v517, 3
    %519 = vst.msk [vmem:[%s506] sm:$0xff] %vm518, %v515
    %s520 = scalar_lea.vmem [#allocation2], 56
    %s521 = scalar_lea.vmem [#allocation0], 112
    %s522 = scalar_lea.vmem %s521, 7 [#allocation0]
    %v523 = vld [vmem:[%s522] ss:$-1 sm:$0xff]
    %v524 = vrot.slane %v523, 5
    %525 = vst [vmem:[%s520] sm:$0xff] %v524
    %s526 = scalar_lea.vmem %s521, 8 [#allocation0]
    %s527 = scalar_lea.vmem %s526, 7 [#allocation0]
    %v528 = vld [vmem:[%s527] ss:$-1 sm:$0xff]
    %v529 = vrot.slane %v528, 5
    %v530 = vlaneseq
    %v531 = vshrl.u32 %v530, 7
    %vm532 = vcmp.lt.s32.totalorder %v531, 3
    %533 = vst.msk [vmem:[%s520] sm:$0xff] %vm532, %v529
    %s534 = scalar_lea.vmem [#allocation2], 64
    %s535 = scalar_lea.vmem [#allocation0], 128
    %s536 = scalar_lea.vmem %s535, 7 [#allocation0]
    %v537 = vld [vmem:[%s536] ss:$-1 sm:$0xff]
    %v538 = vrot.slane %v537, 5
    %539 = vst [vmem:[%s534] sm:$0xff] %v538
    %s540 = scalar_lea.vmem %s535, 8 [#allocation0]
    %s541 = scalar_lea.vmem %s540, 7 [#allocation0]
    %v542 = vld [vmem:[%s541] ss:$-1 sm:$0xff]
    %v543 = vrot.slane %v542, 5
    %v544 = vlaneseq
    %v545 = vshrl.u32 %v544, 7
    %vm546 = vcmp.lt.s32.totalorder %v545, 3
    %547 = vst.msk [vmem:[%s534] sm:$0xff] %vm546, %v543
    %s548 = scalar_lea.vmem [#allocation2], 72
    %s549 = scalar_lea.vmem [#allocation0], 144
    %s550 = scalar_lea.vmem %s549, 7 [#allocation0]
    %v551 = vld [vmem:[%s550] ss:$-1 sm:$0xff]
    %v552 = vrot.slane %v551, 5
    %553 = vst [vmem:[%s548] sm:$0xff] %v552
    %s554 = scalar_lea.vmem %s549, 8 [#allocation0]
    %s555 = scalar_lea.vmem %s554, 7 [#allocation0]
    %v556 = vld [vmem:[%s555] ss:$-1 sm:$0xff]
    %v557 = vrot.slane %v556, 5
    %v558 = vlaneseq
    %v559 = vshrl.u32 %v558, 7
    %vm560 = vcmp.lt.s32.totalorder %v559, 3
    %561 = vst.msk [vmem:[%s548] sm:$0xff] %vm560, %v557
    %s562 = scalar_lea.vmem [#allocation2], 80
    %s563 = scalar_lea.vmem [#allocation0], 160
    %s564 = scalar_lea.vmem %s563, 7 [#allocation0]
    %v565 = vld [vmem:[%s564] ss:$-1 sm:$0xff]
    %v566 = vrot.slane %v565, 5
    %567 = vst [vmem:[%s562] sm:$0xff] %v566
    %s568 = scalar_lea.vmem %s563, 8 [#allocation0]
    %s569 = scalar_lea.vmem %s568, 7 [#allocation0]
    %v570 = vld [vmem:[%s569] ss:$-1 sm:$0xff]
    %v571 = vrot.slane %v570, 5
    %v572 = vlaneseq
    %v573 = vshrl.u32 %v572, 7
    %vm574 = vcmp.lt.s32.totalorder %v573, 3
    %575 = vst.msk [vmem:[%s562] sm:$0xff] %vm574, %v571
    %s576 = scalar_lea.vmem [#allocation2], 88
    %s577 = scalar_lea.vmem [#allocation0], 176
    %s578 = scalar_lea.vmem %s577, 7 [#allocation0]
    %v579 = vld [vmem:[%s578] ss:$-1 sm:$0xff]
    %v580 = vrot.slane %v579, 5
    %581 = vst [vmem:[%s576] sm:$0xff] %v580
    %s582 = scalar_lea.vmem %s577, 8 [#allocation0]
    %s583 = scalar_lea.vmem %s582, 7 [#allocation0]
    %v584 = vld [vmem:[%s583] ss:$-1 sm:$0xff]
    %v585 = vrot.slane %v584, 5
    %v586 = vlaneseq
    %v587 = vshrl.u32 %v586, 7
    %vm588 = vcmp.lt.s32.totalorder %v587, 3
    %589 = vst.msk [vmem:[%s576] sm:$0xff] %vm588, %v585
    %s590 = scalar_lea.vmem [#allocation2], 96
    %s591 = scalar_lea.vmem [#allocation0], 192
    %s592 = scalar_lea.vmem %s591, 7 [#allocation0]
    %v593 = vld [vmem:[%s592] ss:$-1 sm:$0xff]
    %v594 = vrot.slane %v593, 5
    %595 = vst [vmem:[%s590] sm:$0xff] %v594
    %s596 = scalar_lea.vmem %s591, 8 [#allocation0]
    %s597 = scalar_lea.vmem %s596, 7 [#allocation0]
    %v598 = vld [vmem:[%s597] ss:$-1 sm:$0xff]
    %v599 = vrot.slane %v598, 5
    %v600 = vlaneseq
    %v601 = vshrl.u32 %v600, 7
    %vm602 = vcmp.lt.s32.totalorder %v601, 3
    %603 = vst.msk [vmem:[%s590] sm:$0xff] %vm602, %v599
    %s604 = scalar_lea.vmem [#allocation2], 104
    %s605 = scalar_lea.vmem [#allocation0], 208
    %s606 = scalar_lea.vmem %s605, 7 [#allocation0]
    %v607 = vld [vmem:[%s606] ss:$-1 sm:$0xff]
    %v608 = vrot.slane %v607, 5
    %609 = vst [vmem:[%s604] sm:$0xff] %v608
    %s610 = scalar_lea.vmem %s605, 8 [#allocation0]
    %s611 = scalar_lea.vmem %s610, 7 [#allocation0]
    %v612 = vld [vmem:[%s611] ss:$-1 sm:$0xff]
    %v613 = vrot.slane %v612, 5
    %v614 = vlaneseq
    %v615 = vshrl.u32 %v614, 7
    %vm616 = vcmp.lt.s32.totalorder %v615, 3
    %617 = vst.msk [vmem:[%s604] sm:$0xff] %vm616, %v613
    %s618 = scalar_lea.vmem [#allocation2], 112
    %s619 = scalar_lea.vmem [#allocation0], 224
    %s620 = scalar_lea.vmem %s619, 7 [#allocation0]
    %v621 = vld [vmem:[%s620] ss:$-1 sm:$0xff]
    %v622 = vrot.slane %v621, 5
    %623 = vst [vmem:[%s618] sm:$0xff] %v622
    %s624 = scalar_lea.vmem %s619, 8 [#allocation0]
    %s625 = scalar_lea.vmem %s624, 7 [#allocation0]
    %v626 = vld [vmem:[%s625] ss:$-1 sm:$0xff]
    %v627 = vrot.slane %v626, 5
    %v628 = vlaneseq
    %v629 = vshrl.u32 %v628, 7
    %vm630 = vcmp.lt.s32.totalorder %v629, 3
    %631 = vst.msk [vmem:[%s618] sm:$0xff] %vm630, %v627
    %s632 = scalar_lea.vmem [#allocation2], 120
    %s633 = scalar_lea.vmem [#allocation0], 240
    %s634 = scalar_lea.vmem %s633, 7 [#allocation0]
    %v635 = vld [vmem:[%s634] ss:$-1 sm:$0xff]
    %v636 = vrot.slane %v635, 5
    %637 = vst [vmem:[%s632] sm:$0xff] %v636
    %s638 = scalar_lea.vmem %s633, 8 [#allocation0]
    %s639 = scalar_lea.vmem %s638, 7 [#allocation0]
    %v640 = vld [vmem:[%s639] ss:$-1 sm:$0xff]
    %v641 = vrot.slane %v640, 5
    %v642 = vlaneseq
    %v643 = vshrl.u32 %v642, 7
    %vm644 = vcmp.lt.s32.totalorder %v643, 3
    %645 = vst.msk [vmem:[%s632] sm:$0xff] %vm644, %v641
    %s646 = scalar_lea.vmem [#allocation2], 128
    %s647 = scalar_lea.vmem [#allocation0], 256
    %s648 = scalar_lea.vmem %s647, 7 [#allocation0]
    %v649 = vld [vmem:[%s648] ss:$-1 sm:$0xff]
    %v650 = vrot.slane %v649, 5
    %651 = vst [vmem:[%s646] sm:$0xff] %v650
    %s652 = scalar_lea.vmem %s647, 8 [#allocation0]
    %s653 = scalar_lea.vmem %s652, 7 [#allocation0]
    %v654 = vld [vmem:[%s653] ss:$-1 sm:$0xff]
    %v655 = vrot.slane %v654, 5
    %v656 = vlaneseq
    %v657 = vshrl.u32 %v656, 7
    %vm658 = vcmp.lt.s32.totalorder %v657, 3
    %659 = vst.msk [vmem:[%s646] sm:$0xff] %vm658, %v655
    %s660 = scalar_lea.vmem [#allocation2], 136
    %s661 = scalar_lea.vmem [#allocation0], 272
    %s662 = scalar_lea.vmem %s661, 7 [#allocation0]
    %v663 = vld [vmem:[%s662] ss:$-1 sm:$0xff]
    %v664 = vrot.slane %v663, 5
    %665 = vst [vmem:[%s660] sm:$0xff] %v664
    %s666 = scalar_lea.vmem %s661, 8 [#allocation0]
    %s667 = scalar_lea.vmem %s666, 7 [#allocation0]
    %v668 = vld [vmem:[%s667] ss:$-1 sm:$0xff]
    %v669 = vrot.slane %v668, 5
    %v670 = vlaneseq
    %v671 = vshrl.u32 %v670, 7
    %vm672 = vcmp.lt.s32.totalorder %v671, 3
    %673 = vst.msk [vmem:[%s660] sm:$0xff] %vm672, %v669
    %s674 = scalar_lea.vmem [#allocation2], 144
    %s675 = scalar_lea.vmem [#allocation0], 288
    %s676 = scalar_lea.vmem %s675, 7 [#allocation0]
    %v677 = vld [vmem:[%s676] ss:$-1 sm:$0xff]
    %v678 = vrot.slane %v677, 5
    %679 = vst [vmem:[%s674] sm:$0xff] %v678
    %s680 = scalar_lea.vmem %s675, 8 [#allocation0]
    %s681 = scalar_lea.vmem %s680, 7 [#allocation0]
    %v682 = vld [vmem:[%s681] ss:$-1 sm:$0xff]
    %v683 = vrot.slane %v682, 5
    %v684 = vlaneseq
    %v685 = vshrl.u32 %v684, 7
    %vm686 = vcmp.lt.s32.totalorder %v685, 3
    %687 = vst.msk [vmem:[%s674] sm:$0xff] %vm686, %v683
    %s688 = scalar_lea.vmem [#allocation2], 152
    %s689 = scalar_lea.vmem [#allocation0], 304
    %s690 = scalar_lea.vmem %s689, 7 [#allocation0]
    %v691 = vld [vmem:[%s690] ss:$-1 sm:$0xff]
    %v692 = vrot.slane %v691, 5
    %693 = vst [vmem:[%s688] sm:$0xff] %v692
    %s694 = scalar_lea.vmem %s689, 8 [#allocation0]
    %s695 = scalar_lea.vmem %s694, 7 [#allocation0]
    %v696 = vld [vmem:[%s695] ss:$-1 sm:$0xff]
    %v697 = vrot.slane %v696, 5
    %v698 = vlaneseq
    %v699 = vshrl.u32 %v698, 7
    %vm700 = vcmp.lt.s32.totalorder %v699, 3
    %701 = vst.msk [vmem:[%s688] sm:$0xff] %vm700, %v697
    %s702 = scalar_lea.vmem [#allocation2], 160
    %s703 = scalar_lea.vmem [#allocation0], 320
    %s704 = scalar_lea.vmem %s703, 7 [#allocation0]
    %v705 = vld [vmem:[%s704] ss:$-1 sm:$0xff]
    %v706 = vrot.slane %v705, 5
    %707 = vst [vmem:[%s702] sm:$0xff] %v706
    %s708 = scalar_lea.vmem %s703, 8 [#allocation0]
    %s709 = scalar_lea.vmem %s708, 7 [#allocation0]
    %v710 = vld [vmem:[%s709] ss:$-1 sm:$0xff]
    %v711 = vrot.slane %v710, 5
    %v712 = vlaneseq
    %v713 = vshrl.u32 %v712, 7
    %vm714 = vcmp.lt.s32.totalorder %v713, 3
    %715 = vst.msk [vmem:[%s702] sm:$0xff] %vm714, %v711
    %s716 = scalar_lea.vmem [#allocation2], 168
    %s717 = scalar_lea.vmem [#allocation0], 336
    %s718 = scalar_lea.vmem %s717, 7 [#allocation0]
    %v719 = vld [vmem:[%s718] ss:$-1 sm:$0xff]
    %v720 = vrot.slane %v719, 5
    %721 = vst [vmem:[%s716] sm:$0xff] %v720
    %s722 = scalar_lea.vmem %s717, 8 [#allocation0]
    %s723 = scalar_lea.vmem %s722, 7 [#allocation0]
    %v724 = vld [vmem:[%s723] ss:$-1 sm:$0xff]
    %v725 = vrot.slane %v724, 5
    %v726 = vlaneseq
    %v727 = vshrl.u32 %v726, 7
    %vm728 = vcmp.lt.s32.totalorder %v727, 3
    %729 = vst.msk [vmem:[%s716] sm:$0xff] %vm728, %v725
    %s730 = scalar_lea.vmem [#allocation2], 176
    %s731 = scalar_lea.vmem [#allocation0], 352
    %s732 = scalar_lea.vmem %s731, 7 [#allocation0]
    %v733 = vld [vmem:[%s732] ss:$-1 sm:$0xff]
    %v734 = vrot.slane %v733, 5
    %735 = vst [vmem:[%s730] sm:$0xff] %v734
    %s736 = scalar_lea.vmem %s731, 8 [#allocation0]
    %s737 = scalar_lea.vmem %s736, 7 [#allocation0]
    %v738 = vld [vmem:[%s737] ss:$-1 sm:$0xff]
    %v739 = vrot.slane %v738, 5
    %v740 = vlaneseq
    %v741 = vshrl.u32 %v740, 7
    %vm742 = vcmp.lt.s32.totalorder %v741, 3
    %743 = vst.msk [vmem:[%s730] sm:$0xff] %vm742, %v739
    %s744 = scalar_lea.vmem [#allocation2], 184
    %s745 = scalar_lea.vmem [#allocation0], 368
    %s746 = scalar_lea.vmem %s745, 7 [#allocation0]
    %v747 = vld [vmem:[%s746] ss:$-1 sm:$0xff]
    %v748 = vrot.slane %v747, 5
    %749 = vst [vmem:[%s744] sm:$0xff] %v748
    %s750 = scalar_lea.vmem %s745, 8 [#allocation0]
    %s751 = scalar_lea.vmem %s750, 7 [#allocation0]
    %v752 = vld [vmem:[%s751] ss:$-1 sm:$0xff]
    %v753 = vrot.slane %v752, 5
    %v754 = vlaneseq
    %v755 = vshrl.u32 %v754, 7
    %vm756 = vcmp.lt.s32.totalorder %v755, 3
    %757 = vst.msk [vmem:[%s744] sm:$0xff] %vm756, %v753
    %s758 = scalar_lea.vmem [#allocation2], 192
    %s759 = scalar_lea.vmem [#allocation0], 384
    %s760 = scalar_lea.vmem %s759, 7 [#allocation0]
    %v761 = vld [vmem:[%s760] ss:$-1 sm:$0xff]
    %v762 = vrot.slane %v761, 5
    %763 = vst [vmem:[%s758] sm:$0xff] %v762
    %s764 = scalar_lea.vmem %s759, 8 [#allocation0]
    %s765 = scalar_lea.vmem %s764, 7 [#allocation0]
    %v766 = vld [vmem:[%s765] ss:$-1 sm:$0xff]
    %v767 = vrot.slane %v766, 5
    %v768 = vlaneseq
    %v769 = vshrl.u32 %v768, 7
    %vm770 = vcmp.lt.s32.totalorder %v769, 3
    %771 = vst.msk [vmem:[%s758] sm:$0xff] %vm770, %v767
    %s772 = scalar_lea.vmem [#allocation2], 200
    %s773 = scalar_lea.vmem [#allocation0], 400
    %s774 = scalar_lea.vmem %s773, 7 [#allocation0]
    %v775 = vld [vmem:[%s774] ss:$-1 sm:$0xff]
    %v776 = vrot.slane %v775, 5
    %777 = vst [vmem:[%s772] sm:$0xff] %v776
    %s778 = scalar_lea.vmem %s773, 8 [#allocation0]
    %s779 = scalar_lea.vmem %s778, 7 [#allocation0]
    %v780 = vld [vmem:[%s779] ss:$-1 sm:$0xff]
    %v781 = vrot.slane %v780, 5
    %v782 = vlaneseq
    %v783 = vshrl.u32 %v782, 7
    %vm784 = vcmp.lt.s32.totalorder %v783, 3
    %785 = vst.msk [vmem:[%s772] sm:$0xff] %vm784, %v781
    %s786 = scalar_lea.vmem [#allocation2], 208
    %s787 = scalar_lea.vmem [#allocation0], 416
    %s788 = scalar_lea.vmem %s787, 7 [#allocation0]
    %v789 = vld [vmem:[%s788] ss:$-1 sm:$0xff]
    %v790 = vrot.slane %v789, 5
    %791 = vst [vmem:[%s786] sm:$0xff] %v790
    %s792 = scalar_lea.vmem %s787, 8 [#allocation0]
    %s793 = scalar_lea.vmem %s792, 7 [#allocation0]
    %v794 = vld [vmem:[%s793] ss:$-1 sm:$0xff]
    %v795 = vrot.slane %v794, 5
    %v796 = vlaneseq
    %v797 = vshrl.u32 %v796, 7
    %vm798 = vcmp.lt.s32.totalorder %v797, 3
    %799 = vst.msk [vmem:[%s786] sm:$0xff] %vm798, %v795
    %s800 = scalar_lea.vmem [#allocation2], 216
    %s801 = scalar_lea.vmem [#allocation0], 432
    %s802 = scalar_lea.vmem %s801, 7 [#allocation0]
    %v803 = vld [vmem:[%s802] ss:$-1 sm:$0xff]
    %v804 = vrot.slane %v803, 5
    %805 = vst [vmem:[%s800] sm:$0xff] %v804
    %s806 = scalar_lea.vmem %s801, 8 [#allocation0]
    %s807 = scalar_lea.vmem %s806, 7 [#allocation0]
    %v808 = vld [vmem:[%s807] ss:$-1 sm:$0xff]
    %v809 = vrot.slane %v808, 5
    %v810 = vlaneseq
    %v811 = vshrl.u32 %v810, 7
    %vm812 = vcmp.lt.s32.totalorder %v811, 3
    %813 = vst.msk [vmem:[%s800] sm:$0xff] %vm812, %v809
    %s814 = scalar_lea.vmem [#allocation2], 224
    %s815 = scalar_lea.vmem [#allocation0], 448
    %s816 = scalar_lea.vmem %s815, 7 [#allocation0]
    %v817 = vld [vmem:[%s816] ss:$-1 sm:$0xff]
    %v818 = vrot.slane %v817, 5
    %819 = vst [vmem:[%s814] sm:$0xff] %v818
    %s820 = scalar_lea.vmem %s815, 8 [#allocation0]
    %s821 = scalar_lea.vmem %s820, 7 [#allocation0]
    %v822 = vld [vmem:[%s821] ss:$-1 sm:$0xff]
    %v823 = vrot.slane %v822, 5
    %v824 = vlaneseq
    %v825 = vshrl.u32 %v824, 7
    %vm826 = vcmp.lt.s32.totalorder %v825, 3
    %827 = vst.msk [vmem:[%s814] sm:$0xff] %vm826, %v823
    %s828 = scalar_lea.vmem [#allocation2], 232
    %s829 = scalar_lea.vmem [#allocation0], 464
    %s830 = scalar_lea.vmem %s829, 7 [#allocation0]
    %v831 = vld [vmem:[%s830] ss:$-1 sm:$0xff]
    %v832 = vrot.slane %v831, 5
    %833 = vst [vmem:[%s828] sm:$0xff] %v832
    %s834 = scalar_lea.vmem %s829, 8 [#allocation0]
    %s835 = scalar_lea.vmem %s834, 7 [#allocation0]
    %v836 = vld [vmem:[%s835] ss:$-1 sm:$0xff]
    %v837 = vrot.slane %v836, 5
    %v838 = vlaneseq
    %v839 = vshrl.u32 %v838, 7
    %vm840 = vcmp.lt.s32.totalorder %v839, 3
    %841 = vst.msk [vmem:[%s828] sm:$0xff] %vm840, %v837
    %s842 = scalar_lea.vmem [#allocation2], 240
    %s843 = scalar_lea.vmem [#allocation0], 480
    %s844 = scalar_lea.vmem %s843, 7 [#allocation0]
    %v845 = vld [vmem:[%s844] ss:$-1 sm:$0xff]
    %v846 = vrot.slane %v845, 5
    %847 = vst [vmem:[%s842] sm:$0xff] %v846
    %s848 = scalar_lea.vmem %s843, 8 [#allocation0]
    %s849 = scalar_lea.vmem %s848, 7 [#allocation0]
    %v850 = vld [vmem:[%s849] ss:$-1 sm:$0xff]
    %v851 = vrot.slane %v850, 5
    %v852 = vlaneseq
    %v853 = vshrl.u32 %v852, 7
    %vm854 = vcmp.lt.s32.totalorder %v853, 3
    %855 = vst.msk [vmem:[%s842] sm:$0xff] %vm854, %v851
    %s856 = scalar_lea.vmem [#allocation2], 248
    %s857 = scalar_lea.vmem [#allocation0], 496
    %s858 = scalar_lea.vmem %s857, 7 [#allocation0]
    %v859 = vld [vmem:[%s858] ss:$-1 sm:$0xff]
    %v860 = vrot.slane %v859, 5
    %861 = vst [vmem:[%s856] sm:$0xff] %v860
    %s862 = scalar_lea.vmem %s857, 8 [#allocation0]
    %s863 = scalar_lea.vmem %s862, 7 [#allocation0]
    %v864 = vld [vmem:[%s863] ss:$-1 sm:$0xff]
    %v865 = vrot.slane %v864, 5
    %v866 = vlaneseq
    %v867 = vshrl.u32 %v866, 7
    %vm868 = vcmp.lt.s32.totalorder %v867, 3
    %869 = vst.msk [vmem:[%s856] sm:$0xff] %vm868, %v865
    %s871 = ssub.s32 16, 1
    %v872 = vld [vmem:[#allocation2] sm:%s871]
    %s874 = ssub.s32 16, 1
    %875 = vst [vmem:[#allocation3] sm:%s874] %v872
    %s876 = scalar_lea.vmem [#allocation2], 8
    %v877 = vld [vmem:[%s876] sm:%s871]
    %s879 = ssub.s32 16, 1
    %s880 = scalar_lea.vmem [#allocation3], 4
    %881 = vst [vmem:[%s880] sm:%s879] %v877
    %s882 = scalar_lea.vmem [#allocation2], 16
    %v883 = vld [vmem:[%s882] sm:%s871]
    %s885 = ssub.s32 16, 1
    %s886 = scalar_lea.vmem [#allocation3], 8
    %887 = vst [vmem:[%s886] sm:%s885] %v883
    %s888 = scalar_lea.vmem [#allocation2], 24
    %v889 = vld [vmem:[%s888] sm:%s871]
    %s891 = ssub.s32 16, 1
    %s892 = scalar_lea.vmem [#allocation3], 12
    %893 = vst [vmem:[%s892] sm:%s891] %v889
    %s894 = scalar_lea.vmem [#allocation2], 32
    %v895 = vld [vmem:[%s894] sm:%s871]
    %s897 = ssub.s32 16, 1
    %s898 = scalar_lea.vmem [#allocation3], 16
    %899 = vst [vmem:[%s898] sm:%s897] %v895
    %s900 = scalar_lea.vmem [#allocation2], 40
    %v901 = vld [vmem:[%s900] sm:%s871]
    %s903 = ssub.s32 16, 1
    %s904 = scalar_lea.vmem [#allocation3], 20
    %905 = vst [vmem:[%s904] sm:%s903] %v901
    %s906 = scalar_lea.vmem [#allocation2], 48
    %v907 = vld [vmem:[%s906] sm:%s871]
    %s909 = ssub.s32 16, 1
    %s910 = scalar_lea.vmem [#allocation3], 24
    %911 = vst [vmem:[%s910] sm:%s909] %v907
    %s912 = scalar_lea.vmem [#allocation2], 56
    %v913 = vld [vmem:[%s912] sm:%s871]
    %s915 = ssub.s32 16, 1
    %s916 = scalar_lea.vmem [#allocation3], 28
    %917 = vst [vmem:[%s916] sm:%s915] %v913
    %s918 = scalar_lea.vmem [#allocation2], 64
    %v919 = vld [vmem:[%s918] sm:%s871]
    %s921 = ssub.s32 16, 1
    %s922 = scalar_lea.vmem [#allocation3], 32
    %923 = vst [vmem:[%s922] sm:%s921] %v919
    %s924 = scalar_lea.vmem [#allocation2], 72
    %v925 = vld [vmem:[%s924] sm:%s871]
    %s927 = ssub.s32 16, 1
    %s928 = scalar_lea.vmem [#allocation3], 36
    %929 = vst [vmem:[%s928] sm:%s927] %v925
    %s930 = scalar_lea.vmem [#allocation2], 80
    %v931 = vld [vmem:[%s930] sm:%s871]
    %s933 = ssub.s32 16, 1
    %s934 = scalar_lea.vmem [#allocation3], 40
    %935 = vst [vmem:[%s934] sm:%s933] %v931
    %s936 = scalar_lea.vmem [#allocation2], 88
    %v937 = vld [vmem:[%s936] sm:%s871]
    %s939 = ssub.s32 16, 1
    %s940 = scalar_lea.vmem [#allocation3], 44
    %941 = vst [vmem:[%s940] sm:%s939] %v937
    %s942 = scalar_lea.vmem [#allocation2], 96
    %v943 = vld [vmem:[%s942] sm:%s871]
    %s945 = ssub.s32 16, 1
    %s946 = scalar_lea.vmem [#allocation3], 48
    %947 = vst [vmem:[%s946] sm:%s945] %v943
    %s948 = scalar_lea.vmem [#allocation2], 104
    %v949 = vld [vmem:[%s948] sm:%s871]
    %s951 = ssub.s32 16, 1
    %s952 = scalar_lea.vmem [#allocation3], 52
    %953 = vst [vmem:[%s952] sm:%s951] %v949
    %s954 = scalar_lea.vmem [#allocation2], 112
    %v955 = vld [vmem:[%s954] sm:%s871]
    %s957 = ssub.s32 16, 1
    %s958 = scalar_lea.vmem [#allocation3], 56
    %959 = vst [vmem:[%s958] sm:%s957] %v955
    %s960 = scalar_lea.vmem [#allocation2], 120
    %v961 = vld [vmem:[%s960] sm:%s871]
    %s963 = ssub.s32 16, 1
    %s964 = scalar_lea.vmem [#allocation3], 60
    %965 = vst [vmem:[%s964] sm:%s963] %v961
    %s966 = scalar_lea.vmem [#allocation2], 128
    %v967 = vld [vmem:[%s966] sm:%s871]
    %s969 = ssub.s32 16, 1
    %s970 = scalar_lea.vmem [#allocation3], 64
    %971 = vst [vmem:[%s970] sm:%s969] %v967
    %s972 = scalar_lea.vmem [#allocation2], 136
    %v973 = vld [vmem:[%s972] sm:%s871]
    %s975 = ssub.s32 16, 1
    %s976 = scalar_lea.vmem [#allocation3], 68
    %977 = vst [vmem:[%s976] sm:%s975] %v973
    %s978 = scalar_lea.vmem [#allocation2], 144
    %v979 = vld [vmem:[%s978] sm:%s871]
    %s981 = ssub.s32 16, 1
    %s982 = scalar_lea.vmem [#allocation3], 72
    %983 = vst [vmem:[%s982] sm:%s981] %v979
    %s984 = scalar_lea.vmem [#allocation2], 152
    %v985 = vld [vmem:[%s984] sm:%s871]
    %s987 = ssub.s32 16, 1
    %s988 = scalar_lea.vmem [#allocation3], 76
    %989 = vst [vmem:[%s988] sm:%s987] %v985
    %s990 = scalar_lea.vmem [#allocation2], 160
    %v991 = vld [vmem:[%s990] sm:%s871]
    %s993 = ssub.s32 16, 1
    %s994 = scalar_lea.vmem [#allocation3], 80
    %995 = vst [vmem:[%s994] sm:%s993] %v991
    %s996 = scalar_lea.vmem [#allocation2], 168
    %v997 = vld [vmem:[%s996] sm:%s871]
    %s999 = ssub.s32 16, 1
    %s1000 = scalar_lea.vmem [#allocation3], 84
    %1001 = vst [vmem:[%s1000] sm:%s999] %v997
    %s1002 = scalar_lea.vmem [#allocation2], 176
    %v1003 = vld [vmem:[%s1002] sm:%s871]
    %s1005 = ssub.s32 16, 1
    %s1006 = scalar_lea.vmem [#allocation3], 88
    %1007 = vst [vmem:[%s1006] sm:%s1005] %v1003
    %s1008 = scalar_lea.vmem [#allocation2], 184
    %v1009 = vld [vmem:[%s1008] sm:%s871]
    %s1011 = ssub.s32 16, 1
    %s1012 = scalar_lea.vmem [#allocation3], 92
    %1013 = vst [vmem:[%s1012] sm:%s1011] %v1009
    %s1014 = scalar_lea.vmem [#allocation2], 192
    %v1015 = vld [vmem:[%s1014] sm:%s871]
    %s1017 = ssub.s32 16, 1
    %s1018 = scalar_lea.vmem [#allocation3], 96
    %1019 = vst [vmem:[%s1018] sm:%s1017] %v1015
    %s1020 = scalar_lea.vmem [#allocation2], 200
    %v1021 = vld [vmem:[%s1020] sm:%s871]
    %s1023 = ssub.s32 16, 1
    %s1024 = scalar_lea.vmem [#allocation3], 100
    %1025 = vst [vmem:[%s1024] sm:%s1023] %v1021
    %s1026 = scalar_lea.vmem [#allocation2], 208
    %v1027 = vld [vmem:[%s1026] sm:%s871]
    %s1029 = ssub.s32 16, 1
    %s1030 = scalar_lea.vmem [#allocation3], 104
    %1031 = vst [vmem:[%s1030] sm:%s1029] %v1027
    %s1032 = scalar_lea.vmem [#allocation2], 216
    %v1033 = vld [vmem:[%s1032] sm:%s871]
    %s1035 = ssub.s32 16, 1
    %s1036 = scalar_lea.vmem [#allocation3], 108
    %1037 = vst [vmem:[%s1036] sm:%s1035] %v1033
    %s1038 = scalar_lea.vmem [#allocation2], 224
    %v1039 = vld [vmem:[%s1038] sm:%s871]
    %s1041 = ssub.s32 16, 1
    %s1042 = scalar_lea.vmem [#allocation3], 112
    %1043 = vst [vmem:[%s1042] sm:%s1041] %v1039
    %s1044 = scalar_lea.vmem [#allocation2], 232
    %v1045 = vld [vmem:[%s1044] sm:%s871]
    %s1047 = ssub.s32 16, 1
    %s1048 = scalar_lea.vmem [#allocation3], 116
    %1049 = vst [vmem:[%s1048] sm:%s1047] %v1045
    %s1050 = scalar_lea.vmem [#allocation2], 240
    %v1051 = vld [vmem:[%s1050] sm:%s871]
    %s1053 = ssub.s32 16, 1
    %s1054 = scalar_lea.vmem [#allocation3], 120
    %1055 = vst [vmem:[%s1054] sm:%s1053] %v1051
    %s1056 = scalar_lea.vmem [#allocation2], 248
    %v1057 = vld [vmem:[%s1056] sm:%s871]
    %s1059 = ssub.s32 16, 1
    %s1060 = scalar_lea.vmem [#allocation3], 124
    %1061 = vst [vmem:[%s1060] sm:%s1059] %v1057
    // Predicated region
    $region39: #{reverse.0} parent=1 // pred_check
      _
    $region40: #{reverse.0} parent=1 // pred_check_branch
      %1063 = sbr.rel (0) target = $region42
    $region41: #{reverse.0} parent=1 // pred_region
      // Predicated region
      $region43: #{reverse.0} parent=41 // pred_check
        _
      $region44: #{reverse.0} parent=41 // pred_check_branch
        %1065 = sbr.rel target = $region46
      $region45: #{reverse.0} parent=41 // pred_region
        // Predicated region
        $region58: #{reverse.0} parent=45 // pred_check
          _
        $region59: #{reverse.0} parent=45 // pred_check_branch
          %1143 = sbr.rel (0) target = $region61
        $region60: #{reverse.0} parent=45 // pred_region
          loop: start=0, step=1, limit=1
          $region62: #{reverse.0} parent=60 // loop_pre_header
            _
          $region63: #{reverse.0} parent=60 // loop_header
            %s1145 = sphi 0, %s1149
            %p1146 = scmp.ge.s32.totalorder %s1145, 1
            %s1150 = sphi [#allocation3], [#allocation3]
            %s1151 = sphi %s1, %s1
          $region64: #{reverse.0} parent=60 // loop_header_branch
            %1148 = sbr.rel (%p1146) target = $region68
          $region65: #{reverse.0} parent=60 // loop_body
            _
          $region66: #{reverse.0} parent=60 // loop_footer
            %s1149 = sadd.s32 1, %s1145
          $region67: #{reverse.0} parent=60 // loop_footer_branch
            %1144 = sbr.rel target = $region63
          $region68: #{reverse.0} parent=60 // loop_exit
            _
          %s1153 = ssub.s32 16, 1
          loop: start=0, step=1, limit=1
          $region69: #{reverse.0} parent=60 // loop_pre_header
            _
          $region70: #{reverse.0} parent=60 // loop_header
            %s1155 = sphi 0, %s1159
            %p1156 = scmp.ge.s32.totalorder %s1155, 1
            %s1160 = sphi [#allocation3], [#allocation3]
            %s1161 = sphi %s1, %s1
          $region71: #{reverse.0} parent=60 // loop_header_branch
            %1158 = sbr.rel (%p1156) target = $region75
          $region72: #{reverse.0} parent=60 // loop_body
            %v1162 = vld [vmem:[%s1160] sm:%s1153]
            %1163 = vst [vmem:[%s1161] sm:%s1153] %v1162
            %v1164 = vld [vmem:[%s1160 + $0x4] sm:%s1153]
            %1165 = vst [vmem:[%s1161 + $0x4] sm:%s1153] %v1164
            %v1166 = vld [vmem:[%s1160 + $0x8] sm:%s1153]
            %1167 = vst [vmem:[%s1161 + $0x8] sm:%s1153] %v1166
            %v1168 = vld [vmem:[%s1160 + $0xc] sm:%s1153]
            %1169 = vst [vmem:[%s1161 + $0xc] sm:%s1153] %v1168
            %v1170 = vld [vmem:[%s1160 + $0x10] sm:%s1153]
            %1171 = vst [vmem:[%s1161 + $0x10] sm:%s1153] %v1170
            %v1172 = vld [vmem:[%s1160 + $0x14] sm:%s1153]
            %1173 = vst [vmem:[%s1161 + $0x14] sm:%s1153] %v1172
            %v1174 = vld [vmem:[%s1160 + $0x18] sm:%s1153]
            %1175 = vst [vmem:[%s1161 + $0x18] sm:%s1153] %v1174
            %v1176 = vld [vmem:[%s1160 + $0x1c] sm:%s1153]
            %1177 = vst [vmem:[%s1161 + $0x1c] sm:%s1153] %v1176
            %v1178 = vld [vmem:[%s1160 + $0x20] sm:%s1153]
            %1179 = vst [vmem:[%s1161 + $0x20] sm:%s1153] %v1178
            %v1180 = vld [vmem:[%s1160 + $0x24] sm:%s1153]
            %1181 = vst [vmem:[%s1161 + $0x24] sm:%s1153] %v1180
            %v1182 = vld [vmem:[%s1160 + $0x28] sm:%s1153]
            %1183 = vst [vmem:[%s1161 + $0x28] sm:%s1153] %v1182
            %v1184 = vld [vmem:[%s1160 + $0x2c] sm:%s1153]
            %1185 = vst [vmem:[%s1161 + $0x2c] sm:%s1153] %v1184
            %v1186 = vld [vmem:[%s1160 + $0x30] sm:%s1153]
            %1187 = vst [vmem:[%s1161 + $0x30] sm:%s1153] %v1186
            %v1188 = vld [vmem:[%s1160 + $0x34] sm:%s1153]
            %1189 = vst [vmem:[%s1161 + $0x34] sm:%s1153] %v1188
            %v1190 = vld [vmem:[%s1160 + $0x38] sm:%s1153]
            %1191 = vst [vmem:[%s1161 + $0x38] sm:%s1153] %v1190
            %v1192 = vld [vmem:[%s1160 + $0x3c] sm:%s1153]
            %1193 = vst [vmem:[%s1161 + $0x3c] sm:%s1153] %v1192
            %v1194 = vld [vmem:[%s1160 + $0x40] sm:%s1153]
            %1195 = vst [vmem:[%s1161 + $0x40] sm:%s1153] %v1194
            %v1196 = vld [vmem:[%s1160 + $0x44] sm:%s1153]
            %1197 = vst [vmem:[%s1161 + $0x44] sm:%s1153] %v1196
            %v1198 = vld [vmem:[%s1160 + $0x48] sm:%s1153]
            %1199 = vst [vmem:[%s1161 + $0x48] sm:%s1153] %v1198
            %v1200 = vld [vmem:[%s1160 + $0x4c] sm:%s1153]
            %1201 = vst [vmem:[%s1161 + $0x4c] sm:%s1153] %v1200
            %v1202 = vld [vmem:[%s1160 + $0x50] sm:%s1153]
            %1203 = vst [vmem:[%s1161 + $0x50] sm:%s1153] %v1202
            %v1204 = vld [vmem:[%s1160 + $0x54] sm:%s1153]
            %1205 = vst [vmem:[%s1161 + $0x54] sm:%s1153] %v1204
            %v1206 = vld [vmem:[%s1160 + $0x58] sm:%s1153]
            %1207 = vst [vmem:[%s1161 + $0x58] sm:%s1153] %v1206
            %v1208 = vld [vmem:[%s1160 + $0x5c] sm:%s1153]
            %1209 = vst [vmem:[%s1161 + $0x5c] sm:%s1153] %v1208
            %v1210 = vld [vmem:[%s1160 + $0x60] sm:%s1153]
            %1211 = vst [vmem:[%s1161 + $0x60] sm:%s1153] %v1210
            %v1212 = vld [vmem:[%s1160 + $0x64] sm:%s1153]
            %1213 = vst [vmem:[%s1161 + $0x64] sm:%s1153] %v1212
            %v1214 = vld [vmem:[%s1160 + $0x68] sm:%s1153]
            %1215 = vst [vmem:[%s1161 + $0x68] sm:%s1153] %v1214
            %v1216 = vld [vmem:[%s1160 + $0x6c] sm:%s1153]
            %1217 = vst [vmem:[%s1161 + $0x6c] sm:%s1153] %v1216
            %v1218 = vld [vmem:[%s1160 + $0x70] sm:%s1153]
            %1219 = vst [vmem:[%s1161 + $0x70] sm:%s1153] %v1218
            %v1220 = vld [vmem:[%s1160 + $0x74] sm:%s1153]
            %1221 = vst [vmem:[%s1161 + $0x74] sm:%s1153] %v1220
            %v1222 = vld [vmem:[%s1160 + $0x78] sm:%s1153]
            %1223 = vst [vmem:[%s1161 + $0x78] sm:%s1153] %v1222
            %v1224 = vld [vmem:[%s1160 + $0x7c] sm:%s1153]
            %1225 = vst [vmem:[%s1161 + $0x7c] sm:%s1153] %v1224
          $region73: #{reverse.0} parent=60 // loop_footer
            %s1159 = sadd.s32 1, %s1155
          $region74: #{reverse.0} parent=60 // loop_footer_branch
            %1154 = sbr.rel target = $region70
          $region75: #{reverse.0} parent=60 // loop_exit
            _
        $region61: #{reverse.0} parent=45 // pred_fallthru
          _
      $region46: #{reverse.0} parent=41 // pred_fallthru
        _
      // Predicated region
      $region47: #{reverse.0} parent=41 // pred_check
        _
      $region48: #{reverse.0} parent=41 // pred_check_branch
        %1067 = sbr.rel (0) target = $region50
      $region49: #{reverse.0} parent=41 // pred_region
        %s1069 = ssub.s32 16, 1
        loop: start=0, step=1, limit=1
        $region51: #{reverse.0} parent=49 // loop_pre_header
          _
        $region52: #{reverse.0} parent=49 // loop_header
          %s1071 = sphi 0, %s1075
          %p1072 = scmp.ge.s32.totalorder %s1071, 1
          %s1076 = sphi [#allocation3], [#allocation3]
          %s1077 = sphi %s1, %s1
        $region53: #{reverse.0} parent=49 // loop_header_branch
          %1074 = sbr.rel (%p1072) target = $region57
        $region54: #{reverse.0} parent=49 // loop_body
          %v1078 = vld [vmem:[%s1076] sm:%s1069]
          %1079 = vst [vmem:[%s1077] sm:%s1069] %v1078
          %v1080 = vld [vmem:[%s1076 + $0x4] sm:%s1069]
          %1081 = vst [vmem:[%s1077 + $0x4] sm:%s1069] %v1080
          %v1082 = vld [vmem:[%s1076 + $0x8] sm:%s1069]
          %1083 = vst [vmem:[%s1077 + $0x8] sm:%s1069] %v1082
          %v1084 = vld [vmem:[%s1076 + $0xc] sm:%s1069]
          %1085 = vst [vmem:[%s1077 + $0xc] sm:%s1069] %v1084
          %v1086 = vld [vmem:[%s1076 + $0x10] sm:%s1069]
          %1087 = vst [vmem:[%s1077 + $0x10] sm:%s1069] %v1086
          %v1088 = vld [vmem:[%s1076 + $0x14] sm:%s1069]
          %1089 = vst [vmem:[%s1077 + $0x14] sm:%s1069] %v1088
          %v1090 = vld [vmem:[%s1076 + $0x18] sm:%s1069]
          %1091 = vst [vmem:[%s1077 + $0x18] sm:%s1069] %v1090
          %v1092 = vld [vmem:[%s1076 + $0x1c] sm:%s1069]
          %1093 = vst [vmem:[%s1077 + $0x1c] sm:%s1069] %v1092
          %v1094 = vld [vmem:[%s1076 + $0x20] sm:%s1069]
          %1095 = vst [vmem:[%s1077 + $0x20] sm:%s1069] %v1094
          %v1096 = vld [vmem:[%s1076 + $0x24] sm:%s1069]
          %1097 = vst [vmem:[%s1077 + $0x24] sm:%s1069] %v1096
          %v1098 = vld [vmem:[%s1076 + $0x28] sm:%s1069]
          %1099 = vst [vmem:[%s1077 + $0x28] sm:%s1069] %v1098
          %v1100 = vld [vmem:[%s1076 + $0x2c] sm:%s1069]
          %1101 = vst [vmem:[%s1077 + $0x2c] sm:%s1069] %v1100
          %v1102 = vld [vmem:[%s1076 + $0x30] sm:%s1069]
          %1103 = vst [vmem:[%s1077 + $0x30] sm:%s1069] %v1102
          %v1104 = vld [vmem:[%s1076 + $0x34] sm:%s1069]
          %1105 = vst [vmem:[%s1077 + $0x34] sm:%s1069] %v1104
          %v1106 = vld [vmem:[%s1076 + $0x38] sm:%s1069]
          %1107 = vst [vmem:[%s1077 + $0x38] sm:%s1069] %v1106
          %v1108 = vld [vmem:[%s1076 + $0x3c] sm:%s1069]
          %1109 = vst [vmem:[%s1077 + $0x3c] sm:%s1069] %v1108
          %v1110 = vld [vmem:[%s1076 + $0x40] sm:%s1069]
          %1111 = vst [vmem:[%s1077 + $0x40] sm:%s1069] %v1110
          %v1112 = vld [vmem:[%s1076 + $0x44] sm:%s1069]
          %1113 = vst [vmem:[%s1077 + $0x44] sm:%s1069] %v1112
          %v1114 = vld [vmem:[%s1076 + $0x48] sm:%s1069]
          %1115 = vst [vmem:[%s1077 + $0x48] sm:%s1069] %v1114
          %v1116 = vld [vmem:[%s1076 + $0x4c] sm:%s1069]
          %1117 = vst [vmem:[%s1077 + $0x4c] sm:%s1069] %v1116
          %v1118 = vld [vmem:[%s1076 + $0x50] sm:%s1069]
          %1119 = vst [vmem:[%s1077 + $0x50] sm:%s1069] %v1118
          %v1120 = vld [vmem:[%s1076 + $0x54] sm:%s1069]
          %1121 = vst [vmem:[%s1077 + $0x54] sm:%s1069] %v1120
          %v1122 = vld [vmem:[%s1076 + $0x58] sm:%s1069]
          %1123 = vst [vmem:[%s1077 + $0x58] sm:%s1069] %v1122
          %v1124 = vld [vmem:[%s1076 + $0x5c] sm:%s1069]
          %1125 = vst [vmem:[%s1077 + $0x5c] sm:%s1069] %v1124
          %v1126 = vld [vmem:[%s1076 + $0x60] sm:%s1069]
          %1127 = vst [vmem:[%s1077 + $0x60] sm:%s1069] %v1126
          %v1128 = vld [vmem:[%s1076 + $0x64] sm:%s1069]
          %1129 = vst [vmem:[%s1077 + $0x64] sm:%s1069] %v1128
          %v1130 = vld [vmem:[%s1076 + $0x68] sm:%s1069]
          %1131 = vst [vmem:[%s1077 + $0x68] sm:%s1069] %v1130
          %v1132 = vld [vmem:[%s1076 + $0x6c] sm:%s1069]
          %1133 = vst [vmem:[%s1077 + $0x6c] sm:%s1069] %v1132
          %v1134 = vld [vmem:[%s1076 + $0x70] sm:%s1069]
          %1135 = vst [vmem:[%s1077 + $0x70] sm:%s1069] %v1134
          %v1136 = vld [vmem:[%s1076 + $0x74] sm:%s1069]
          %1137 = vst [vmem:[%s1077 + $0x74] sm:%s1069] %v1136
          %v1138 = vld [vmem:[%s1076 + $0x78] sm:%s1069]
          %1139 = vst [vmem:[%s1077 + $0x78] sm:%s1069] %v1138
          %v1140 = vld [vmem:[%s1076 + $0x7c] sm:%s1069]
          %1141 = vst [vmem:[%s1077 + $0x7c] sm:%s1069] %v1140
        $region55: #{reverse.0} parent=49 // loop_footer
          %s1075 = sadd.s32 1, %s1071
        $region56: #{reverse.0} parent=49 // loop_footer_branch
          %1070 = sbr.rel target = $region52
        $region57: #{reverse.0} parent=49 // loop_exit
          _
      $region50: #{reverse.0} parent=41 // pred_fallthru
        _
    $region42: #{reverse.0} parent=1 // pred_fallthru
      _
    %1226 = vnop

// kernel: msca_forward.3
$region0: #{msca_forward.3}
  #allocation0 [shape = 'u32[]', space=smem, size = 0x4, offset = 0x4, fixed_abs, tag = 'smem constant byte address 0x4 - core index']
  #allocation1 [shape = 'u32[72,128]{1,0:T(1,128)}', space=vmem, size = 0x9000, scoped, tag = 'internal scratch']
  %s0 = inlined_call_operand.vmem [shape: f32[2,8,256], index: 0, kind: input, shape index: {}]
  %s1 = inlined_call_operand.vmem [shape: f32[2,8,256], index: 1, kind: input, shape index: {}]
  %s2 = inlined_call_operand.vmem [shape: f32[2,8,256], index: 2, kind: input, shape index: {}]
  %s3 = inlined_call_operand.vmem [shape: f32[2,8,256], index: 3, kind: input, shape index: {}]
  %s4 = inlined_call_operand.vmem [shape: f32[2,8,256], index: 4, kind: input, shape index: {}]
  %s5 = inlined_call_operand.vmem [shape: f32[2,8,256], index: 5, kind: input, shape index: {}]
  %s6 = inlined_call_operand.vmem [shape: f32[8,8], index: 6, kind: input, shape index: {}]
  %s7 = inlined_call_operand.vmem [shape: f32[8,1], index: 7, kind: input, shape index: {}]
  %s8 = inlined_call_operand.vmem [shape: f32[2,8,256], index: 8, kind: output, shape index: {}]
  %s9 = sld [smem:[#allocation0]]
  $region65: #{msca_forward.3} parent=0
    _
  %s11 = ssub.s32 1, %s9
  %s12 = scalar_select 0, %s11, %s9
  loop: start=0, step=1, limit=4
  $region2: #{msca_forward.3} parent=0 // loop_pre_header
    _
  $region3: #{msca_forward.3} parent=0 // loop_header
    %s14 = sphi 0, %s18
    %p15 = scmp.ge.s32.totalorder %s14, 4
    %s21 = sphi 0, %s33
    %s22 = sphi 0, %s29
    %s23 = sphi 0, %s21
    %s24 = sphi 0, %s22
    %s25 = sphi 0, %s23
    %s26 = sphi 0, %s24
    %s38 = sphi 0, %s40
    %s41 = sphi 0, %s38
    %s42 = sphi 0, %s41
    %s58 = sphi 0, %s42
    %s66 = sphi 0, %s68
    %s69 = sphi 0, %s66
    %s70 = sphi 0, %s69
    %s86 = sphi 0, %s70
    %s94 = sphi 0, %s96
    %s97 = sphi 0, %s94
    %s98 = sphi 0, %s97
    %s114 = sphi 0, %s98
    %s122 = sphi 0, %s124
    %s125 = sphi 0, %s122
    %s126 = sphi 0, %s125
    %s142 = sphi 0, %s126
    %s150 = sphi 0, %s152
    %s153 = sphi 0, %s150
    %s154 = sphi 0, %s153
    %s170 = sphi 0, %s154
    %s178 = sphi 0, %s180
    %s181 = sphi 0, %s178
    %s182 = sphi 0, %s181
    %s198 = sphi 0, %s182
    %s202 = sphi 0, %s202
    %s204 = sphi 0, %s202
    %s205 = sphi 0, %s204
    %s219 = sphi 0, %s205
    %s223 = sphi 0, %s223
    %s225 = sphi 0, %s223
    %s226 = sphi 0, %s225
    %s240 = sphi 0, %s226
    %s248 = sphi 0, %s250
    %s251 = sphi 0, %s248
    %s252 = sphi 0, %s251
    %s268 = sphi 0, %s252
  $region4: #{msca_forward.3} parent=0 // loop_header_branch
    %17 = sbr.rel (%p15) target = $region8
  $region5: #{msca_forward.3} parent=0 // loop_body
    %s19 = ssub.s32 %s14, 1
    %s20 = ssub.s32 %s14, 2
    %s27 = sadd.s32 1, %s22
    %p28 = scmp.ge.s32.totalorder %s27, 2
    %s29 = scalar_select %p28, 0, %s27
    %s30 = sadd.s32 1, %s21
    %s31 = scalar_select %p28, %s30, %s21
    %p32 = scmp.ge.s32.totalorder %s31, 1
    %s33 = scalar_select %p32, 0, %s31
    %s34 = ssub.s32 %s22, %s29
    %s35 = ssub.s32 %s21, %s33
    %s36 = sor.u32 %s34, %s35
    %p37 = scmp.eq.s32.totalorder %s36, 0
    %s39 = sadd.s32 %s38, 1
    %s40 = scalar_select %p37, %s38, %s39
    %p43 = pneg %p37
    %p44 = scmp.eq.s32.totalorder %s14, 1
    %p45 = por %p43, %p44
    %p46 = scmp.ne.s32.totalorder %s38, %s41
    %p47 = scmp.eq.s32.totalorder %s14, 0
    %p48 = por %p46, %p47
    %p49 = scmp.ne.s32.totalorder %s38, %s41
    %p50 = scmp.eq.s32.totalorder %s19, 1
    %p51 = por %p49, %p50
    %p52 = scmp.ne.s32.totalorder %s41, %s42
    %p53 = scmp.eq.s32.totalorder %s19, 0
    %p54 = por %p52, %p53
    %p55 = scmp.ne.s32.totalorder %s41, %s42
    %p56 = scmp.eq.s32.totalorder %s20, 1
    %p57 = por %p55, %p56
    %p59 = scmp.ne.s32.totalorder %s42, %s58
    %p60 = scmp.eq.s32.totalorder %s20, 0
    %p61 = por %p59, %p60
    %s62 = ssub.s32 %s22, %s29
    %s63 = ssub.s32 %s21, %s33
    %s64 = sor.u32 %s62, %s63
    %p65 = scmp.eq.s32.totalorder %s64, 0
    %s67 = sadd.s32 %s66, 1
    %s68 = scalar_select %p65, %s66, %s67
    %p71 = pneg %p65
    %p72 = scmp.eq.s32.totalorder %s14, 1
    %p73 = por %p71, %p72
    %p74 = scmp.ne.s32.totalorder %s66, %s69
    %p75 = scmp.eq.s32.totalorder %s14, 0
    %p76 = por %p74, %p75
    %p77 = scmp.ne.s32.totalorder %s66, %s69
    %p78 = scmp.eq.s32.totalorder %s19, 1
    %p79 = por %p77, %p78
    %p80 = scmp.ne.s32.totalorder %s69, %s70
    %p81 = scmp.eq.s32.totalorder %s19, 0
    %p82 = por %p80, %p81
    %p83 = scmp.ne.s32.totalorder %s69, %s70
    %p84 = scmp.eq.s32.totalorder %s20, 1
    %p85 = por %p83, %p84
    %p87 = scmp.ne.s32.totalorder %s70, %s86
    %p88 = scmp.eq.s32.totalorder %s20, 0
    %p89 = por %p87, %p88
    %s90 = ssub.s32 %s22, %s29
    %s91 = ssub.s32 %s21, %s33
    %s92 = sor.u32 %s90, %s91
    %p93 = scmp.eq.s32.totalorder %s92, 0
    %s95 = sadd.s32 %s94, 1
    %s96 = scalar_select %p93, %s94, %s95
    %p99 = pneg %p93
    %p100 = scmp.eq.s32.totalorder %s14, 1
    %p101 = por %p99, %p100
    %p102 = scmp.ne.s32.totalorder %s94, %s97
    %p103 = scmp.eq.s32.totalorder %s14, 0
    %p104 = por %p102, %p103
    %p105 = scmp.ne.s32.totalorder %s94, %s97
    %p106 = scmp.eq.s32.totalorder %s19, 1
    %p107 = por %p105, %p106
    %p108 = scmp.ne.s32.totalorder %s97, %s98
    %p109 = scmp.eq.s32.totalorder %s19, 0
    %p110 = por %p108, %p109
    %p111 = scmp.ne.s32.totalorder %s97, %s98
    %p112 = scmp.eq.s32.totalorder %s20, 1
    %p113 = por %p111, %p112
    %p115 = scmp.ne.s32.totalorder %s98, %s114
    %p116 = scmp.eq.s32.totalorder %s20, 0
    %p117 = por %p115, %p116
    %s118 = ssub.s32 %s22, %s29
    %s119 = ssub.s32 %s21, %s33
    %s120 = sor.u32 %s118, %s119
    %p121 = scmp.eq.s32.totalorder %s120, 0
    %s123 = sadd.s32 %s122, 1
    %s124 = scalar_select %p121, %s122, %s123
    %p127 = pneg %p121
    %p128 = scmp.eq.s32.totalorder %s14, 1
    %p129 = por %p127, %p128
    %p130 = scmp.ne.s32.totalorder %s122, %s125
    %p131 = scmp.eq.s32.totalorder %s14, 0
    %p132 = por %p130, %p131
    %p133 = scmp.ne.s32.totalorder %s122, %s125
    %p134 = scmp.eq.s32.totalorder %s19, 1
    %p135 = por %p133, %p134
    %p136 = scmp.ne.s32.totalorder %s125, %s126
    %p137 = scmp.eq.s32.totalorder %s19, 0
    %p138 = por %p136, %p137
    %p139 = scmp.ne.s32.totalorder %s125, %s126
    %p140 = scmp.eq.s32.totalorder %s20, 1
    %p141 = por %p139, %p140
    %p143 = scmp.ne.s32.totalorder %s126, %s142
    %p144 = scmp.eq.s32.totalorder %s20, 0
    %p145 = por %p143, %p144
    %s146 = ssub.s32 %s22, %s29
    %s147 = ssub.s32 %s21, %s33
    %s148 = sor.u32 %s146, %s147
    %p149 = scmp.eq.s32.totalorder %s148, 0
    %s151 = sadd.s32 %s150, 1
    %s152 = scalar_select %p149, %s150, %s151
    %p155 = pneg %p149
    %p156 = scmp.eq.s32.totalorder %s14, 1
    %p157 = por %p155, %p156
    %p158 = scmp.ne.s32.totalorder %s150, %s153
    %p159 = scmp.eq.s32.totalorder %s14, 0
    %p160 = por %p158, %p159
    %p161 = scmp.ne.s32.totalorder %s150, %s153
    %p162 = scmp.eq.s32.totalorder %s19, 1
    %p163 = por %p161, %p162
    %p164 = scmp.ne.s32.totalorder %s153, %s154
    %p165 = scmp.eq.s32.totalorder %s19, 0
    %p166 = por %p164, %p165
    %p167 = scmp.ne.s32.totalorder %s153, %s154
    %p168 = scmp.eq.s32.totalorder %s20, 1
    %p169 = por %p167, %p168
    %p171 = scmp.ne.s32.totalorder %s154, %s170
    %p172 = scmp.eq.s32.totalorder %s20, 0
    %p173 = por %p171, %p172
    %s174 = ssub.s32 %s22, %s29
    %s175 = ssub.s32 %s21, %s33
    %s176 = sor.u32 %s174, %s175
    %p177 = scmp.eq.s32.totalorder %s176, 0
    %s179 = sadd.s32 %s178, 1
    %s180 = scalar_select %p177, %s178, %s179
    %p183 = pneg %p177
    %p184 = scmp.eq.s32.totalorder %s14, 1
    %p185 = por %p183, %p184
    %p186 = scmp.ne.s32.totalorder %s178, %s181
    %p187 = scmp.eq.s32.totalorder %s14, 0
    %p188 = por %p186, %p187
    %p189 = scmp.ne.s32.totalorder %s178, %s181
    %p190 = scmp.eq.s32.totalorder %s19, 1
    %p191 = por %p189, %p190
    %p192 = scmp.ne.s32.totalorder %s181, %s182
    %p193 = scmp.eq.s32.totalorder %s19, 0
    %p194 = por %p192, %p193
    %p195 = scmp.ne.s32.totalorder %s181, %s182
    %p196 = scmp.eq.s32.totalorder %s20, 1
    %p197 = por %p195, %p196
    %p199 = scmp.ne.s32.totalorder %s182, %s198
    %p200 = scmp.eq.s32.totalorder %s20, 0
    %p201 = por %p199, %p200
    %s203 = sadd.s32 %s202, 1
    %p206 = scmp.eq.s32.totalorder %s14, 1
    %p207 = scmp.ne.s32.totalorder %s202, %s204
    %p208 = scmp.eq.s32.totalorder %s14, 0
    %p209 = por %p207, %p208
    %p210 = scmp.ne.s32.totalorder %s202, %s204
    %p211 = scmp.eq.s32.totalorder %s19, 1
    %p212 = por %p210, %p211
    %p213 = scmp.ne.s32.totalorder %s204, %s205
    %p214 = scmp.eq.s32.totalorder %s19, 0
    %p215 = por %p213, %p214
    %p216 = scmp.ne.s32.totalorder %s204, %s205
    %p217 = scmp.eq.s32.totalorder %s20, 1
    %p218 = por %p216, %p217
    %p220 = scmp.ne.s32.totalorder %s205, %s219
    %p221 = scmp.eq.s32.totalorder %s20, 0
    %p222 = por %p220, %p221
    %s224 = sadd.s32 %s223, 1
    %p227 = scmp.eq.s32.totalorder %s14, 1
    %p228 = scmp.ne.s32.totalorder %s223, %s225
    %p229 = scmp.eq.s32.totalorder %s14, 0
    %p230 = por %p228, %p229
    %p231 = scmp.ne.s32.totalorder %s223, %s225
    %p232 = scmp.eq.s32.totalorder %s19, 1
    %p233 = por %p231, %p232
    %p234 = scmp.ne.s32.totalorder %s225, %s226
    %p235 = scmp.eq.s32.totalorder %s19, 0
    %p236 = por %p234, %p235
    %p237 = scmp.ne.s32.totalorder %s225, %s226
    %p238 = scmp.eq.s32.totalorder %s20, 1
    %p239 = por %p237, %p238
    %p241 = scmp.ne.s32.totalorder %s226, %s240
    %p242 = scmp.eq.s32.totalorder %s20, 0
    %p243 = por %p241, %p242
    %s244 = ssub.s32 %s22, %s29
    %s245 = ssub.s32 %s21, %s33
    %s246 = sor.u32 %s244, %s245
    %p247 = scmp.eq.s32.totalorder %s246, 0
    %s249 = sadd.s32 %s248, 1
    %s250 = scalar_select %p247, %s248, %s249
    %p253 = pneg %p247
    %p254 = scmp.eq.s32.totalorder %s14, 1
    %p255 = por %p253, %p254
    %p256 = scmp.ne.s32.totalorder %s248, %s251
    %p257 = scmp.eq.s32.totalorder %s14, 0
    %p258 = por %p256, %p257
    %p259 = scmp.ne.s32.totalorder %s248, %s251
    %p260 = scmp.eq.s32.totalorder %s19, 1
    %p261 = por %p259, %p260
    %p262 = scmp.ne.s32.totalorder %s251, %s252
    %p263 = scmp.eq.s32.totalorder %s19, 0
    %p264 = por %p262, %p263
    %p265 = scmp.ne.s32.totalorder %s251, %s252
    %p266 = scmp.eq.s32.totalorder %s20, 1
    %p267 = por %p265, %p266
    %p269 = scmp.ne.s32.totalorder %s252, %s268
    %p270 = scmp.eq.s32.totalorder %s20, 0
    %p271 = por %p269, %p270
    %p272 = scmp.le.s32.totalorder 1, %s14
    %p273 = scmp.lt.s32.totalorder %s14, 3
    %p274 = pnand %p272, %p273
    %p275 = pneg %p274
    // Predicated region
    $region9: #{msca_forward.3} parent=5 // pred_check
      _
    $region10: #{msca_forward.3} parent=5 // pred_check_branch
      %277 = sbr.rel (%p274) target = $region12
    $region11: #{msca_forward.3} parent=5 // pred_region
      %s278 = ssub.s32 %s14, 1
      // Predicated region
      $region13: #{msca_forward.3} parent=11 // pred_check
        %p279 = pneg %p215
      $region14: #{msca_forward.3} parent=11 // pred_check_branch
        %281 = sbr.rel (%p279) target = $region16
      $region15: #{msca_forward.3} parent=11 // pred_region
        _
      $region16: #{msca_forward.3} parent=11 // pred_fallthru
        _
      // Predicated region
      $region17: #{msca_forward.3} parent=11 // pred_check
        %p282 = pneg %p236
      $region18: #{msca_forward.3} parent=11 // pred_check_branch
        %284 = sbr.rel (%p282) target = $region20
      $region19: #{msca_forward.3} parent=11 // pred_region
        _
      $region20: #{msca_forward.3} parent=11 // pred_fallthru
        _
    $region12: #{msca_forward.3} parent=5 // pred_fallthru
      _
    %p285 = scmp.lt.s32.totalorder %s14, 2
    // Predicated region
    $region21: #{msca_forward.3} parent=5 // pred_check
      %p286 = pneg %p285
    $region22: #{msca_forward.3} parent=5 // pred_check_branch
      %288 = sbr.rel (%p286) target = $region24
    $region23: #{msca_forward.3} parent=5 // pred_region
      // Predicated region
      $region25: #{msca_forward.3} parent=23 // pred_check
        %p289 = pneg %p48
      $region26: #{msca_forward.3} parent=23 // pred_check_branch
        %291 = sbr.rel (%p289) target = $region28
      $region27: #{msca_forward.3} parent=23 // pred_region
        %s292 = smul.u32 2, %s21
        %p293 = scmp.lt.s32.totalorder %s22, 1
        %s294 = scalar_select %p293, %s22, 1
        %p295 = scmp.lt.s32.totalorder %s292, 1
        %s296 = scalar_select %p295, %s292, 1
        %s297 = smul.addr %s294, 2
        %s298 = sadd.s32 %s296, %s297
        %s299 = smul.addr %s298, 8
        %s300 = scalar_lea.vmem %s0, %s299
        %s301 = smul.u32 2, %s21
      $region28: #{msca_forward.3} parent=23 // pred_fallthru
        _
      // Predicated region
      $region29: #{msca_forward.3} parent=23 // pred_check
        %p302 = pneg %p76
      $region30: #{msca_forward.3} parent=23 // pred_check_branch
        %304 = sbr.rel (%p302) target = $region32
      $region31: #{msca_forward.3} parent=23 // pred_region
        %s305 = smul.u32 2, %s21
        %p306 = scmp.lt.s32.totalorder %s22, 1
        %s307 = scalar_select %p306, %s22, 1
        %p308 = scmp.lt.s32.totalorder %s305, 1
        %s309 = scalar_select %p308, %s305, 1
        %s310 = smul.addr %s307, 2
        %s311 = sadd.s32 %s309, %s310
        %s312 = smul.addr %s311, 8
        %s313 = scalar_lea.vmem %s1, %s312
        %s314 = smul.u32 2, %s21
      $region32: #{msca_forward.3} parent=23 // pred_fallthru
        _
      // Predicated region
      $region33: #{msca_forward.3} parent=23 // pred_check
        %p315 = pneg %p104
      $region34: #{msca_forward.3} parent=23 // pred_check_branch
        %317 = sbr.rel (%p315) target = $region36
      $region35: #{msca_forward.3} parent=23 // pred_region
        %s318 = smul.u32 2, %s21
        %p319 = scmp.lt.s32.totalorder %s22, 1
        %s320 = scalar_select %p319, %s22, 1
        %p321 = scmp.lt.s32.totalorder %s318, 1
        %s322 = scalar_select %p321, %s318, 1
        %s323 = smul.addr %s320, 2
        %s324 = sadd.s32 %s322, %s323
        %s325 = smul.addr %s324, 8
        %s326 = scalar_lea.vmem %s2, %s325
        %s327 = smul.u32 2, %s21
      $region36: #{msca_forward.3} parent=23 // pred_fallthru
        _
      // Predicated region
      $region37: #{msca_forward.3} parent=23 // pred_check
        %p328 = pneg %p132
      $region38: #{msca_forward.3} parent=23 // pred_check_branch
        %330 = sbr.rel (%p328) target = $region40
      $region39: #{msca_forward.3} parent=23 // pred_region
        %s331 = smul.u32 2, %s21
        %p332 = scmp.lt.s32.totalorder %s22, 1
        %s333 = scalar_select %p332, %s22, 1
        %p334 = scmp.lt.s32.totalorder %s331, 1
        %s335 = scalar_select %p334, %s331, 1
        %s336 = smul.addr %s333, 2
        %s337 = sadd.s32 %s335, %s336
        %s338 = smul.addr %s337, 8
        %s339 = scalar_lea.vmem %s3, %s338
        %s340 = smul.u32 2, %s21
      $region40: #{msca_forward.3} parent=23 // pred_fallthru
        _
      // Predicated region
      $region41: #{msca_forward.3} parent=23 // pred_check
        %p341 = pneg %p160
      $region42: #{msca_forward.3} parent=23 // pred_check_branch
        %343 = sbr.rel (%p341) target = $region44
      $region43: #{msca_forward.3} parent=23 // pred_region
        %s344 = smul.u32 2, %s21
        %p345 = scmp.lt.s32.totalorder %s22, 1
        %s346 = scalar_select %p345, %s22, 1
        %p347 = scmp.lt.s32.totalorder %s344, 1
        %s348 = scalar_select %p347, %s344, 1
        %s349 = smul.addr %s346, 2
        %s350 = sadd.s32 %s348, %s349
        %s351 = smul.addr %s350, 8
        %s352 = scalar_lea.vmem %s4, %s351
        %s353 = smul.u32 2, %s21
      $region44: #{msca_forward.3} parent=23 // pred_fallthru
        _
      // Predicated region
      $region45: #{msca_forward.3} parent=23 // pred_check
        %p354 = pneg %p188
      $region46: #{msca_forward.3} parent=23 // pred_check_branch
        %356 = sbr.rel (%p354) target = $region48
      $region47: #{msca_forward.3} parent=23 // pred_region
        %s357 = smul.u32 2, %s21
        %p358 = scmp.lt.s32.totalorder %s22, 1
        %s359 = scalar_select %p358, %s22, 1
        %p360 = scmp.lt.s32.totalorder %s357, 1
        %s361 = scalar_select %p360, %s357, 1
        %s362 = smul.addr %s359, 2
        %s363 = sadd.s32 %s361, %s362
        %s364 = smul.addr %s363, 8
        %s365 = scalar_lea.vmem %s5, %s364
        %s366 = smul.u32 2, %s21
      $region48: #{msca_forward.3} parent=23 // pred_fallthru
        _
    $region24: #{msca_forward.3} parent=5 // pred_fallthru
      _
    %p367 = scmp.le.s32.totalorder 1, %s14
    %p368 = scmp.lt.s32.totalorder %s14, 3
    %p369 = pnand %p367, %p368
    %p370 = pneg %p369
    // Predicated region
    $region49: #{msca_forward.3} parent=5 // pred_check
      _
    $region50: #{msca_forward.3} parent=5 // pred_check_branch
      %372 = sbr.rel (%p369) target = $region52
    $region51: #{msca_forward.3} parent=5 // pred_region
      %s373 = ssub.s32 %s14, 1
      %s374 = smul.u32 2, %s23
      %p375 = scmp.lt.s32.totalorder %s24, 1
      %s376 = scalar_select %p375, %s24, 1
      %p377 = scmp.lt.s32.totalorder %s374, 1
      %s378 = scalar_select %p377, %s374, 1
      %s379 = smul.addr %s376, 2
      %s380 = sadd.s32 %s378, %s379
      %s381 = smul.addr %s380, 8
      %s382 = scalar_lea.vmem %s0, %s381
      %p383 = pneg %p54
      %p384 = pneg %p51
      %s385 = smul.u32 2, %s23
      %p386 = scmp.lt.s32.totalorder %s24, 1
      %s387 = scalar_select %p386, %s24, 1
      %p388 = scmp.lt.s32.totalorder %s385, 1
      %s389 = scalar_select %p388, %s385, 1
      %s390 = smul.addr %s387, 2
      %s391 = sadd.s32 %s389, %s390
      %s392 = smul.addr %s391, 8
      %s393 = scalar_lea.vmem %s1, %s392
      %p394 = pneg %p82
      %p395 = pneg %p79
      %s396 = smul.u32 2, %s23
      %p397 = scmp.lt.s32.totalorder %s24, 1
      %s398 = scalar_select %p397, %s24, 1
      %p399 = scmp.lt.s32.totalorder %s396, 1
      %s400 = scalar_select %p399, %s396, 1
      %s401 = smul.addr %s398, 2
      %s402 = sadd.s32 %s400, %s401
      %s403 = smul.addr %s402, 8
      %s404 = scalar_lea.vmem %s2, %s403
      %p405 = pneg %p110
      %p406 = pneg %p107
      %s407 = smul.u32 2, %s23
      %p408 = scmp.lt.s32.totalorder %s24, 1
      %s409 = scalar_select %p408, %s24, 1
      %p410 = scmp.lt.s32.totalorder %s407, 1
      %s411 = scalar_select %p410, %s407, 1
      %s412 = smul.addr %s409, 2
      %s413 = sadd.s32 %s411, %s412
      %s414 = smul.addr %s413, 8
      %s415 = scalar_lea.vmem %s3, %s414
      %p416 = pneg %p138
      %p417 = pneg %p135
      %s418 = smul.u32 2, %s23
      %p419 = scmp.lt.s32.totalorder %s24, 1
      %s420 = scalar_select %p419, %s24, 1
      %p421 = scmp.lt.s32.totalorder %s418, 1
      %s422 = scalar_select %p421, %s418, 1
      %s423 = smul.addr %s420, 2
      %s424 = sadd.s32 %s422, %s423
      %s425 = smul.addr %s424, 8
      %s426 = scalar_lea.vmem %s4, %s425
      %p427 = pneg %p166
      %p428 = pneg %p163
      %s429 = smul.u32 2, %s23
      %p430 = scmp.lt.s32.totalorder %s24, 1
      %s431 = scalar_select %p430, %s24, 1
      %p432 = scmp.lt.s32.totalorder %s429, 1
      %s433 = scalar_select %p432, %s429, 1
      %s434 = smul.addr %s431, 2
      %s435 = sadd.s32 %s433, %s434
      %s436 = smul.addr %s435, 8
      %s437 = scalar_lea.vmem %s5, %s436
      %p438 = pneg %p194
      %p439 = pneg %p191
      %p440 = pneg %p215
      %p441 = pneg %p212
      %p442 = pneg %p236
      %p443 = pneg %p233
      %p444 = pneg %p264
      %p445 = pneg %p261
      %s446 = smul.u32 2, %s23
      %p447 = scmp.lt.s32.totalorder %s24, 1
      %s448 = scalar_select %p447, %s24, 1
      %p449 = scmp.lt.s32.totalorder %s446, 1
      %s450 = scalar_select %p449, %s446, 1
      %s451 = smul.addr %s448, 2
      %s452 = sadd.s32 %s450, %s451
      %s453 = smul.addr %s452, 8
      %s454 = scalar_lea.vmem %s8, %s453
      %s455 = smul.u32 2, %s23
      %p456 = scmp.lt.s32.totalorder %s24, 1
      %s457 = scalar_select %p456, %s24, 1
      %p458 = scmp.lt.s32.totalorder %s455, 1
      %s459 = scalar_select %p458, %s455, 1
      %s460 = smul.addr %s457, 2
      %s461 = sadd.s32 %s459, %s460
      %s462 = smul.addr %s461, 8
      %s463 = scalar_lea.vmem %s0, %s462
      %s464 = smul.u32 2, %s23
      %s465 = smul.u32 2, %s23
      %p466 = scmp.lt.s32.totalorder %s24, 1
      %s467 = scalar_select %p466, %s24, 1
      %p468 = scmp.lt.s32.totalorder %s465, 1
      %s469 = scalar_select %p468, %s465, 1
      %s470 = smul.addr %s467, 2
      %s471 = sadd.s32 %s469, %s470
      %s472 = smul.addr %s471, 8
      %s473 = scalar_lea.vmem %s1, %s472
      %s474 = smul.u32 2, %s23
      %s475 = smul.u32 2, %s23
      %p476 = scmp.lt.s32.totalorder %s24, 1
      %s477 = scalar_select %p476, %s24, 1
      %p478 = scmp.lt.s32.totalorder %s475, 1
      %s479 = scalar_select %p478, %s475, 1
      %s480 = smul.addr %s477, 2
      %s481 = sadd.s32 %s479, %s480
      %s482 = smul.addr %s481, 8
      %s483 = scalar_lea.vmem %s2, %s482
      %s484 = smul.u32 2, %s23
      %s485 = smul.u32 2, %s23
      %p486 = scmp.lt.s32.totalorder %s24, 1
      %s487 = scalar_select %p486, %s24, 1
      %p488 = scmp.lt.s32.totalorder %s485, 1
      %s489 = scalar_select %p488, %s485, 1
      %s490 = smul.addr %s487, 2
      %s491 = sadd.s32 %s489, %s490
      %s492 = smul.addr %s491, 8
      %s493 = scalar_lea.vmem %s3, %s492
      %s494 = smul.u32 2, %s23
      %s495 = smul.u32 2, %s23
      %p496 = scmp.lt.s32.totalorder %s24, 1
      %s497 = scalar_select %p496, %s24, 1
      %p498 = scmp.lt.s32.totalorder %s495, 1
      %s499 = scalar_select %p498, %s495, 1
      %s500 = smul.addr %s497, 2
      %s501 = sadd.s32 %s499, %s500
      %s502 = smul.addr %s501, 8
      %s503 = scalar_lea.vmem %s4, %s502
      %s504 = smul.u32 2, %s23
      %s505 = smul.u32 2, %s23
      %p506 = scmp.lt.s32.totalorder %s24, 1
      %s507 = scalar_select %p506, %s24, 1
      %p508 = scmp.lt.s32.totalorder %s505, 1
      %s509 = scalar_select %p508, %s505, 1
      %s510 = smul.addr %s507, 2
      %s511 = sadd.s32 %s509, %s510
      %s512 = smul.addr %s511, 8
      %s513 = scalar_lea.vmem %s5, %s512
      %s514 = smul.u32 2, %s23
      %s515 = smul.u32 2, %s23
      %p516 = scmp.lt.s32.totalorder %s24, 1
      %s517 = scalar_select %p516, %s24, 1
      %p518 = scmp.lt.s32.totalorder %s515, 1
      %s519 = scalar_select %p518, %s515, 1
      %s520 = smul.addr %s517, 2
      %s521 = sadd.s32 %s519, %s520
      %s522 = smul.addr %s521, 8
      %s523 = scalar_lea.vmem %s8, %s522
      %s524 = smul.u32 2, %s23
      %v525 = vld [vmem:[%s473] sm:$0xff]
      %v526 = vld [vmem:[%s473 + $0x8] sm:$0xff]
      %v527 = vld [vmem:[%s483] sm:$0xff]
      %v528 = vld [vmem:[%s483 + $0x8] sm:$0xff]
      %v529 = vadd.f32 %v525, %v527
      %v530 = vadd.f32 %v526, %v528
      %v531 = vld [vmem:[%s493] sm:$0xff]
      %v532 = vld [vmem:[%s493 + $0x8] sm:$0xff]
      %v533 = vadd.f32 %v529, %v531
      %v534 = vadd.f32 %v530, %v532
      %v535 = vld [vmem:[%s503] sm:$0xff]
      %v536 = vld [vmem:[%s503 + $0x8] sm:$0xff]
      %v537 = vadd.f32 %v533, %v535
      %v538 = vadd.f32 %v534, %v536
      %v539 = vld [vmem:[%s513] sm:$0xff]
      %v540 = vld [vmem:[%s513 + $0x8] sm:$0xff]
      %v541 = vadd.f32 %v537, %v539
      %v542 = vadd.f32 %v538, %v540
      %v543 = vld [vmem:[%s6] sm:$0xff]
      %v544 = vld [vmem:[%s7] sm:$0xff]
      %546 = vset.pattern.permute.xlu0 0
      %547 = vperm.xlu0 %546, %v544
      %v548 = vpop.permute.xlu0 %547
      %vm550 = vcmask 64512
      %v552 = vsel %vm550, %v543, 0
      %554 = vmatpush.msra.mxu0 0.0
      %555 = vmatpush.msra.mxu0 0.0
      %556 = vmatpush.msra.mxu0 0.0
      %557 = vmatpush.msra.mxu0 0.0
      %558 = vmatpush.msra.mxu0 0.0
      %559 = vmatpush.msra.mxu0 0.0
      %560 = vmatpush.msra.mxu0 0.0
      %561 = vmatpush.msra.mxu0 0.0
      %562 = vmatpush.msra.mxu0 0.0
      %563 = vmatpush.msra.mxu0 0.0
      %564 = vmatpush.msra.mxu0 0.0
      %565 = vmatpush.msra.mxu0 0.0
      %566 = vmatpush.msra.mxu0 0.0
      %567 = vmatpush.msra.mxu0 0.0
      %568 = vmatpush.msra.mxu0 0.0
      %v569 = vand.u32 %v541, 4294901760
      %570 = vmatpush.msra.mxu0 %v569
      %v571 = vand.u32 %v552, 4294901760
      %v572 = vsub.f32 %v552, %v571
      %v573 = vand.u32 %v572, 4294901760
      %v574 = vsub.f32 %v572, %v573
      %v575 = vand.u32 %v574, 4294901760
      %576 = vmatmul.f32.gmra.mxu0 %v575
      %v577 = vpop.f32.mrf.mxu0
      %v578 = vadd.f32 %v548, %v577
      %579 = vdwg.mxu0
      %580 = vmatpush.msra.mxu0 0.0
      %581 = vmatpush.msra.mxu0 0.0
      %582 = vmatpush.msra.mxu0 0.0
      %583 = vmatpush.msra.mxu0 0.0
      %584 = vmatpush.msra.mxu0 0.0
      %585 = vmatpush.msra.mxu0 0.0
      %586 = vmatpush.msra.mxu0 0.0
      %587 = vmatpush.msra.mxu0 0.0
      %588 = vmatpush.msra.mxu0 0.0
      %589 = vmatpush.msra.mxu0 0.0
      %590 = vmatpush.msra.mxu0 0.0
      %591 = vmatpush.msra.mxu0 0.0
      %592 = vmatpush.msra.mxu0 0.0
      %593 = vmatpush.msra.mxu0 0.0
      %594 = vmatpush.msra.mxu0 0.0
      %v595 = vand.u32 %v541, 4294901760
      %v596 = vsub.f32 %v541, %v595
      %v597 = vand.u32 %v596, 4294901760
      %v598 = vsub.f32 %v596, %v597
      %v599 = vand.u32 %v598, 4294901760
      %600 = vmatpush.msra.mxu0 %v599
      %v601 = vand.u32 %v552, 4294901760
      %602 = vmatmul.f32.gmra.mxu0 %v601
      %v603 = vpop.f32.mrf.mxu0
      %v604 = vadd.f32 %v578, %v603
      %605 = vdwg.mxu0
      %606 = vmatpush.msra.mxu0 0.0
      %607 = vmatpush.msra.mxu0 0.0
      %608 = vmatpush.msra.mxu0 0.0
      %609 = vmatpush.msra.mxu0 0.0
      %610 = vmatpush.msra.mxu0 0.0
      %611 = vmatpush.msra.mxu0 0.0
      %612 = vmatpush.msra.mxu0 0.0
      %613 = vmatpush.msra.mxu0 0.0
      %614 = vmatpush.msra.mxu0 0.0
      %615 = vmatpush.msra.mxu0 0.0
      %616 = vmatpush.msra.mxu0 0.0
      %617 = vmatpush.msra.mxu0 0.0
      %618 = vmatpush.msra.mxu0 0.0
      %619 = vmatpush.msra.mxu0 0.0
      %620 = vmatpush.msra.mxu0 0.0
      %v621 = vand.u32 %v541, 4294901760
      %v622 = vsub.f32 %v541, %v621
      %623 = vmatpush.msra.mxu0 %v622
      %v624 = vand.u32 %v552, 4294901760
      %v625 = vsub.f32 %v552, %v624
      %626 = vmatmul.f32.gmra.mxu0 %v625
      %v627 = vpop.f32.mrf.mxu0
      %v628 = vadd.f32 %v604, %v627
      %629 = vdwg.mxu0
      %630 = vmatpush.msra.mxu0 0.0
      %631 = vmatpush.msra.mxu0 0.0
      %632 = vmatpush.msra.mxu0 0.0
      %633 = vmatpush.msra.mxu0 0.0
      %634 = vmatpush.msra.mxu0 0.0
      %635 = vmatpush.msra.mxu0 0.0
      %636 = vmatpush.msra.mxu0 0.0
      %637 = vmatpush.msra.mxu0 0.0
      %638 = vmatpush.msra.mxu0 0.0
      %639 = vmatpush.msra.mxu0 0.0
      %640 = vmatpush.msra.mxu0 0.0
      %641 = vmatpush.msra.mxu0 0.0
      %642 = vmatpush.msra.mxu0 0.0
      %643 = vmatpush.msra.mxu0 0.0
      %644 = vmatpush.msra.mxu0 0.0
      %v645 = vand.u32 %v541, 4294901760
      %646 = vmatpush.msra.mxu0 %v645
      %v647 = vand.u32 %v552, 4294901760
      %v648 = vsub.f32 %v552, %v647
      %v649 = vand.u32 %v648, 4294901760
      %650 = vmatmul.f32.gmra.mxu0 %v649
      %v651 = vpop.f32.mrf.mxu0
      %v652 = vadd.f32 %v628, %v651
      %653 = vdwg.mxu0
      %654 = vmatpush.msra.mxu0 0.0
      %655 = vmatpush.msra.mxu0 0.0
      %656 = vmatpush.msra.mxu0 0.0
      %657 = vmatpush.msra.mxu0 0.0
      %658 = vmatpush.msra.mxu0 0.0
      %659 = vmatpush.msra.mxu0 0.0
      %660 = vmatpush.msra.mxu0 0.0
      %661 = vmatpush.msra.mxu0 0.0
      %662 = vmatpush.msra.mxu0 0.0
      %663 = vmatpush.msra.mxu0 0.0
      %664 = vmatpush.msra.mxu0 0.0
      %665 = vmatpush.msra.mxu0 0.0
      %666 = vmatpush.msra.mxu0 0.0
      %667 = vmatpush.msra.mxu0 0.0
      %668 = vmatpush.msra.mxu0 0.0
      %v669 = vand.u32 %v541, 4294901760
      %v670 = vsub.f32 %v541, %v669
      %v671 = vand.u32 %v670, 4294901760
      %672 = vmatpush.msra.mxu0 %v671
      %v673 = vand.u32 %v552, 4294901760
      %674 = vmatmul.f32.gmra.mxu0 %v673
      %v675 = vpop.f32.mrf.mxu0
      %v676 = vadd.f32 %v652, %v675
      %677 = vdwg.mxu0
      %678 = vmatpush.msra.mxu0 0.0
      %679 = vmatpush.msra.mxu0 0.0
      %680 = vmatpush.msra.mxu0 0.0
      %681 = vmatpush.msra.mxu0 0.0
      %682 = vmatpush.msra.mxu0 0.0
      %683 = vmatpush.msra.mxu0 0.0
      %684 = vmatpush.msra.mxu0 0.0
      %685 = vmatpush.msra.mxu0 0.0
      %686 = vmatpush.msra.mxu0 0.0
      %687 = vmatpush.msra.mxu0 0.0
      %688 = vmatpush.msra.mxu0 0.0
      %689 = vmatpush.msra.mxu0 0.0
      %690 = vmatpush.msra.mxu0 0.0
      %691 = vmatpush.msra.mxu0 0.0
      %692 = vmatpush.msra.mxu0 0.0
      %v693 = vand.u32 %v541, 4294901760
      %694 = vmatpush.msra.mxu0 %v693
      %v695 = vand.u32 %v552, 4294901760
      %696 = vmatmul.f32.gmra.mxu0 %v695
      %v697 = vpop.f32.mrf.mxu0
      %v698 = vadd.f32 %v676, %v697
      %699 = vdwg.mxu0
      %700 = vmatpush.msra.mxu0 0.0
      %701 = vmatpush.msra.mxu0 0.0
      %702 = vmatpush.msra.mxu0 0.0
      %703 = vmatpush.msra.mxu0 0.0
      %704 = vmatpush.msra.mxu0 0.0
      %705 = vmatpush.msra.mxu0 0.0
      %706 = vmatpush.msra.mxu0 0.0
      %707 = vmatpush.msra.mxu0 0.0
      %708 = vmatpush.msra.mxu0 0.0
      %709 = vmatpush.msra.mxu0 0.0
      %710 = vmatpush.msra.mxu0 0.0
      %711 = vmatpush.msra.mxu0 0.0
      %712 = vmatpush.msra.mxu0 0.0
      %713 = vmatpush.msra.mxu0 0.0
      %714 = vmatpush.msra.mxu0 0.0
      %v715 = vand.u32 %v542, 4294901760
      %716 = vmatpush.msra.mxu0 %v715
      %v717 = vand.u32 %v552, 4294901760
      %v718 = vsub.f32 %v552, %v717
      %v719 = vand.u32 %v718, 4294901760
      %v720 = vsub.f32 %v718, %v719
      %v721 = vand.u32 %v720, 4294901760
      %722 = vmatmul.f32.gmra.mxu0 %v721
      %v723 = vpop.f32.mrf.mxu0
      %v724 = vadd.f32 %v548, %v723
      %725 = vdwg.mxu0
      %726 = vmatpush.msra.mxu0 0.0
      %727 = vmatpush.msra.mxu0 0.0
      %728 = vmatpush.msra.mxu0 0.0
      %729 = vmatpush.msra.mxu0 0.0
      %730 = vmatpush.msra.mxu0 0.0
      %731 = vmatpush.msra.mxu0 0.0
      %732 = vmatpush.msra.mxu0 0.0
      %733 = vmatpush.msra.mxu0 0.0
      %734 = vmatpush.msra.mxu0 0.0
      %735 = vmatpush.msra.mxu0 0.0
      %736 = vmatpush.msra.mxu0 0.0
      %737 = vmatpush.msra.mxu0 0.0
      %738 = vmatpush.msra.mxu0 0.0
      %739 = vmatpush.msra.mxu0 0.0
      %740 = vmatpush.msra.mxu0 0.0
      %v741 = vand.u32 %v542, 4294901760
      %v742 = vsub.f32 %v542, %v741
      %v743 = vand.u32 %v742, 4294901760
      %v744 = vsub.f32 %v742, %v743
      %v745 = vand.u32 %v744, 4294901760
      %746 = vmatpush.msra.mxu0 %v745
      %v747 = vand.u32 %v552, 4294901760
      %748 = vmatmul.f32.gmra.mxu0 %v747
      %v749 = vpop.f32.mrf.mxu0
      %v750 = vadd.f32 %v724, %v749
      %751 = vdwg.mxu0
      %752 = vmatpush.msra.mxu0 0.0
      %753 = vmatpush.msra.mxu0 0.0
      %754 = vmatpush.msra.mxu0 0.0
      %755 = vmatpush.msra.mxu0 0.0
      %756 = vmatpush.msra.mxu0 0.0
      %757 = vmatpush.msra.mxu0 0.0
      %758 = vmatpush.msra.mxu0 0.0
      %759 = vmatpush.msra.mxu0 0.0
      %760 = vmatpush.msra.mxu0 0.0
      %761 = vmatpush.msra.mxu0 0.0
      %762 = vmatpush.msra.mxu0 0.0
      %763 = vmatpush.msra.mxu0 0.0
      %764 = vmatpush.msra.mxu0 0.0
      %765 = vmatpush.msra.mxu0 0.0
      %766 = vmatpush.msra.mxu0 0.0
      %v767 = vand.u32 %v542, 4294901760
      %v768 = vsub.f32 %v542, %v767
      %769 = vmatpush.msra.mxu0 %v768
      %v770 = vand.u32 %v552, 4294901760
      %v771 = vsub.f32 %v552, %v770
      %772 = vmatmul.f32.gmra.mxu0 %v771
      %v773 = vpop.f32.mrf.mxu0
      %v774 = vadd.f32 %v750, %v773
      %775 = vdwg.mxu0
      %776 = vmatpush.msra.mxu0 0.0
      %777 = vmatpush.msra.mxu0 0.0
      %778 = vmatpush.msra.mxu0 0.0
      %779 = vmatpush.msra.mxu0 0.0
      %780 = vmatpush.msra.mxu0 0.0
      %781 = vmatpush.msra.mxu0 0.0
      %782 = vmatpush.msra.mxu0 0.0
      %783 = vmatpush.msra.mxu0 0.0
      %784 = vmatpush.msra.mxu0 0.0
      %785 = vmatpush.msra.mxu0 0.0
      %786 = vmatpush.msra.mxu0 0.0
      %787 = vmatpush.msra.mxu0 0.0
      %788 = vmatpush.msra.mxu0 0.0
      %789 = vmatpush.msra.mxu0 0.0
      %790 = vmatpush.msra.mxu0 0.0
      %v791 = vand.u32 %v542, 4294901760
      %792 = vmatpush.msra.mxu0 %v791
      %v793 = vand.u32 %v552, 4294901760
      %v794 = vsub.f32 %v552, %v793
      %v795 = vand.u32 %v794, 4294901760
      %796 = vmatmul.f32.gmra.mxu0 %v795
      %v797 = vpop.f32.mrf.mxu0
      %v798 = vadd.f32 %v774, %v797
      %799 = vdwg.mxu0
      %800 = vmatpush.msra.mxu0 0.0
      %801 = vmatpush.msra.mxu0 0.0
      %802 = vmatpush.msra.mxu0 0.0
      %803 = vmatpush.msra.mxu0 0.0
      %804 = vmatpush.msra.mxu0 0.0
      %805 = vmatpush.msra.mxu0 0.0
      %806 = vmatpush.msra.mxu0 0.0
      %807 = vmatpush.msra.mxu0 0.0
      %808 = vmatpush.msra.mxu0 0.0
      %809 = vmatpush.msra.mxu0 0.0
      %810 = vmatpush.msra.mxu0 0.0
      %811 = vmatpush.msra.mxu0 0.0
      %812 = vmatpush.msra.mxu0 0.0
      %813 = vmatpush.msra.mxu0 0.0
      %814 = vmatpush.msra.mxu0 0.0
      %v815 = vand.u32 %v542, 4294901760
      %v816 = vsub.f32 %v542, %v815
      %v817 = vand.u32 %v816, 4294901760
      %818 = vmatpush.msra.mxu0 %v817
      %v819 = vand.u32 %v552, 4294901760
      %820 = vmatmul.f32.gmra.mxu0 %v819
      %v821 = vpop.f32.mrf.mxu0
      %v822 = vadd.f32 %v798, %v821
      %823 = vdwg.mxu0
      %824 = vmatpush.msra.mxu0 0.0
      %825 = vmatpush.msra.mxu0 0.0
      %826 = vmatpush.msra.mxu0 0.0
      %827 = vmatpush.msra.mxu0 0.0
      %828 = vmatpush.msra.mxu0 0.0
      %829 = vmatpush.msra.mxu0 0.0
      %830 = vmatpush.msra.mxu0 0.0
      %831 = vmatpush.msra.mxu0 0.0
      %832 = vmatpush.msra.mxu0 0.0
      %833 = vmatpush.msra.mxu0 0.0
      %834 = vmatpush.msra.mxu0 0.0
      %835 = vmatpush.msra.mxu0 0.0
      %836 = vmatpush.msra.mxu0 0.0
      %837 = vmatpush.msra.mxu0 0.0
      %838 = vmatpush.msra.mxu0 0.0
      %v839 = vand.u32 %v542, 4294901760
      %840 = vmatpush.msra.mxu0 %v839
      %v841 = vand.u32 %v552, 4294901760
      %842 = vmatmul.f32.gmra.mxu0 %v841
      %v843 = vpop.f32.mrf.mxu0
      %v844 = vadd.f32 %v822, %v843
      %845 = vdwg.mxu0
      %v846 = vld [vmem:[%s463] sm:$0xff]
      %v847 = vld [vmem:[%s463 + $0x8] sm:$0xff]
      %v848 = vmul.f32 %v698, %v846
      %v849 = vmul.f32 %v844, %v847
      %v850 = vadd.f32 %v848, %v846
      %v851 = vadd.f32 %v849, %v847
      %852 = vst [vmem:[%s523] sm:$0xff] %v850
      %853 = vst [vmem:[%s523 + $0x8] sm:$0xff] %v851
      %s854 = smul.u32 2, %s23
      %p855 = scmp.lt.s32.totalorder %s24, 1
      %s856 = scalar_select %p855, %s24, 1
      %p857 = scmp.lt.s32.totalorder %s854, 1
      %s858 = scalar_select %p857, %s854, 1
      %s859 = smul.addr %s856, 2
      %s860 = sadd.s32 %s858, %s859
      %s861 = smul.addr %s860, 8
      %s862 = scalar_lea.vmem %s8, %s861
      // Predicated region
      $region53: #{msca_forward.3} parent=51 // pred_check
        %p863 = pneg %p261
      $region54: #{msca_forward.3} parent=51 // pred_check_branch
        %865 = sbr.rel (%p863) target = $region56
      $region55: #{msca_forward.3} parent=51 // pred_region
        %s866 = smul.u32 2, %s23
      $region56: #{msca_forward.3} parent=51 // pred_fallthru
        _
    $region52: #{msca_forward.3} parent=5 // pred_fallthru
      _
    %p867 = scmp.le.s32.totalorder 2, %s14
    // Predicated region
    $region57: #{msca_forward.3} parent=5 // pred_check
      %p868 = pneg %p867
    $region58: #{msca_forward.3} parent=5 // pred_check_branch
      %870 = sbr.rel (%p868) target = $region60
    $region59: #{msca_forward.3} parent=5 // pred_region
      %s871 = ssub.s32 %s14, 2
      // Predicated region
      $region61: #{msca_forward.3} parent=59 // pred_check
        %p872 = pneg %p267
      $region62: #{msca_forward.3} parent=59 // pred_check_branch
        %874 = sbr.rel (%p872) target = $region64
      $region63: #{msca_forward.3} parent=59 // pred_region
        %s875 = smul.u32 2, %s25
        %p876 = scmp.lt.s32.totalorder %s26, 1
        %s877 = scalar_select %p876, %s26, 1
        %p878 = scmp.lt.s32.totalorder %s875, 1
        %s879 = scalar_select %p878, %s875, 1
        %s880 = smul.addr %s877, 2
        %s881 = sadd.s32 %s879, %s880
        %s882 = smul.addr %s881, 8
        %s883 = scalar_lea.vmem %s8, %s882
      $region64: #{msca_forward.3} parent=59 // pred_fallthru
        _
    $region60: #{msca_forward.3} parent=5 // pred_fallthru
      _
  $region6: #{msca_forward.3} parent=0 // loop_footer
    %s18 = sadd.s32 1, %s14
  $region7: #{msca_forward.3} parent=0 // loop_footer_branch
    %13 = sbr.rel target = $region3
  $region8: #{msca_forward.3} parent=0 // loop_exit
    _

</llo_original>
